<compile_context>
chip_gen: v7x
topology: tpu7x:2x2x1
jax: 0.10.0
libtpu: 0.0.40
codegen_flags: <defaults>
</compile_context>

<pallas_src>
import functools
import math

import jax
import jax.numpy as jnp
from jax import lax
from jax.experimental import pallas as pl
from jax.experimental.pallas import tpu as pltpu

ACT_DTYPE = jnp.bfloat16        # HBM storage dtype for intermediate activations
MXU_DTYPE = jnp.bfloat16        # matmul input dtype (always f32 accumulation)
_NEG_INF = -1e30
_LANE = 128
_VMEM_LIMIT = 48 * 1024 * 1024  # fits v7x's 64 MiB physical, raises v5e/v6e default


def _cparams(dims):
    return pltpu.CompilerParams(dimension_semantics=dims,
                                vmem_limit_bytes=_VMEM_LIMIT)


def _choose_l_tile(lpad):
    for t in (512, 256, 128):
        if lpad % t == 0:
            return t
    return lpad  # unreachable: lpad is always a multiple of 128


def _pad_last(a, lpad):
    pad = lpad - a.shape[-1]
    if pad:
        a = jnp.pad(a, [(0, 0)] * (a.ndim - 1) + [(0, pad)])
    return a


# ----------------------------------------------------------------------------
# Pointwise Conv1d (kernel_size=1) kernels, tiled over (batch, L tiles)
# ----------------------------------------------------------------------------
def _conv_kernel(x_ref, w_ref, b_ref, o_ref, *, relu):
    x = x_ref[0].astype(MXU_DTYPE)                       # (Cin, LT)
    w = w_ref[...].astype(MXU_DTYPE)                     # (Cout, Cin)
    y = jnp.dot(w, x, preferred_element_type=jnp.float32) + b_ref[...]
    if relu:
        y = jnp.maximum(y, 0.0)
    o_ref[0] = y.astype(o_ref.dtype)


def pointwise_conv(x, w, b, *, relu=False, out_dtype=ACT_DTYPE):
    B, cin, lpad = x.shape
    cout = w.shape[0]
    lt = _choose_l_tile(lpad)
    flops = 2 * B * lpad * cin * cout
    bytes_acc = (B * lpad * cin * x.dtype.itemsize
                 + B * lpad * cout * jnp.dtype(out_dtype).itemsize
                 + cout * cin * 4)
    return pl.pallas_call(
        functools.partial(_conv_kernel, relu=relu),
        out_shape=jax.ShapeDtypeStruct((B, cout, lpad), out_dtype),
        grid=(B, lpad // lt),
        in_specs=[
            pl.BlockSpec((1, cin, lt), lambda b, l: (b, 0, l)),
            pl.BlockSpec((cout, cin), lambda b, l: (0, 0)),
            pl.BlockSpec((cout, 1), lambda b, l: (0, 0)),
        ],
        out_specs=pl.BlockSpec((1, cout, lt), lambda b, l: (b, 0, l)),
        compiler_params=_cparams(("parallel", "parallel")),
        cost_estimate=pl.CostEstimate(flops=flops, transcendentals=0,
                                      bytes_accessed=bytes_acc),
    )(x, w, b.reshape(cout, 1))


def _conv_mask_kernel(x_ref, w_ref, b_ref, m_ref, o_ref):
    x = x_ref[0].astype(MXU_DTYPE)
    w = w_ref[...].astype(MXU_DTYPE)
    y = jnp.dot(w, x, preferred_element_type=jnp.float32) + b_ref[...]
    o_ref[0] = (y * m_ref[0]).astype(o_ref.dtype)


def pointwise_conv_masked(x, w, b, mask1, *, out_dtype=jnp.float32):
    B, cin, lpad = x.shape
    cout = w.shape[0]
    lt = _choose_l_tile(lpad)
    return pl.pallas_call(
        _conv_mask_kernel,
        out_shape=jax.ShapeDtypeStruct((B, cout, lpad), out_dtype),
        grid=(B, lpad // lt),
        in_specs=[
            pl.BlockSpec((1, cin, lt), lambda b, l: (b, 0, l)),
            pl.BlockSpec((cout, cin), lambda b, l: (0, 0)),
            pl.BlockSpec((cout, 1), lambda b, l: (0, 0)),
            pl.BlockSpec((1, 1, lt), lambda b, l: (b, 0, l)),
        ],
        out_specs=pl.BlockSpec((1, cout, lt), lambda b, l: (b, 0, l)),
        compiler_params=_cparams(("parallel", "parallel")),
    )(x, w, b.reshape(cout, 1), mask1)


# ----------------------------------------------------------------------------
# Fused layer front: ConvFeedForward (+ReLU) -> InstanceNorm -> stacked Q/K
# ----------------------------------------------------------------------------
def _front_kernel(feat_ref, wff_ref, bff_ref, wqk_ref, bqk_ref,
                  ff_ref, q_ref, k_ref, *, eps, cq):
    x = feat_ref[0].astype(MXU_DTYPE)                     # (F, LT)
    ff = jnp.dot(wff_ref[...].astype(MXU_DTYPE), x,
                 preferred_element_type=jnp.float32) + bff_ref[...]
    ff = jnp.maximum(ff, 0.0)                             # ConvFeedForward ReLU
    ff_ref[0] = ff.astype(ff_ref.dtype)
    # InstanceNorm1d over the channel axis, independently per time step.
    mean = jnp.mean(ff, axis=0, keepdims=True)
    var = jnp.mean(jnp.square(ff - mean), axis=0, keepdims=True)
    norm = (ff - mean) * lax.rsqrt(var + eps)
    # Single stacked (2*Cq, F) projection, sliced into Q and K.
    qk = jnp.dot(wqk_ref[...].astype(MXU_DTYPE), norm.astype(MXU_DTYPE),
                 preferred_element_type=jnp.float32) + bqk_ref[...]
    q_ref[0] = qk[:cq].astype(q_ref.dtype)
    k_ref[0] = qk[cq:].astype(k_ref.dtype)


def fused_ff_norm_qk(feature, wff, bff, wqk, bqk, *, eps=1e-5):
    B, F, lpad = feature.shape
    cqk = wqk.shape[0]
    cq = cqk // 2
    lt = _choose_l_tile(lpad)
    flops = 2 * B * lpad * F * (F + cqk)
    bytes_acc = B * lpad * (2 * F + cqk) * jnp.dtype(ACT_DTYPE).itemsize
    return pl.pallas_call(
        functools.partial(_front_kernel, eps=eps, cq=cq),
        out_shape=(jax.ShapeDtypeStruct((B, F, lpad), ACT_DTYPE),
                   jax.ShapeDtypeStruct((B, cq, lpad), ACT_DTYPE),
                   jax.ShapeDtypeStruct((B, cq, lpad), ACT_DTYPE)),
        grid=(B, lpad // lt),
        in_specs=[
            pl.BlockSpec((1, F, lt), lambda b, l: (b, 0, l)),
            pl.BlockSpec((F, F), lambda b, l: (0, 0)),
            pl.BlockSpec((F, 1), lambda b, l: (0, 0)),
            pl.BlockSpec((cqk, F), lambda b, l: (0, 0)),
            pl.BlockSpec((cqk, 1), lambda b, l: (0, 0)),
        ],
        out_specs=(pl.BlockSpec((1, F, lt), lambda b, l: (b, 0, l)),
                   pl.BlockSpec((1, cq, lt), lambda b, l: (b, 0, l)),
                   pl.BlockSpec((1, cq, lt), lambda b, l: (b, 0, l))),
        compiler_params=_cparams(("parallel", "parallel")),
        cost_estimate=pl.CostEstimate(flops=flops, transcendentals=B * lpad,
                                      bytes_accessed=bytes_acc),
    )(feature, wff, bff.reshape(F, 1), wqk, bqk.reshape(cqk, 1))


# ----------------------------------------------------------------------------
# Flash-style masked attention (online softmax, ReLU fused)
# ----------------------------------------------------------------------------
def _flash_attn_kernel(q_ref, k_ref, v_ref, mult_ref, bias_ref, o_ref,
                       m_sc, l_sc, acc_sc):
    ki = pl.program_id(2)

    @pl.when(ki == 0)
    def _():
        m_sc[...] = jnp.full_like(m_sc, _NEG_INF)
        l_sc[...] = jnp.zeros_like(l_sc)
        acc_sc[...] = jnp.zeros_like(acc_sc)

    q = q_ref[0].astype(jnp.float32)          # (Cq, TQ)
    k = k_ref[0].astype(jnp.float32)          # (Cq, TK)
    v = v_ref[0, 0]                           # (Cv, TK), bf16
    # Scores stored transposed: s[j, i] = energy(i, j) = sum_c q[c,i] k[c,j].
    # Keys on sublanes / queries on lanes so the running stats broadcast along
    # lanes and the output stays lane-dense in L.
    s = lax.dot_general(k, q, (((0,), (0,)), ((), ())),
                        preferred_element_type=jnp.float32)          # (TK, TQ)
    # mult = bounded_future_mask / sqrt(Cq); bias = log(mask + 1e-6) (real
    # columns) or ~-inf (columns created by lane padding).
    s = s * mult_ref[0] + bias_ref[0]

    m_prev = m_sc[...]                                               # (1, TQ)
    m_new = jnp.maximum(m_prev, jnp.max(s, axis=0, keepdims=True))
    corr = jnp.exp(m_prev - m_new)
    p = jnp.exp(s - m_new)                                           # (TK, TQ)
    l_sc[...] = corr * l_sc[...] + jnp.sum(p, axis=0, keepdims=True)
    acc_sc[...] = corr * acc_sc[...] + jnp.dot(
        v, p.astype(v.dtype), preferred_element_type=jnp.float32)    # (Cv, TQ)
    m_sc[...] = m_new

    @pl.when(ki == pl.num_programs(2) - 1)
    def _():
        inv = pl.reciprocal(l_sc[...], approx=True)
        # F.relu preceding AttLayer.conv_out is fused here.
        o_ref[0] = jnp.maximum(acc_sc[...] * inv, 0.0).astype(o_ref.dtype)


def flash_attention(q, k, v_all, att_mult, att_bias, *, layer):
    B, cq, lpad = q.shape
    cv = v_all.shape[2]
    t = _choose_l_tile(lpad)
    n = lpad // t
    flops = 2 * B * lpad * lpad * (cq + cv)
    bytes_acc = (B * lpad * (cq + (cq + cv) * n + cv)
                 * jnp.dtype(ACT_DTYPE).itemsize + 2 * B * lpad * 4 * n)
    return pl.pallas_call(
        _flash_attn_kernel,
        out_shape=jax.ShapeDtypeStruct((B, cv, lpad), ACT_DTYPE),
        grid=(B, n, n),
        in_specs=[
            pl.BlockSpec((1, cq, t), lambda b, qi, ki: (b, 0, qi)),
            pl.BlockSpec((1, cq, t), lambda b, qi, ki: (b, 0, ki)),
            pl.BlockSpec((1, 1, cv, t), lambda b, qi, ki: (b, layer, 0, ki)),
            pl.BlockSpec((1, t, 1), lambda b, qi, ki: (b, ki, 0)),
            pl.BlockSpec((1, t, 1), lambda b, qi, ki: (b, ki, 0)),
        ],
        out_specs=pl.BlockSpec((1, cv, t), lambda b, qi, ki: (b, 0, qi)),
        scratch_shapes=[
            pltpu.VMEM((1, t), jnp.float32),     # running max
            pltpu.VMEM((1, t), jnp.float32),     # running denominator
            pltpu.VMEM((cv, t), jnp.float32),    # output accumulator
        ],
        compiler_params=_cparams(("parallel", "parallel", "arbitrary")),
        cost_estimate=pl.CostEstimate(flops=flops, transcendentals=B * lpad * lpad,
                                      bytes_accessed=bytes_acc),
    )(q, k, v_all, att_mult, att_bias)


# ----------------------------------------------------------------------------
# Fused layer tail: conv_out + mask, alpha*att + ff, conv_1x1, residual + mask
# ----------------------------------------------------------------------------
def _tail_kernel(attn_ref, ff_ref, feat_ref, m_ref,
                 wao_ref, bao_ref, w11_ref, b11_ref, o_ref, *, alpha):
    m = m_ref[0]                                                     # (1, LT)
    a = jnp.dot(wao_ref[...].astype(MXU_DTYPE), attn_ref[0],
                preferred_element_type=jnp.float32) + bao_ref[...]   # conv_out
    a = a * m                                                        # AttLayer mask
    u = alpha * a + ff_ref[0].astype(jnp.float32)                    # alpha*att + ff
    y = jnp.dot(w11_ref[...].astype(MXU_DTYPE), u.astype(MXU_DTYPE),
                preferred_element_type=jnp.float32) + b11_ref[...]   # conv_1x1
    # TODO(synk): nn.Dropout() -> identity (inference semantics).
    o_ref[0] = ((feat_ref[0].astype(jnp.float32) + y) * m).astype(o_ref.dtype)


def fused_attn_out_residual(attn, ff, feature, mask1, wao, bao, w11, b11, *, alpha):
    B, F, lpad = feature.shape
    cv = attn.shape[1]
    lt = _choose_l_tile(lpad)
    flops = 2 * B * lpad * F * (cv + F)
    bytes_acc = B * lpad * (cv + 3 * F) * jnp.dtype(ACT_DTYPE).itemsize
    return pl.pallas_call(
        functools.partial(_tail_kernel, alpha=alpha),
        out_shape=jax.ShapeDtypeStruct((B, F, lpad), ACT_DTYPE),
        grid=(B, lpad // lt),
        in_specs=[
            pl.BlockSpec((1, cv, lt), lambda b, l: (b, 0, l)),
            pl.BlockSpec((1, F, lt), lambda b, l: (b, 0, l)),
            pl.BlockSpec((1, F, lt), lambda b, l: (b, 0, l)),
            pl.BlockSpec((1, 1, lt), lambda b, l: (b, 0, l)),
            pl.BlockSpec((F, cv), lambda b, l: (0, 0)),
            pl.BlockSpec((F, 1), lambda b, l: (0, 0)),
            pl.BlockSpec((F, F), lambda b, l: (0, 0)),
            pl.BlockSpec((F, 1), lambda b, l: (0, 0)),
        ],
        out_specs=pl.BlockSpec((1, F, lt), lambda b, l: (b, 0, l)),
        compiler_params=_cparams(("parallel", "parallel")),
        cost_estimate=pl.CostEstimate(flops=flops, transcendentals=0,
                                      bytes_accessed=bytes_acc),
    )(attn, ff, feature, mask1, wao, bao.reshape(F, 1), w11, b11.reshape(F, 1))


# ----------------------------------------------------------------------------
# Parameter initialisation (deterministic, mirrors nn.Conv1d default init)
# ----------------------------------------------------------------------------
def _conv_params(key, cout, cin):
    kw, kb = jax.random.split(key)
    bound = 1.0 / math.sqrt(cin)
    w = jax.random.uniform(kw, (cout, cin), jnp.float32, -bound, bound)
    b = jax.random.uniform(kb, (cout,), jnp.float32, -bound, bound)
    return w, b


def init_decoder_params(key, num_layers, r1, r2, num_f_maps, input_dim, num_classes):
    keys = jax.random.split(key, 2 + num_layers)
    layers, wv_list, bv_list = [], [], []
    for i in range(num_layers):
        lk = jax.random.split(keys[2 + i], 6)
        wff, bff = _conv_params(lk[0], num_f_maps, num_f_maps)        # ConvFeedForward
        wq, bq = _conv_params(lk[1], num_f_maps // r1, num_f_maps)    # query_conv
        wk, bk = _conv_params(lk[2], num_f_maps // r1, num_f_maps)    # key_conv
        wv, bv = _conv_params(lk[3], num_f_maps // r2, num_f_maps)    # value_conv
        wao, bao = _conv_params(lk[4], num_f_maps, num_f_maps // r2)  # AttLayer.conv_out
        w11, b11 = _conv_params(lk[5], num_f_maps, num_f_maps)        # AttModule.conv_1x1
        layers.append(dict(
            ff=(wff, bff),
            # query_conv / key_conv fused into one stacked projection.
            qk=(jnp.concatenate([wq, wk], axis=0), jnp.concatenate([bq, bk], axis=0)),
            att_out=(wao, bao),
            conv_1x1=(w11, b11),
        ))
        wv_list.append(wv)
        bv_list.append(bv)
    return {
        "conv_in": _conv_params(keys[0], num_f_maps, input_dim),
        "conv_out": _conv_params(keys[1], num_classes, num_f_maps),
        # All layers' value_conv stacked: fencoder is loop-invariant, so the V
        # projections are hoisted out of the layer loop and computed once.
        "v_all": (jnp.concatenate(wv_list, axis=0), jnp.concatenate(bv_list, axis=0)),
        "layers": layers,
    }


# ----------------------------------------------------------------------------
# Decoder forward
# ----------------------------------------------------------------------------
def decoder_forward(params, x, fencoder, mask, *, alpha, future_window):
    # x: (B, input_dim, L); fencoder: (B, num_f_maps, L); mask: (B, >=1, L)
    B, _, L = x.shape
    num_layers = len(params["layers"])
    cq = params["layers"][0]["qk"][0].shape[0] // 2
    cv = params["v_all"][0].shape[0] // num_layers

    # Pad L to a lane-aligned length; kernels tile over lane-dense L blocks.
    lpad = ((L + _LANE - 1) // _LANE) * _LANE
    xp = _pad_last(x.astype(jnp.float32), lpad)
    fp = _pad_last(fencoder.astype(jnp.float32), lpad)
    mask1 = _pad_last(mask[:, 0:1, :].astype(jnp.float32), lpad)     # (B, 1, Lp)

    # Attention mask pieces, shared by all layers (precomputed once):
    #   bounded_future_mask = tril(padding_mask, diag = L//2 + future_window),
    #   i.e. keep key columns j <= L//2 + future_window (and valid positions).
    j = jnp.arange(lpad)
    col_keep = ((j <= (L // 2 + future_window)) & (j < L)).astype(jnp.float32)
    bfm = mask1[:, 0, :] * col_keep                                  # (B, Lp)
    scale = 1.0 / math.sqrt(cq)
    att_mult = (bfm * scale)[:, :, None]                             # (B, Lp, 1)
    # Real columns use the reference log-mask (masked cols get ~1e-6 weight,
    # same tiny leakage as the PyTorch code); columns added by lane padding
    # get an exact -inf-like bias so they contribute exactly 0.
    att_bias = jnp.where(j[None, :] < L, jnp.log(bfm + 1e-6), _NEG_INF)[:, :, None]

    feature = pointwise_conv(xp, *params["conv_in"])                 # (B, F, Lp)

    # All layers' value projections of the (loop-invariant) encoder feature.
    v_all = pointwise_conv(fp, *params["v_all"])                     # (B, nl*Cv, Lp)
    v_all = v_all.reshape(B, num_layers, cv, lpad)

    for li, layer_p in enumerate(params["layers"]):
        ff, q, k = fused_ff_norm_qk(feature, *layer_p["ff"], *layer_p["qk"])
        attn = flash_attention(q, k, v_all, att_mult, att_bias, layer=li)
        feature = fused_attn_out_residual(
            attn, ff, feature, mask1,
            *layer_p["att_out"], *layer_p["conv_1x1"], alpha=alpha)

    logits = pointwise_conv_masked(feature, *params["conv_out"], mask1)
    return logits[:, :, :L], feature[:, :, :L].astype(jnp.float32)


# ----------------------------------------------------------------------------
if __name__ == "__main__":
    num_layers, r1, r2 = 2, 2, 2
    num_f_maps, input_dim, num_classes = 32, 8, 8
    alpha, future_window = 1.0, 4
    B, L = 2, 100          # L deliberately not a multiple of 128 (exercises padding)

    key = jax.random.PRNGKey(0)
    kx, kf, kp = jax.random.split(key, 3)
    x = jax.random.normal(kx, (B, input_dim, L), jnp.float32)
    fencoder = jax.random.normal(kf, (B, num_f_maps, L), jnp.float32)
    lengths = jnp.array([L, 70])
    mask = (jnp.arange(L)[None, None, :] < lengths[:, None, None]).astype(jnp.float32)

    params = init_decoder_params(kp, num_layers, r1, r2, num_f_maps,
                                 input_dim, num_classes)

    fwd = jax.jit(functools.partial(decoder_forward, alpha=alpha,
                                    future_window=future_window))
    logits, feature = fwd(params, x, fencoder, mask)
    jax.block_until_ready((logits, feature))

    assert logits.shape == (B, num_classes, L)
    assert feature.shape == (B, num_f_maps, L)
    assert bool(jnp.all(jnp.isfinite(logits))) and bool(jnp.all(jnp.isfinite(feature)))
    # Padded/masked positions of batch 1 (length 70) must be exactly zeroed.
    assert bool(jnp.all(logits[1, :, 70:] == 0.0))
    print("KERNEL_OK")
</pallas_src>

<mosaic_0001>
module attributes {stable_mosaic.version = 11 : i64} {
  func.func @_conv_kernel(%arg0: i32, %arg1: i32, %arg2: memref<1x8x128xf32, #tpu.memory_space<vmem>>, %arg3: memref<32x8xf32, #tpu.memory_space<vmem>>, %arg4: memref<32x1xf32, #tpu.memory_space<vmem>>, %arg5: memref<1x32x128xbf16, #tpu.memory_space<vmem>>) attributes {dimension_semantics = [#tpu.dimension_semantics<parallel>, #tpu.dimension_semantics<parallel>], iteration_bounds = array<i64: 2, 1>, scalar_prefetch = 0 : i64, scratch_operands = 0 : i64, tpu.core_type = #tpu.core_type<tc>, window_params = [{transform_indices = @transform_0, window_bounds = array<i64: 1, 8, 128>}, {pipeline_mode = #tpu.pipeline_mode<synchronous>, transform_indices = @transform_1, window_bounds = array<i64: 32, 8>}, {pipeline_mode = #tpu.pipeline_mode<synchronous>, transform_indices = @transform_2, window_bounds = array<i64: 32, 1>}, {transform_indices = @transform_3, window_bounds = array<i64: 1, 32, 128>}]} {
    %c0 = arith.constant 0 : index
    %c0_0 = arith.constant 0 : index
    %c0_1 = arith.constant 0 : index
    %0 = vector.load %arg2[%c0, %c0_0, %c0_1] : memref<1x8x128xf32, #tpu.memory_space<vmem>>, vector<1x8x128xf32>
    %1 = vector.shape_cast %0 : vector<1x8x128xf32> to vector<8x128xf32>
    %2 = arith.truncf %1 : vector<8x128xf32> to vector<8x128xbf16>
    %c0_2 = arith.constant 0 : index
    %c0_3 = arith.constant 0 : index
    %3 = vector.load %arg3[%c0_2, %c0_3] : memref<32x8xf32, #tpu.memory_space<vmem>>, vector<32x8xf32>
    %4 = arith.truncf %3 : vector<32x8xf32> to vector<32x8xbf16>
    %cst = arith.constant dense<0.000000e+00> : vector<32x128xf32>
    %5 = tpu.matmul %4, %2, %cst {dimension_numbers = #tpu.dot_dimension_numbers<[1], [0], [0], [1], [0, 0, 1, 1], [], []>} : vector<32x8xbf16>, vector<8x128xbf16>, vector<32x128xf32> -> vector<32x128xf32>
    %c0_4 = arith.constant 0 : index
    %c0_5 = arith.constant 0 : index
    %6 = vector.load %arg4[%c0_4, %c0_5] : memref<32x1xf32, #tpu.memory_space<vmem>>, vector<32x1xf32>
    %7 = vector.broadcast %6 : vector<32x1xf32> to vector<32x128xf32>
    %8 = arith.addf %5, %7 : vector<32x128xf32>
    %9 = arith.truncf %8 : vector<32x128xf32> to vector<32x128xbf16>
    %c0_6 = arith.constant 0 : index
    %c0_7 = arith.constant 0 : index
    %c0_8 = arith.constant 0 : index
    %10 = vector.load %arg5[%c0_6, %c0_7, %c0_8] : memref<1x32x128xbf16, #tpu.memory_space<vmem>>, vector<1x32x128xbf16>
    %11 = vector.shape_cast %10 : vector<1x32x128xbf16> to vector<32x128xbf16>
    %12 = vector.shape_cast %9 : vector<32x128xbf16> to vector<1x32x128xbf16>
    tpu.vector_store %arg5[%c0_6, %c0_7, %c0_8], %12 {strides = array<i32>} : memref<1x32x128xbf16, #tpu.memory_space<vmem>>, vector<1x32x128xbf16>,
    return
  }
  func.func @transform_0(%arg0: i32, %arg1: i32) -> (i32, i32, i32) {
    %c0_i32 = arith.constant 0 : i32
    %c0_i32_0 = arith.constant 0 : i32
    return %arg0, %c0_i32, %arg1 : i32, i32, i32
  }
  func.func @transform_1(%arg0: i32, %arg1: i32) -> (i32, i32) {
    %c0_i32 = arith.constant 0 : i32
    %c0_i32_0 = arith.constant 0 : i32
    %c0_i32_1 = arith.constant 0 : i32
    return %c0_i32, %c0_i32_0 : i32, i32
  }
  func.func @transform_2(%arg0: i32, %arg1: i32) -> (i32, i32) {
    %c0_i32 = arith.constant 0 : i32
    %c0_i32_0 = arith.constant 0 : i32
    %c0_i32_1 = arith.constant 0 : i32
    return %c0_i32, %c0_i32_0 : i32, i32
  }
  func.func @transform_3(%arg0: i32, %arg1: i32) -> (i32, i32, i32) {
    %c0_i32 = arith.constant 0 : i32
    %c0_i32_0 = arith.constant 0 : i32
    return %arg0, %c0_i32, %arg1 : i32, i32, i32
  }
}

module attributes {stable_mosaic.version = 11 : i64} {
  func.func @_conv_kernel(%arg0: i32, %arg1: i32, %arg2: memref<1x32x128xf32, #tpu.memory_space<vmem>>, %arg3: memref<32x32xf32, #tpu.memory_space<vmem>>, %arg4: memref<32x1xf32, #tpu.memory_space<vmem>>, %arg5: memref<1x32x128xbf16, #tpu.memory_space<vmem>>) attributes {dimension_semantics = [#tpu.dimension_semantics<parallel>, #tpu.dimension_semantics<parallel>], iteration_bounds = array<i64: 2, 1>, scalar_prefetch = 0 : i64, scratch_operands = 0 : i64, tpu.core_type = #tpu.core_type<tc>, window_params = [{transform_indices = @transform_0, window_bounds = array<i64: 1, 32, 128>}, {pipeline_mode = #tpu.pipeline_mode<synchronous>, transform_indices = @transform_1, window_bounds = array<i64: 32, 32>}, {pipeline_mode = #tpu.pipeline_mode<synchronous>, transform_indices = @transform_2, window_bounds = array<i64: 32, 1>}, {transform_indices = @transform_3, window_bounds = array<i64: 1, 32, 128>}]} {
    %c0 = arith.constant 0 : index
    %c0_0 = arith.constant 0 : index
    %c0_1 = arith.constant 0 : index
    %0 = vector.load %arg2[%c0, %c0_0, %c0_1] : memref<1x32x128xf32, #tpu.memory_space<vmem>>, vector<1x32x128xf32>
    %1 = vector.shape_cast %0 : vector<1x32x128xf32> to vector<32x128xf32>
    %2 = arith.truncf %1 : vector<32x128xf32> to vector<32x128xbf16>
    %c0_2 = arith.constant 0 : index
    %c0_3 = arith.constant 0 : index
    %3 = vector.load %arg3[%c0_2, %c0_3] : memref<32x32xf32, #tpu.memory_space<vmem>>, vector<32x32xf32>
    %4 = arith.truncf %3 : vector<32x32xf32> to vector<32x32xbf16>
    %cst = arith.constant dense<0.000000e+00> : vector<32x128xf32>
    %5 = tpu.matmul %4, %2, %cst {dimension_numbers = #tpu.dot_dimension_numbers<[1], [0], [0], [1], [0, 0, 1, 1], [], []>} : vector<32x32xbf16>, vector<32x128xbf16>, vector<32x128xf32> -> vector<32x128xf32>
    %c0_4 = arith.constant 0 : index
    %c0_5 = arith.constant 0 : index
    %6 = vector.load %arg4[%c0_4, %c0_5] : memref<32x1xf32, #tpu.memory_space<vmem>>, vector<32x1xf32>
    %7 = vector.broadcast %6 : vector<32x1xf32> to vector<32x128xf32>
    %8 = arith.addf %5, %7 : vector<32x128xf32>
    %9 = arith.truncf %8 : vector<32x128xf32> to vector<32x128xbf16>
    %c0_6 = arith.constant 0 : index
    %c0_7 = arith.constant 0 : index
    %c0_8 = arith.constant 0 : index
    %10 = vector.load %arg5[%c0_6, %c0_7, %c0_8] : memref<1x32x128xbf16, #tpu.memory_space<vmem>>, vector<1x32x128xbf16>
    %11 = vector.shape_cast %10 : vector<1x32x128xbf16> to vector<32x128xbf16>
    %12 = vector.shape_cast %9 : vector<32x128xbf16> to vector<1x32x128xbf16>
    tpu.vector_store %arg5[%c0_6, %c0_7, %c0_8], %12 {strides = array<i32>} : memref<1x32x128xbf16, #tpu.memory_space<vmem>>, vector<1x32x128xbf16>,
    return
  }
  func.func @transform_0(%arg0: i32, %arg1: i32) -> (i32, i32, i32) {
    %c0_i32 = arith.constant 0 : i32
    %c0_i32_0 = arith.constant 0 : i32
    return %arg0, %c0_i32, %arg1 : i32, i32, i32
  }
  func.func @transform_1(%arg0: i32, %arg1: i32) -> (i32, i32) {
    %c0_i32 = arith.constant 0 : i32
    %c0_i32_0 = arith.constant 0 : i32
    %c0_i32_1 = arith.constant 0 : i32
    return %c0_i32, %c0_i32_0 : i32, i32
  }
  func.func @transform_2(%arg0: i32, %arg1: i32) -> (i32, i32) {
    %c0_i32 = arith.constant 0 : i32
    %c0_i32_0 = arith.constant 0 : i32
    %c0_i32_1 = arith.constant 0 : i32
    return %c0_i32, %c0_i32_0 : i32, i32
  }
  func.func @transform_3(%arg0: i32, %arg1: i32) -> (i32, i32, i32) {
    %c0_i32 = arith.constant 0 : i32
    %c0_i32_0 = arith.constant 0 : i32
    return %arg0, %c0_i32, %arg1 : i32, i32, i32
  }
}

module attributes {stable_mosaic.version = 11 : i64} {
  func.func @_front_kernel(%arg0: i32, %arg1: i32, %arg2: memref<1x32x128xbf16, #tpu.memory_space<vmem>>, %arg3: memref<32x32xf32, #tpu.memory_space<vmem>>, %arg4: memref<32x1xf32, #tpu.memory_space<vmem>>, %arg5: memref<32x32xf32, #tpu.memory_space<vmem>>, %arg6: memref<32x1xf32, #tpu.memory_space<vmem>>, %arg7: memref<1x32x128xbf16, #tpu.memory_space<vmem>>, %arg8: memref<1x16x128xbf16, #tpu.memory_space<vmem>>, %arg9: memref<1x16x128xbf16, #tpu.memory_space<vmem>>) attributes {dimension_semantics = [#tpu.dimension_semantics<parallel>, #tpu.dimension_semantics<parallel>], iteration_bounds = array<i64: 2, 1>, scalar_prefetch = 0 : i64, scratch_operands = 0 : i64, tpu.core_type = #tpu.core_type<tc>, window_params = [{transform_indices = @transform_0, window_bounds = array<i64: 1, 32, 128>}, {pipeline_mode = #tpu.pipeline_mode<synchronous>, transform_indices = @transform_1, window_bounds = array<i64: 32, 32>}, {pipeline_mode = #tpu.pipeline_mode<synchronous>, transform_indices = @transform_2, window_bounds = array<i64: 32, 1>}, {pipeline_mode = #tpu.pipeline_mode<synchronous>, transform_indices = @transform_3, window_bounds = array<i64: 32, 32>}, {pipeline_mode = #tpu.pipeline_mode<synchronous>, transform_indices = @transform_4, window_bounds = array<i64: 32, 1>}, {transform_indices = @transform_5, window_bounds = array<i64: 1, 32, 128>}, {transform_indices = @transform_6, window_bounds = array<i64: 1, 16, 128>}, {transform_indices = @transform_7, window_bounds = array<i64: 1, 16, 128>}]} {
    %c0 = arith.constant 0 : index
    %c0_0 = arith.constant 0 : index
    %c0_1 = arith.constant 0 : index
    %0 = vector.load %arg2[%c0, %c0_0, %c0_1] : memref<1x32x128xbf16, #tpu.memory_space<vmem>>, vector<1x32x128xbf16>
    %1 = vector.shape_cast %0 : vector<1x32x128xbf16> to vector<32x128xbf16>
    %c0_2 = arith.constant 0 : index
    %c0_3 = arith.constant 0 : index
    %2 = vector.load %arg3[%c0_2, %c0_3] : memref<32x32xf32, #tpu.memory_space<vmem>>, vector<32x32xf32>
    %3 = arith.truncf %2 : vector<32x32xf32> to vector<32x32xbf16>
    %cst = arith.constant dense<0.000000e+00> : vector<32x128xf32>
    %4 = tpu.matmul %3, %1, %cst {dimension_numbers = #tpu.dot_dimension_numbers<[1], [0], [0], [1], [0, 0, 1, 1], [], []>} : vector<32x32xbf16>, vector<32x128xbf16>, vector<32x128xf32> -> vector<32x128xf32>
    %c0_4 = arith.constant 0 : index
    %c0_5 = arith.constant 0 : index
    %5 = vector.load %arg4[%c0_4, %c0_5] : memref<32x1xf32, #tpu.memory_space<vmem>>, vector<32x1xf32>
    %6 = vector.broadcast %5 : vector<32x1xf32> to vector<32x128xf32>
    %7 = arith.addf %4, %6 : vector<32x128xf32>
    %cst_6 = arith.constant 0.000000e+00 : f32
    %8 = vector.broadcast %cst_6 : f32 to vector<32x128xf32>
    %9 = arith.maximumf %7, %8 : vector<32x128xf32>
    %10 = arith.truncf %9 : vector<32x128xf32> to vector<32x128xbf16>
    %c0_7 = arith.constant 0 : index
    %c0_8 = arith.constant 0 : index
    %c0_9 = arith.constant 0 : index
    %11 = vector.load %arg7[%c0_7, %c0_8, %c0_9] : memref<1x32x128xbf16, #tpu.memory_space<vmem>>, vector<1x32x128xbf16>
    %12 = vector.shape_cast %11 : vector<1x32x128xbf16> to vector<32x128xbf16>
    %13 = vector.shape_cast %10 : vector<32x128xbf16> to vector<1x32x128xbf16>
    tpu.vector_store %arg7[%c0_7, %c0_8, %c0_9], %13 {strides = array<i32>} : memref<1x32x128xbf16, #tpu.memory_space<vmem>>, vector<1x32x128xbf16>,
    %cst_10 = arith.constant dense<0.000000e+00> : vector<128xf32>
    %14 = vector.multi_reduction <add>, %9, %cst_10 [0] : vector<32x128xf32> to vector<128xf32>
    %15 = vector.shape_cast %14 : vector<128xf32> to vector<1x128xf32>
    %cst_11 = arith.constant 3.200000e+01 : f32
    %16 = vector.broadcast %cst_11 : f32 to vector<1x128xf32>
    %17 = arith.divf %15, %16 : vector<1x128xf32>
    %18 = vector.broadcast %17 : vector<1x128xf32> to vector<32x128xf32>
    %19 = arith.subf %9, %18 : vector<32x128xf32>
    %20 = arith.mulf %19, %19 : vector<32x128xf32>
    %cst_12 = arith.constant dense<0.000000e+00> : vector<128xf32>
    %21 = vector.multi_reduction <add>, %20, %cst_12 [0] : vector<32x128xf32> to vector<128xf32>
    %22 = vector.shape_cast %21 : vector<128xf32> to vector<1x128xf32>
    %cst_13 = arith.constant 3.200000e+01 : f32
    %23 = vector.broadcast %cst_13 : f32 to vector<1x128xf32>
    %24 = arith.divf %22, %23 : vector<1x128xf32>
    %25 = vector.broadcast %17 : vector<1x128xf32> to vector<32x128xf32>
    %26 = arith.subf %9, %25 : vector<32x128xf32>
    %cst_14 = arith.constant 9.99999974E-6 : f32
    %27 = vector.broadcast %cst_14 : f32 to vector<1x128xf32>
    %28 = arith.addf %24, %27 : vector<1x128xf32>
    %29 = math.rsqrt %28 : vector<1x128xf32>
    %30 = vector.broadcast %29 : vector<1x128xf32> to vector<32x128xf32>
    %31 = arith.mulf %26, %30 : vector<32x128xf32>
    %c0_15 = arith.constant 0 : index
    %c0_16 = arith.constant 0 : index
    %32 = vector.load %arg5[%c0_15, %c0_16] : memref<32x32xf32, #tpu.memory_space<vmem>>, vector<32x32xf32>
    %33 = arith.truncf %32 : vector<32x32xf32> to vector<32x32xbf16>
    %34 = arith.truncf %31 : vector<32x128xf32> to vector<32x128xbf16>
    %cst_17 = arith.constant dense<0.000000e+00> : vector<32x128xf32>
    %35 = tpu.matmul %33, %34, %cst_17 {dimension_numbers = #tpu.dot_dimension_numbers<[1], [0], [0], [1], [0, 0, 1, 1], [], []>} : vector<32x32xbf16>, vector<32x128xbf16>, vector<32x128xf32> -> vector<32x128xf32>
    %c0_18 = arith.constant 0 : index
    %c0_19 = arith.constant 0 : index
    %36 = vector.load %arg6[%c0_18, %c0_19] : memref<32x1xf32, #tpu.memory_space<vmem>>, vector<32x1xf32>
    %37 = vector.broadcast %36 : vector<32x1xf32> to vector<32x128xf32>
    %38 = arith.addf %35, %37 : vector<32x128xf32>
    %39 = vector.extract_strided_slice %38 {offsets = [0, 0], sizes = [16, 128], strides = [1, 1]} : vector<32x128xf32> to vector<16x128xf32>
    %40 = arith.truncf %39 : vector<16x128xf32> to vector<16x128xbf16>
    %c0_20 = arith.constant 0 : index
    %c0_21 = arith.constant 0 : index
    %c0_22 = arith.constant 0 : index
    %41 = vector.load %arg8[%c0_20, %c0_21, %c0_22] : memref<1x16x128xbf16, #tpu.memory_space<vmem>>, vector<1x16x128xbf16>
    %42 = vector.shape_cast %41 : vector<1x16x128xbf16> to vector<16x128xbf16>
    %43 = vector.shape_cast %40 : vector<16x128xbf16> to vector<1x16x128xbf16>
    tpu.vector_store %arg8[%c0_20, %c0_21, %c0_22], %43 {strides = array<i32>} : memref<1x16x128xbf16, #tpu.memory_space<vmem>>, vector<1x16x128xbf16>,
    %44 = vector.extract_strided_slice %38 {offsets = [16, 0], sizes = [16, 128], strides = [1, 1]} : vector<32x128xf32> to vector<16x128xf32>
    %45 = arith.truncf %44 : vector<16x128xf32> to vector<16x128xbf16>
    %c0_23 = arith.constant 0 : index
    %c0_24 = arith.constant 0 : index
    %c0_25 = arith.constant 0 : index
    %46 = vector.load %arg9[%c0_23, %c0_24, %c0_25] : memref<1x16x128xbf16, #tpu.memory_space<vmem>>, vector<1x16x128xbf16>
    %47 = vector.shape_cast %46 : vector<1x16x128xbf16> to vector<16x128xbf16>
    %48 = vector.shape_cast %45 : vector<16x128xbf16> to vector<1x16x128xbf16>
    tpu.vector_store %arg9[%c0_23, %c0_24, %c0_25], %48 {strides = array<i32>} : memref<1x16x128xbf16, #tpu.memory_space<vmem>>, vector<1x16x128xbf16>,
    return
  }
  func.func @transform_0(%arg0: i32, %arg1: i32) -> (i32, i32, i32) {
    %c0_i32 = arith.constant 0 : i32
    %c0_i32_0 = arith.constant 0 : i32
    return %arg0, %c0_i32, %arg1 : i32, i32, i32
  }
  func.func @transform_1(%arg0: i32, %arg1: i32) -> (i32, i32) {
    %c0_i32 = arith.constant 0 : i32
    %c0_i32_0 = arith.constant 0 : i32
    %c0_i32_1 = arith.constant 0 : i32
    return %c0_i32, %c0_i32_0 : i32, i32
  }
  func.func @transform_2(%arg0: i32, %arg1: i32) -> (i32, i32) {
    %c0_i32 = arith.constant 0 : i32
    %c0_i32_0 = arith.constant 0 : i32
    %c0_i32_1 = arith.constant 0 : i32
    return %c0_i32, %c0_i32_0 : i32, i32
  }
  func.func @transform_3(%arg0: i32, %arg1: i32) -> (i32, i32) {
    %c0_i32 = arith.constant 0 : i32
    %c0_i32_0 = arith.constant 0 : i32
    %c0_i32_1 = arith.constant 0 : i32
    return %c0_i32, %c0_i32_0 : i32, i32
  }
  func.func @transform_4(%arg0: i32, %arg1: i32) -> (i32, i32) {
    %c0_i32 = arith.constant 0 : i32
    %c0_i32_0 = arith.constant 0 : i32
    %c0_i32_1 = arith.constant 0 : i32
    return %c0_i32, %c0_i32_0 : i32, i32
  }
  func.func @transform_5(%arg0: i32, %arg1: i32) -> (i32, i32, i32) {
    %c0_i32 = arith.constant 0 : i32
    %c0_i32_0 = arith.constant 0 : i32
    return %arg0, %c0_i32, %arg1 : i32, i32, i32
  }
  func.func @transform_6(%arg0: i32, %arg1: i32) -> (i32, i32, i32) {
    %c0_i32 = arith.constant 0 : i32
    %c0_i32_0 = arith.constant 0 : i32
    return %arg0, %c0_i32, %arg1 : i32, i32, i32
  }
  func.func @transform_7(%arg0: i32, %arg1: i32) -> (i32, i32, i32) {
    %c0_i32 = arith.constant 0 : i32
    %c0_i32_0 = arith.constant 0 : i32
    return %arg0, %c0_i32, %arg1 : i32, i32, i32
  }
}

module attributes {stable_mosaic.version = 11 : i64} {
  func.func @_flash_attn_kernel(%arg0: i32, %arg1: i32, %arg2: i32, %arg3: memref<1x16x128xbf16, #tpu.memory_space<vmem>>, %arg4: memref<1x16x128xbf16, #tpu.memory_space<vmem>>, %arg5: memref<1x1x16x128xbf16, #tpu.memory_space<vmem>>, %arg6: memref<1x128x1xf32, #tpu.memory_space<vmem>>, %arg7: memref<1x128x1xf32, #tpu.memory_space<vmem>>, %arg8: memref<1x16x128xbf16, #tpu.memory_space<vmem>>, %arg9: memref<1x128xf32, #tpu.memory_space<vmem>>, %arg10: memref<1x128xf32, #tpu.memory_space<vmem>>, %arg11: memref<16x128xf32, #tpu.memory_space<vmem>>) attributes {dimension_semantics = [#tpu.dimension_semantics<parallel>, #tpu.dimension_semantics<parallel>, #tpu.dimension_semantics<arbitrary>], iteration_bounds = array<i64: 2, 1, 1>, scalar_prefetch = 0 : i64, scratch_operands = 3 : i64, tpu.core_type = #tpu.core_type<tc>, window_params = [{transform_indices = @transform_0, window_bounds = array<i64: 1, 16, 128>}, {transform_indices = @transform_1, window_bounds = array<i64: 1, 16, 128>}, {transform_indices = @transform_2, window_bounds = array<i64: 1, 1, 16, 128>}, {transform_indices = @transform_3, window_bounds = array<i64: 1, 128, 1>}, {transform_indices = @transform_4, window_bounds = array<i64: 1, 128, 1>}, {transform_indices = @transform_5, window_bounds = array<i64: 1, 16, 128>}]} {
    %c0_i32 = arith.constant 0 : i32
    %0 = arith.cmpi eq, %arg2, %c0_i32 : i32
    %1 = arith.extui %0 : i1 to i32
    %c0_i32_0 = arith.constant 0 : i32
    %2 = arith.cmpi ne, %1, %c0_i32_0 : i32
    scf.if %2 {
      %cst_33 = arith.constant -1.000000e+30 : f32
      %46 = vector.broadcast %cst_33 : f32 to vector<1x128xf32>
      %c0_34 = arith.constant 0 : index
      %c0_35 = arith.constant 0 : index
      %47 = vector.load %arg9[%c0_34, %c0_35] : memref<1x128xf32, #tpu.memory_space<vmem>>, vector<1x128xf32>
      tpu.vector_store %arg9[%c0_34, %c0_35], %46 {strides = array<i32>} : memref<1x128xf32, #tpu.memory_space<vmem>>, vector<1x128xf32>,
      %cst_36 = arith.constant 0.000000e+00 : f32
      %48 = vector.broadcast %cst_36 : f32 to vector<1x128xf32>
      %c0_37 = arith.constant 0 : index
      %c0_38 = arith.constant 0 : index
      %49 = vector.load %arg10[%c0_37, %c0_38] : memref<1x128xf32, #tpu.memory_space<vmem>>, vector<1x128xf32>
      tpu.vector_store %arg10[%c0_37, %c0_38], %48 {strides = array<i32>} : memref<1x128xf32, #tpu.memory_space<vmem>>, vector<1x128xf32>,
      %cst_39 = arith.constant 0.000000e+00 : f32
      %50 = vector.broadcast %cst_39 : f32 to vector<16x128xf32>
      %c0_40 = arith.constant 0 : index
      %c0_41 = arith.constant 0 : index
      %51 = vector.load %arg11[%c0_40, %c0_41] : memref<16x128xf32, #tpu.memory_space<vmem>>, vector<16x128xf32>
      tpu.vector_store %arg11[%c0_40, %c0_41], %50 {strides = array<i32>} : memref<16x128xf32, #tpu.memory_space<vmem>>, vector<16x128xf32>,
    } else {
    }
    %c0 = arith.constant 0 : index
    %c0_1 = arith.constant 0 : index
    %c0_2 = arith.constant 0 : index
    %3 = vector.load %arg3[%c0, %c0_1, %c0_2] : memref<1x16x128xbf16, #tpu.memory_space<vmem>>, vector<1x16x128xbf16>
    %4 = vector.shape_cast %3 : vector<1x16x128xbf16> to vector<16x128xbf16>
    %5 = arith.extf %4 : vector<16x128xbf16> to vector<16x128xf32>
    %c0_3 = arith.constant 0 : index
    %c0_4 = arith.constant 0 : index
    %c0_5 = arith.constant 0 : index
    %6 = vector.load %arg4[%c0_3, %c0_4, %c0_5] : memref<1x16x128xbf16, #tpu.memory_space<vmem>>, vector<1x16x128xbf16>
    %7 = vector.shape_cast %6 : vector<1x16x128xbf16> to vector<16x128xbf16>
    %8 = arith.extf %7 : vector<16x128xbf16> to vector<16x128xf32>
    %c0_6 = arith.constant 0 : index
    %c0_7 = arith.constant 0 : index
    %c0_8 = arith.constant 0 : index
    %c0_9 = arith.constant 0 : index
    %9 = vector.load %arg5[%c0_6, %c0_7, %c0_8, %c0_9] : memref<1x1x16x128xbf16, #tpu.memory_space<vmem>>, vector<1x1x16x128xbf16>
    %10 = vector.shape_cast %9 : vector<1x1x16x128xbf16> to vector<16x128xbf16>
    %cst = arith.constant dense<0.000000e+00> : vector<128x128xf32>
    %11 = tpu.matmul %8, %5, %cst {dimension_numbers = #tpu.dot_dimension_numbers<[0], [0], [1], [1], [0, 1, 1, 1], [], []>} : vector<16x128xf32>, vector<16x128xf32>, vector<128x128xf32> -> vector<128x128xf32>
    %c0_10 = arith.constant 0 : index
    %c0_11 = arith.constant 0 : index
    %c0_12 = arith.constant 0 : index
    %12 = vector.load %arg6[%c0_10, %c0_11, %c0_12] : memref<1x128x1xf32, #tpu.memory_space<vmem>>, vector<1x128x1xf32>
    %13 = vector.shape_cast %12 : vector<1x128x1xf32> to vector<128x1xf32>
    %14 = vector.broadcast %13 : vector<128x1xf32> to vector<128x128xf32>
    %15 = arith.mulf %11, %14 : vector<128x128xf32>
    %c0_13 = arith.constant 0 : index
    %c0_14 = arith.constant 0 : index
    %c0_15 = arith.constant 0 : index
    %16 = vector.load %arg7[%c0_13, %c0_14, %c0_15] : memref<1x128x1xf32, #tpu.memory_space<vmem>>, vector<1x128x1xf32>
    %17 = vector.shape_cast %16 : vector<1x128x1xf32> to vector<128x1xf32>
    %18 = vector.broadcast %17 : vector<128x1xf32> to vector<128x128xf32>
    %19 = arith.addf %15, %18 : vector<128x128xf32>
    %c0_16 = arith.constant 0 : index
    %c0_17 = arith.constant 0 : index
    %20 = vector.load %arg9[%c0_16, %c0_17] : memref<1x128xf32, #tpu.memory_space<vmem>>, vector<1x128xf32>
    %cst_18 = arith.constant dense<0xFF800000> : vector<128xf32>
    %21 = vector.multi_reduction <maximumf>, %19, %cst_18 [0] : vector<128x128xf32> to vector<128xf32>
    %22 = vector.shape_cast %21 : vector<128xf32> to vector<1x128xf32>
    %23 = arith.maximumf %20, %22 : vector<1x128xf32>
    %24 = arith.subf %20, %23 : vector<1x128xf32>
    %25 = math.exp %24 : vector<1x128xf32>
    %26 = vector.broadcast %23 : vector<1x128xf32> to vector<128x128xf32>
    %27 = arith.subf %19, %26 : vector<128x128xf32>
    %28 = math.exp %27 : vector<128x128xf32>
    %c0_19 = arith.constant 0 : index
    %c0_20 = arith.constant 0 : index
    %29 = vector.load %arg10[%c0_19, %c0_20] : memref<1x128xf32, #tpu.memory_space<vmem>>, vector<1x128xf32>
    %30 = arith.mulf %25, %29 : vector<1x128xf32>
    %cst_21 = arith.constant dense<0.000000e+00> : vector<128xf32>
    %31 = vector.multi_reduction <add>, %28, %cst_21 [0] : vector<128x128xf32> to vector<128xf32>
    %32 = vector.shape_cast %31 : vector<128xf32> to vector<1x128xf32>
    %33 = arith.addf %30, %32 : vector<1x128xf32>
    %c0_22 = arith.constant 0 : index
    %c0_23 = arith.constant 0 : index
    %34 = vector.load %arg10[%c0_22, %c0_23] : memref<1x128xf32, #tpu.memory_space<vmem>>, vector<1x128xf32>
    tpu.vector_store %arg10[%c0_22, %c0_23], %33 {strides = array<i32>} : memref<1x128xf32, #tpu.memory_space<vmem>>, vector<1x128xf32>,
    %c0_24 = arith.constant 0 : index
    %c0_25 = arith.constant 0 : index
    %35 = vector.load %arg11[%c0_24, %c0_25] : memref<16x128xf32, #tpu.memory_space<vmem>>, vector<16x128xf32>
    %36 = vector.broadcast %25 : vector<1x128xf32> to vector<16x128xf32>
    %37 = arith.mulf %36, %35 : vector<16x128xf32>
    %38 = arith.truncf %28 : vector<128x128xf32> to vector<128x128xbf16>
    %cst_26 = arith.constant dense<0.000000e+00> : vector<16x128xf32>
    %39 = tpu.matmul %10, %38, %cst_26 {dimension_numbers = #tpu.dot_dimension_numbers<[1], [0], [0], [1], [0, 0, 1, 1], [], []>} : vector<16x128xbf16>, vector<128x128xbf16>, vector<16x128xf32> -> vector<16x128xf32>
    %40 = arith.addf %37, %39 : vector<16x128xf32>
    %c0_27 = arith.constant 0 : index
    %c0_28 = arith.constant 0 : index
    %41 = vector.load %arg11[%c0_27, %c0_28] : memref<16x128xf32, #tpu.memory_space<vmem>>, vector<16x128xf32>
    tpu.vector_store %arg11[%c0_27, %c0_28], %40 {strides = array<i32>} : memref<16x128xf32, #tpu.memory_space<vmem>>, vector<16x128xf32>,
    %c0_29 = arith.constant 0 : index
    %c0_30 = arith.constant 0 : index
    %42 = vector.load %arg9[%c0_29, %c0_30] : memref<1x128xf32, #tpu.memory_space<vmem>>, vector<1x128xf32>
    tpu.vector_store %arg9[%c0_29, %c0_30], %23 {strides = array<i32>} : memref<1x128xf32, #tpu.memory_space<vmem>>, vector<1x128xf32>,
    %c0_i32_31 = arith.constant 0 : i32
    %43 = arith.cmpi eq, %arg2, %c0_i32_31 : i32
    %44 = arith.extui %43 : i1 to i32
    %c0_i32_32 = arith.constant 0 : i32
    %45 = arith.cmpi ne, %44, %c0_i32_32 : i32
    scf.if %45 {
      %c0_33 = arith.constant 0 : index
      %c0_34 = arith.constant 0 : index
      %46 = vector.load %arg10[%c0_33, %c0_34] : memref<1x128xf32, #tpu.memory_space<vmem>>, vector<1x128xf32>
      %47 = tpu.reciprocal %46 {approx = true} : vector<1x128xf32> -> vector<1x128xf32>
      %c0_35 = arith.constant 0 : index
      %c0_36 = arith.constant 0 : index
      %48 = vector.load %arg11[%c0_35, %c0_36] : memref<16x128xf32, #tpu.memory_space<vmem>>, vector<16x128xf32>
      %49 = vector.broadcast %47 : vector<1x128xf32> to vector<16x128xf32>
      %50 = arith.mulf %48, %49 : vector<16x128xf32>
      %cst_37 = arith.constant 0.000000e+00 : f32
      %51 = vector.broadcast %cst_37 : f32 to vector<16x128xf32>
      %52 = arith.maximumf %50, %51 : vector<16x128xf32>
      %53 = arith.truncf %52 : vector<16x128xf32> to vector<16x128xbf16>
      %c0_38 = arith.constant 0 : index
      %c0_39 = arith.constant 0 : index
      %c0_40 = arith.constant 0 : index
      %54 = vector.load %arg8[%c0_38, %c0_39, %c0_40] : memref<1x16x128xbf16, #tpu.memory_space<vmem>>, vector<1x16x128xbf16>
      %55 = vector.shape_cast %54 : vector<1x16x128xbf16> to vector<16x128xbf16>
      %56 = vector.shape_cast %53 : vector<16x128xbf16> to vector<1x16x128xbf16>
      tpu.vector_store %arg8[%c0_38, %c0_39, %c0_40], %56 {strides = array<i32>} : memref<1x16x128xbf16, #tpu.memory_space<vmem>>, vector<1x16x128xbf16>,
    } else {
    }
    return
  }
  func.func @transform_0(%arg0: i32, %arg1: i32, %arg2: i32) -> (i32, i32, i32) {
    %c0_i32 = arith.constant 0 : i32
    %c0_i32_0 = arith.constant 0 : i32
    return %arg0, %c0_i32, %arg1 : i32, i32, i32
  }
  func.func @transform_1(%arg0: i32, %arg1: i32, %arg2: i32) -> (i32, i32, i32) {
    %c0_i32 = arith.constant 0 : i32
    %c0_i32_0 = arith.constant 0 : i32
    return %arg0, %c0_i32, %arg2 : i32, i32, i32
  }
  func.func @transform_2(%arg0: i32, %arg1: i32, %arg2: i32) -> (i32, i32, i32, i32) {
    %c0_i32 = arith.constant 0 : i32
    %c0_i32_0 = arith.constant 0 : i32
    %c0_i32_1 = arith.constant 0 : i32
    return %arg0, %c0_i32, %c0_i32_0, %arg2 : i32, i32, i32, i32
  }
  func.func @transform_3(%arg0: i32, %arg1: i32, %arg2: i32) -> (i32, i32, i32) {
    %c0_i32 = arith.constant 0 : i32
    %c0_i32_0 = arith.constant 0 : i32
    return %arg0, %arg2, %c0_i32 : i32, i32, i32
  }
  func.func @transform_4(%arg0: i32, %arg1: i32, %arg2: i32) -> (i32, i32, i32) {
    %c0_i32 = arith.constant 0 : i32
    %c0_i32_0 = arith.constant 0 : i32
    return %arg0, %arg2, %c0_i32 : i32, i32, i32
  }
  func.func @transform_5(%arg0: i32, %arg1: i32, %arg2: i32) -> (i32, i32, i32) {
    %c0_i32 = arith.constant 0 : i32
    %c0_i32_0 = arith.constant 0 : i32
    return %arg0, %c0_i32, %arg1 : i32, i32, i32
  }
}

module attributes {stable_mosaic.version = 11 : i64} {
  func.func @_tail_kernel(%arg0: i32, %arg1: i32, %arg2: memref<1x16x128xbf16, #tpu.memory_space<vmem>>, %arg3: memref<1x32x128xbf16, #tpu.memory_space<vmem>>, %arg4: memref<1x32x128xbf16, #tpu.memory_space<vmem>>, %arg5: memref<1x1x128xf32, #tpu.memory_space<vmem>>, %arg6: memref<32x16xf32, #tpu.memory_space<vmem>>, %arg7: memref<32x1xf32, #tpu.memory_space<vmem>>, %arg8: memref<32x32xf32, #tpu.memory_space<vmem>>, %arg9: memref<32x1xf32, #tpu.memory_space<vmem>>, %arg10: memref<1x32x128xbf16, #tpu.memory_space<vmem>>) attributes {dimension_semantics = [#tpu.dimension_semantics<parallel>, #tpu.dimension_semantics<parallel>], iteration_bounds = array<i64: 2, 1>, scalar_prefetch = 0 : i64, scratch_operands = 0 : i64, tpu.core_type = #tpu.core_type<tc>, window_params = [{transform_indices = @transform_0, window_bounds = array<i64: 1, 16, 128>}, {transform_indices = @transform_1, window_bounds = array<i64: 1, 32, 128>}, {transform_indices = @transform_2, window_bounds = array<i64: 1, 32, 128>}, {transform_indices = @transform_3, window_bounds = array<i64: 1, 1, 128>}, {pipeline_mode = #tpu.pipeline_mode<synchronous>, transform_indices = @transform_4, window_bounds = array<i64: 32, 16>}, {pipeline_mode = #tpu.pipeline_mode<synchronous>, transform_indices = @transform_5, window_bounds = array<i64: 32, 1>}, {pipeline_mode = #tpu.pipeline_mode<synchronous>, transform_indices = @transform_6, window_bounds = array<i64: 32, 32>}, {pipeline_mode = #tpu.pipeline_mode<synchronous>, transform_indices = @transform_7, window_bounds = array<i64: 32, 1>}, {transform_indices = @transform_8, window_bounds = array<i64: 1, 32, 128>}]} {
    %c0 = arith.constant 0 : index
    %c0_0 = arith.constant 0 : index
    %c0_1 = arith.constant 0 : index
    %0 = vector.load %arg5[%c0, %c0_0, %c0_1] : memref<1x1x128xf32, #tpu.memory_space<vmem>>, vector<1x1x128xf32>
    %1 = vector.shape_cast %0 : vector<1x1x128xf32> to vector<1x128xf32>
    %c0_2 = arith.constant 0 : index
    %c0_3 = arith.constant 0 : index
    %2 = vector.load %arg6[%c0_2, %c0_3] : memref<32x16xf32, #tpu.memory_space<vmem>>, vector<32x16xf32>
    %3 = arith.truncf %2 : vector<32x16xf32> to vector<32x16xbf16>
    %c0_4 = arith.constant 0 : index
    %c0_5 = arith.constant 0 : index
    %c0_6 = arith.constant 0 : index
    %4 = vector.load %arg2[%c0_4, %c0_5, %c0_6] : memref<1x16x128xbf16, #tpu.memory_space<vmem>>, vector<1x16x128xbf16>
    %5 = vector.shape_cast %4 : vector<1x16x128xbf16> to vector<16x128xbf16>
    %cst = arith.constant dense<0.000000e+00> : vector<32x128xf32>
    %6 = tpu.matmul %3, %5, %cst {dimension_numbers = #tpu.dot_dimension_numbers<[1], [0], [0], [1], [0, 0, 1, 1], [], []>} : vector<32x16xbf16>, vector<16x128xbf16>, vector<32x128xf32> -> vector<32x128xf32>
    %c0_7 = arith.constant 0 : index
    %c0_8 = arith.constant 0 : index
    %7 = vector.load %arg7[%c0_7, %c0_8] : memref<32x1xf32, #tpu.memory_space<vmem>>, vector<32x1xf32>
    %8 = vector.broadcast %7 : vector<32x1xf32> to vector<32x128xf32>
    %9 = arith.addf %6, %8 : vector<32x128xf32>
    %10 = vector.broadcast %1 : vector<1x128xf32> to vector<32x128xf32>
    %11 = arith.mulf %9, %10 : vector<32x128xf32>
    %cst_9 = arith.constant 1.000000e+00 : f32
    %12 = vector.broadcast %cst_9 : f32 to vector<32x128xf32>
    %13 = arith.mulf %12, %11 : vector<32x128xf32>
    %c0_10 = arith.constant 0 : index
    %c0_11 = arith.constant 0 : index
    %c0_12 = arith.constant 0 : index
    %14 = vector.load %arg3[%c0_10, %c0_11, %c0_12] : memref<1x32x128xbf16, #tpu.memory_space<vmem>>, vector<1x32x128xbf16>
    %15 = vector.shape_cast %14 : vector<1x32x128xbf16> to vector<32x128xbf16>
    %16 = arith.extf %15 : vector<32x128xbf16> to vector<32x128xf32>
    %17 = arith.addf %13, %16 : vector<32x128xf32>
    %c0_13 = arith.constant 0 : index
    %c0_14 = arith.constant 0 : index
    %18 = vector.load %arg8[%c0_13, %c0_14] : memref<32x32xf32, #tpu.memory_space<vmem>>, vector<32x32xf32>
    %19 = arith.truncf %18 : vector<32x32xf32> to vector<32x32xbf16>
    %20 = arith.truncf %17 : vector<32x128xf32> to vector<32x128xbf16>
    %cst_15 = arith.constant dense<0.000000e+00> : vector<32x128xf32>
    %21 = tpu.matmul %19, %20, %cst_15 {dimension_numbers = #tpu.dot_dimension_numbers<[1], [0], [0], [1], [0, 0, 1, 1], [], []>} : vector<32x32xbf16>, vector<32x128xbf16>, vector<32x128xf32> -> vector<32x128xf32>
    %c0_16 = arith.constant 0 : index
    %c0_17 = arith.constant 0 : index
    %22 = vector.load %arg9[%c0_16, %c0_17] : memref<32x1xf32, #tpu.memory_space<vmem>>, vector<32x1xf32>
    %23 = vector.broadcast %22 : vector<32x1xf32> to vector<32x128xf32>
    %24 = arith.addf %21, %23 : vector<32x128xf32>
    %c0_18 = arith.constant 0 : index
    %c0_19 = arith.constant 0 : index
    %c0_20 = arith.constant 0 : index
    %25 = vector.load %arg4[%c0_18, %c0_19, %c0_20] : memref<1x32x128xbf16, #tpu.memory_space<vmem>>, vector<1x32x128xbf16>
    %26 = vector.shape_cast %25 : vector<1x32x128xbf16> to vector<32x128xbf16>
    %27 = arith.extf %26 : vector<32x128xbf16> to vector<32x128xf32>
    %28 = arith.addf %27, %24 : vector<32x128xf32>
    %29 = vector.broadcast %1 : vector<1x128xf32> to vector<32x128xf32>
    %30 = arith.mulf %28, %29 : vector<32x128xf32>
    %31 = arith.truncf %30 : vector<32x128xf32> to vector<32x128xbf16>
    %c0_21 = arith.constant 0 : index
    %c0_22 = arith.constant 0 : index
    %c0_23 = arith.constant 0 : index
    %32 = vector.load %arg10[%c0_21, %c0_22, %c0_23] : memref<1x32x128xbf16, #tpu.memory_space<vmem>>, vector<1x32x128xbf16>
    %33 = vector.shape_cast %32 : vector<1x32x128xbf16> to vector<32x128xbf16>
    %34 = vector.shape_cast %31 : vector<32x128xbf16> to vector<1x32x128xbf16>
    tpu.vector_store %arg10[%c0_21, %c0_22, %c0_23], %34 {strides = array<i32>} : memref<1x32x128xbf16, #tpu.memory_space<vmem>>, vector<1x32x128xbf16>,
    return
  }
  func.func @transform_0(%arg0: i32, %arg1: i32) -> (i32, i32, i32) {
    %c0_i32 = arith.constant 0 : i32
    %c0_i32_0 = arith.constant 0 : i32
    return %arg0, %c0_i32, %arg1 : i32, i32, i32
  }
  func.func @transform_1(%arg0: i32, %arg1: i32) -> (i32, i32, i32) {
    %c0_i32 = arith.constant 0 : i32
    %c0_i32_0 = arith.constant 0 : i32
    return %arg0, %c0_i32, %arg1 : i32, i32, i32
  }
  func.func @transform_2(%arg0: i32, %arg1: i32) -> (i32, i32, i32) {
    %c0_i32 = arith.constant 0 : i32
    %c0_i32_0 = arith.constant 0 : i32
    return %arg0, %c0_i32, %arg1 : i32, i32, i32
  }
  func.func @transform_3(%arg0: i32, %arg1: i32) -> (i32, i32, i32) {
    %c0_i32 = arith.constant 0 : i32
    %c0_i32_0 = arith.constant 0 : i32
    return %arg0, %c0_i32, %arg1 : i32, i32, i32
  }
  func.func @transform_4(%arg0: i32, %arg1: i32) -> (i32, i32) {
    %c0_i32 = arith.constant 0 : i32
    %c0_i32_0 = arith.constant 0 : i32
    %c0_i32_1 = arith.constant 0 : i32
    return %c0_i32, %c0_i32_0 : i32, i32
  }
  func.func @transform_5(%arg0: i32, %arg1: i32) -> (i32, i32) {
    %c0_i32 = arith.constant 0 : i32
    %c0_i32_0 = arith.constant 0 : i32
    %c0_i32_1 = arith.constant 0 : i32
    return %c0_i32, %c0_i32_0 : i32, i32
  }
  func.func @transform_6(%arg0: i32, %arg1: i32) -> (i32, i32) {
    %c0_i32 = arith.constant 0 : i32
    %c0_i32_0 = arith.constant 0 : i32
    %c0_i32_1 = arith.constant 0 : i32
    return %c0_i32, %c0_i32_0 : i32, i32
  }
  func.func @transform_7(%arg0: i32, %arg1: i32) -> (i32, i32) {
    %c0_i32 = arith.constant 0 : i32
    %c0_i32_0 = arith.constant 0 : i32
    %c0_i32_1 = arith.constant 0 : i32
    return %c0_i32, %c0_i32_0 : i32, i32
  }
  func.func @transform_8(%arg0: i32, %arg1: i32) -> (i32, i32, i32) {
    %c0_i32 = arith.constant 0 : i32
    %c0_i32_0 = arith.constant 0 : i32
    return %arg0, %c0_i32, %arg1 : i32, i32, i32
  }
}

module attributes {stable_mosaic.version = 11 : i64} {
  func.func @_flash_attn_kernel(%arg0: i32, %arg1: i32, %arg2: i32, %arg3: memref<1x16x128xbf16, #tpu.memory_space<vmem>>, %arg4: memref<1x16x128xbf16, #tpu.memory_space<vmem>>, %arg5: memref<1x1x16x128xbf16, #tpu.memory_space<vmem>>, %arg6: memref<1x128x1xf32, #tpu.memory_space<vmem>>, %arg7: memref<1x128x1xf32, #tpu.memory_space<vmem>>, %arg8: memref<1x16x128xbf16, #tpu.memory_space<vmem>>, %arg9: memref<1x128xf32, #tpu.memory_space<vmem>>, %arg10: memref<1x128xf32, #tpu.memory_space<vmem>>, %arg11: memref<16x128xf32, #tpu.memory_space<vmem>>) attributes {dimension_semantics = [#tpu.dimension_semantics<parallel>, #tpu.dimension_semantics<parallel>, #tpu.dimension_semantics<arbitrary>], iteration_bounds = array<i64: 2, 1, 1>, scalar_prefetch = 0 : i64, scratch_operands = 3 : i64, tpu.core_type = #tpu.core_type<tc>, window_params = [{transform_indices = @transform_0, window_bounds = array<i64: 1, 16, 128>}, {transform_indices = @transform_1, window_bounds = array<i64: 1, 16, 128>}, {transform_indices = @transform_2, window_bounds = array<i64: 1, 1, 16, 128>}, {transform_indices = @transform_3, window_bounds = array<i64: 1, 128, 1>}, {transform_indices = @transform_4, window_bounds = array<i64: 1, 128, 1>}, {transform_indices = @transform_5, window_bounds = array<i64: 1, 16, 128>}]} {
    %c0_i32 = arith.constant 0 : i32
    %0 = arith.cmpi eq, %arg2, %c0_i32 : i32
    %1 = arith.extui %0 : i1 to i32
    %c0_i32_0 = arith.constant 0 : i32
    %2 = arith.cmpi ne, %1, %c0_i32_0 : i32
    scf.if %2 {
      %cst_33 = arith.constant -1.000000e+30 : f32
      %46 = vector.broadcast %cst_33 : f32 to vector<1x128xf32>
      %c0_34 = arith.constant 0 : index
      %c0_35 = arith.constant 0 : index
      %47 = vector.load %arg9[%c0_34, %c0_35] : memref<1x128xf32, #tpu.memory_space<vmem>>, vector<1x128xf32>
      tpu.vector_store %arg9[%c0_34, %c0_35], %46 {strides = array<i32>} : memref<1x128xf32, #tpu.memory_space<vmem>>, vector<1x128xf32>,
      %cst_36 = arith.constant 0.000000e+00 : f32
      %48 = vector.broadcast %cst_36 : f32 to vector<1x128xf32>
      %c0_37 = arith.constant 0 : index
      %c0_38 = arith.constant 0 : index
      %49 = vector.load %arg10[%c0_37, %c0_38] : memref<1x128xf32, #tpu.memory_space<vmem>>, vector<1x128xf32>
      tpu.vector_store %arg10[%c0_37, %c0_38], %48 {strides = array<i32>} : memref<1x128xf32, #tpu.memory_space<vmem>>, vector<1x128xf32>,
      %cst_39 = arith.constant 0.000000e+00 : f32
      %50 = vector.broadcast %cst_39 : f32 to vector<16x128xf32>
      %c0_40 = arith.constant 0 : index
      %c0_41 = arith.constant 0 : index
      %51 = vector.load %arg11[%c0_40, %c0_41] : memref<16x128xf32, #tpu.memory_space<vmem>>, vector<16x128xf32>
      tpu.vector_store %arg11[%c0_40, %c0_41], %50 {strides = array<i32>} : memref<16x128xf32, #tpu.memory_space<vmem>>, vector<16x128xf32>,
    } else {
    }
    %c0 = arith.constant 0 : index
    %c0_1 = arith.constant 0 : index
    %c0_2 = arith.constant 0 : index
    %3 = vector.load %arg3[%c0, %c0_1, %c0_2] : memref<1x16x128xbf16, #tpu.memory_space<vmem>>, vector<1x16x128xbf16>
    %4 = vector.shape_cast %3 : vector<1x16x128xbf16> to vector<16x128xbf16>
    %5 = arith.extf %4 : vector<16x128xbf16> to vector<16x128xf32>
    %c0_3 = arith.constant 0 : index
    %c0_4 = arith.constant 0 : index
    %c0_5 = arith.constant 0 : index
    %6 = vector.load %arg4[%c0_3, %c0_4, %c0_5] : memref<1x16x128xbf16, #tpu.memory_space<vmem>>, vector<1x16x128xbf16>
    %7 = vector.shape_cast %6 : vector<1x16x128xbf16> to vector<16x128xbf16>
    %8 = arith.extf %7 : vector<16x128xbf16> to vector<16x128xf32>
    %c0_6 = arith.constant 0 : index
    %c0_7 = arith.constant 0 : index
    %c0_8 = arith.constant 0 : index
    %c0_9 = arith.constant 0 : index
    %9 = vector.load %arg5[%c0_6, %c0_7, %c0_8, %c0_9] : memref<1x1x16x128xbf16, #tpu.memory_space<vmem>>, vector<1x1x16x128xbf16>
    %10 = vector.shape_cast %9 : vector<1x1x16x128xbf16> to vector<16x128xbf16>
    %cst = arith.constant dense<0.000000e+00> : vector<128x128xf32>
    %11 = tpu.matmul %8, %5, %cst {dimension_numbers = #tpu.dot_dimension_numbers<[0], [0], [1], [1], [0, 1, 1, 1], [], []>} : vector<16x128xf32>, vector<16x128xf32>, vector<128x128xf32> -> vector<128x128xf32>
    %c0_10 = arith.constant 0 : index
    %c0_11 = arith.constant 0 : index
    %c0_12 = arith.constant 0 : index
    %12 = vector.load %arg6[%c0_10, %c0_11, %c0_12] : memref<1x128x1xf32, #tpu.memory_space<vmem>>, vector<1x128x1xf32>
    %13 = vector.shape_cast %12 : vector<1x128x1xf32> to vector<128x1xf32>
    %14 = vector.broadcast %13 : vector<128x1xf32> to vector<128x128xf32>
    %15 = arith.mulf %11, %14 : vector<128x128xf32>
    %c0_13 = arith.constant 0 : index
    %c0_14 = arith.constant 0 : index
    %c0_15 = arith.constant 0 : index
    %16 = vector.load %arg7[%c0_13, %c0_14, %c0_15] : memref<1x128x1xf32, #tpu.memory_space<vmem>>, vector<1x128x1xf32>
    %17 = vector.shape_cast %16 : vector<1x128x1xf32> to vector<128x1xf32>
    %18 = vector.broadcast %17 : vector<128x1xf32> to vector<128x128xf32>
    %19 = arith.addf %15, %18 : vector<128x128xf32>
    %c0_16 = arith.constant 0 : index
    %c0_17 = arith.constant 0 : index
    %20 = vector.load %arg9[%c0_16, %c0_17] : memref<1x128xf32, #tpu.memory_space<vmem>>, vector<1x128xf32>
    %cst_18 = arith.constant dense<0xFF800000> : vector<128xf32>
    %21 = vector.multi_reduction <maximumf>, %19, %cst_18 [0] : vector<128x128xf32> to vector<128xf32>
    %22 = vector.shape_cast %21 : vector<128xf32> to vector<1x128xf32>
    %23 = arith.maximumf %20, %22 : vector<1x128xf32>
    %24 = arith.subf %20, %23 : vector<1x128xf32>
    %25 = math.exp %24 : vector<1x128xf32>
    %26 = vector.broadcast %23 : vector<1x128xf32> to vector<128x128xf32>
    %27 = arith.subf %19, %26 : vector<128x128xf32>
    %28 = math.exp %27 : vector<128x128xf32>
    %c0_19 = arith.constant 0 : index
    %c0_20 = arith.constant 0 : index
    %29 = vector.load %arg10[%c0_19, %c0_20] : memref<1x128xf32, #tpu.memory_space<vmem>>, vector<1x128xf32>
    %30 = arith.mulf %25, %29 : vector<1x128xf32>
    %cst_21 = arith.constant dense<0.000000e+00> : vector<128xf32>
    %31 = vector.multi_reduction <add>, %28, %cst_21 [0] : vector<128x128xf32> to vector<128xf32>
    %32 = vector.shape_cast %31 : vector<128xf32> to vector<1x128xf32>
    %33 = arith.addf %30, %32 : vector<1x128xf32>
    %c0_22 = arith.constant 0 : index
    %c0_23 = arith.constant 0 : index
    %34 = vector.load %arg10[%c0_22, %c0_23] : memref<1x128xf32, #tpu.memory_space<vmem>>, vector<1x128xf32>
    tpu.vector_store %arg10[%c0_22, %c0_23], %33 {strides = array<i32>} : memref<1x128xf32, #tpu.memory_space<vmem>>, vector<1x128xf32>,
    %c0_24 = arith.constant 0 : index
    %c0_25 = arith.constant 0 : index
    %35 = vector.load %arg11[%c0_24, %c0_25] : memref<16x128xf32, #tpu.memory_space<vmem>>, vector<16x128xf32>
    %36 = vector.broadcast %25 : vector<1x128xf32> to vector<16x128xf32>
    %37 = arith.mulf %36, %35 : vector<16x128xf32>
    %38 = arith.truncf %28 : vector<128x128xf32> to vector<128x128xbf16>
    %cst_26 = arith.constant dense<0.000000e+00> : vector<16x128xf32>
    %39 = tpu.matmul %10, %38, %cst_26 {dimension_numbers = #tpu.dot_dimension_numbers<[1], [0], [0], [1], [0, 0, 1, 1], [], []>} : vector<16x128xbf16>, vector<128x128xbf16>, vector<16x128xf32> -> vector<16x128xf32>
    %40 = arith.addf %37, %39 : vector<16x128xf32>
    %c0_27 = arith.constant 0 : index
    %c0_28 = arith.constant 0 : index
    %41 = vector.load %arg11[%c0_27, %c0_28] : memref<16x128xf32, #tpu.memory_space<vmem>>, vector<16x128xf32>
    tpu.vector_store %arg11[%c0_27, %c0_28], %40 {strides = array<i32>} : memref<16x128xf32, #tpu.memory_space<vmem>>, vector<16x128xf32>,
    %c0_29 = arith.constant 0 : index
    %c0_30 = arith.constant 0 : index
    %42 = vector.load %arg9[%c0_29, %c0_30] : memref<1x128xf32, #tpu.memory_space<vmem>>, vector<1x128xf32>
    tpu.vector_store %arg9[%c0_29, %c0_30], %23 {strides = array<i32>} : memref<1x128xf32, #tpu.memory_space<vmem>>, vector<1x128xf32>,
    %c0_i32_31 = arith.constant 0 : i32
    %43 = arith.cmpi eq, %arg2, %c0_i32_31 : i32
    %44 = arith.extui %43 : i1 to i32
    %c0_i32_32 = arith.constant 0 : i32
    %45 = arith.cmpi ne, %44, %c0_i32_32 : i32
    scf.if %45 {
      %c0_33 = arith.constant 0 : index
      %c0_34 = arith.constant 0 : index
      %46 = vector.load %arg10[%c0_33, %c0_34] : memref<1x128xf32, #tpu.memory_space<vmem>>, vector<1x128xf32>
      %47 = tpu.reciprocal %46 {approx = true} : vector<1x128xf32> -> vector<1x128xf32>
      %c0_35 = arith.constant 0 : index
      %c0_36 = arith.constant 0 : index
      %48 = vector.load %arg11[%c0_35, %c0_36] : memref<16x128xf32, #tpu.memory_space<vmem>>, vector<16x128xf32>
      %49 = vector.broadcast %47 : vector<1x128xf32> to vector<16x128xf32>
      %50 = arith.mulf %48, %49 : vector<16x128xf32>
      %cst_37 = arith.constant 0.000000e+00 : f32
      %51 = vector.broadcast %cst_37 : f32 to vector<16x128xf32>
      %52 = arith.maximumf %50, %51 : vector<16x128xf32>
      %53 = arith.truncf %52 : vector<16x128xf32> to vector<16x128xbf16>
      %c0_38 = arith.constant 0 : index
      %c0_39 = arith.constant 0 : index
      %c0_40 = arith.constant 0 : index
      %54 = vector.load %arg8[%c0_38, %c0_39, %c0_40] : memref<1x16x128xbf16, #tpu.memory_space<vmem>>, vector<1x16x128xbf16>
      %55 = vector.shape_cast %54 : vector<1x16x128xbf16> to vector<16x128xbf16>
      %56 = vector.shape_cast %53 : vector<16x128xbf16> to vector<1x16x128xbf16>
      tpu.vector_store %arg8[%c0_38, %c0_39, %c0_40], %56 {strides = array<i32>} : memref<1x16x128xbf16, #tpu.memory_space<vmem>>, vector<1x16x128xbf16>,
    } else {
    }
    return
  }
  func.func @transform_0(%arg0: i32, %arg1: i32, %arg2: i32) -> (i32, i32, i32) {
    %c0_i32 = arith.constant 0 : i32
    %c0_i32_0 = arith.constant 0 : i32
    return %arg0, %c0_i32, %arg1 : i32, i32, i32
  }
  func.func @transform_1(%arg0: i32, %arg1: i32, %arg2: i32) -> (i32, i32, i32) {
    %c0_i32 = arith.constant 0 : i32
    %c0_i32_0 = arith.constant 0 : i32
    return %arg0, %c0_i32, %arg2 : i32, i32, i32
  }
  func.func @transform_2(%arg0: i32, %arg1: i32, %arg2: i32) -> (i32, i32, i32, i32) {
    %c1_i32 = arith.constant 1 : i32
    %c0_i32 = arith.constant 0 : i32
    %c0_i32_0 = arith.constant 0 : i32
    return %arg0, %c1_i32, %c0_i32, %arg2 : i32, i32, i32, i32
  }
  func.func @transform_3(%arg0: i32, %arg1: i32, %arg2: i32) -> (i32, i32, i32) {
    %c0_i32 = arith.constant 0 : i32
    %c0_i32_0 = arith.constant 0 : i32
    return %arg0, %arg2, %c0_i32 : i32, i32, i32
  }
  func.func @transform_4(%arg0: i32, %arg1: i32, %arg2: i32) -> (i32, i32, i32) {
    %c0_i32 = arith.constant 0 : i32
    %c0_i32_0 = arith.constant 0 : i32
    return %arg0, %arg2, %c0_i32 : i32, i32, i32
  }
  func.func @transform_5(%arg0: i32, %arg1: i32, %arg2: i32) -> (i32, i32, i32) {
    %c0_i32 = arith.constant 0 : i32
    %c0_i32_0 = arith.constant 0 : i32
    return %arg0, %c0_i32, %arg1 : i32, i32, i32
  }
}

module attributes {stable_mosaic.version = 11 : i64} {
  func.func @_conv_mask_kernel(%arg0: i32, %arg1: i32, %arg2: memref<1x32x128xbf16, #tpu.memory_space<vmem>>, %arg3: memref<8x32xf32, #tpu.memory_space<vmem>>, %arg4: memref<8x1xf32, #tpu.memory_space<vmem>>, %arg5: memref<1x1x128xf32, #tpu.memory_space<vmem>>, %arg6: memref<1x8x128xf32, #tpu.memory_space<vmem>>) attributes {dimension_semantics = [#tpu.dimension_semantics<parallel>, #tpu.dimension_semantics<parallel>], iteration_bounds = array<i64: 2, 1>, scalar_prefetch = 0 : i64, scratch_operands = 0 : i64, tpu.core_type = #tpu.core_type<tc>, window_params = [{transform_indices = @transform_0, window_bounds = array<i64: 1, 32, 128>}, {pipeline_mode = #tpu.pipeline_mode<synchronous>, transform_indices = @transform_1, window_bounds = array<i64: 8, 32>}, {pipeline_mode = #tpu.pipeline_mode<synchronous>, transform_indices = @transform_2, window_bounds = array<i64: 8, 1>}, {transform_indices = @transform_3, window_bounds = array<i64: 1, 1, 128>}, {transform_indices = @transform_4, window_bounds = array<i64: 1, 8, 128>}]} {
    %c0 = arith.constant 0 : index
    %c0_0 = arith.constant 0 : index
    %c0_1 = arith.constant 0 : index
    %0 = vector.load %arg2[%c0, %c0_0, %c0_1] : memref<1x32x128xbf16, #tpu.memory_space<vmem>>, vector<1x32x128xbf16>
    %1 = vector.shape_cast %0 : vector<1x32x128xbf16> to vector<32x128xbf16>
    %c0_2 = arith.constant 0 : index
    %c0_3 = arith.constant 0 : index
    %2 = vector.load %arg3[%c0_2, %c0_3] : memref<8x32xf32, #tpu.memory_space<vmem>>, vector<8x32xf32>
    %3 = arith.truncf %2 : vector<8x32xf32> to vector<8x32xbf16>
    %cst = arith.constant dense<0.000000e+00> : vector<8x128xf32>
    %4 = tpu.matmul %3, %1, %cst {dimension_numbers = #tpu.dot_dimension_numbers<[1], [0], [0], [1], [0, 0, 1, 1], [], []>} : vector<8x32xbf16>, vector<32x128xbf16>, vector<8x128xf32> -> vector<8x128xf32>
    %c0_4 = arith.constant 0 : index
    %c0_5 = arith.constant 0 : index
    %5 = vector.load %arg4[%c0_4, %c0_5] : memref<8x1xf32, #tpu.memory_space<vmem>>, vector<8x1xf32>
    %6 = vector.broadcast %5 : vector<8x1xf32> to vector<8x128xf32>
    %7 = arith.addf %4, %6 : vector<8x128xf32>
    %c0_6 = arith.constant 0 : index
    %c0_7 = arith.constant 0 : index
    %c0_8 = arith.constant 0 : index
    %8 = vector.load %arg5[%c0_6, %c0_7, %c0_8] : memref<1x1x128xf32, #tpu.memory_space<vmem>>, vector<1x1x128xf32>
    %9 = vector.shape_cast %8 : vector<1x1x128xf32> to vector<1x128xf32>
    %10 = vector.broadcast %9 : vector<1x128xf32> to vector<8x128xf32>
    %11 = arith.mulf %7, %10 : vector<8x128xf32>
    %c0_9 = arith.constant 0 : index
    %c0_10 = arith.constant 0 : index
    %c0_11 = arith.constant 0 : index
    %12 = vector.load %arg6[%c0_9, %c0_10, %c0_11] : memref<1x8x128xf32, #tpu.memory_space<vmem>>, vector<1x8x128xf32>
    %13 = vector.shape_cast %12 : vector<1x8x128xf32> to vector<8x128xf32>
    %14 = vector.shape_cast %11 : vector<8x128xf32> to vector<1x8x128xf32>
    tpu.vector_store %arg6[%c0_9, %c0_10, %c0_11], %14 {strides = array<i32>} : memref<1x8x128xf32, #tpu.memory_space<vmem>>, vector<1x8x128xf32>,
    return
  }
  func.func @transform_0(%arg0: i32, %arg1: i32) -> (i32, i32, i32) {
    %c0_i32 = arith.constant 0 : i32
    %c0_i32_0 = arith.constant 0 : i32
    return %arg0, %c0_i32, %arg1 : i32, i32, i32
  }
  func.func @transform_1(%arg0: i32, %arg1: i32) -> (i32, i32) {
    %c0_i32 = arith.constant 0 : i32
    %c0_i32_0 = arith.constant 0 : i32
    %c0_i32_1 = arith.constant 0 : i32
    return %c0_i32, %c0_i32_0 : i32, i32
  }
  func.func @transform_2(%arg0: i32, %arg1: i32) -> (i32, i32) {
    %c0_i32 = arith.constant 0 : i32
    %c0_i32_0 = arith.constant 0 : i32
    %c0_i32_1 = arith.constant 0 : i32
    return %c0_i32, %c0_i32_0 : i32, i32
  }
  func.func @transform_3(%arg0: i32, %arg1: i32) -> (i32, i32, i32) {
    %c0_i32 = arith.constant 0 : i32
    %c0_i32_0 = arith.constant 0 : i32
    return %arg0, %c0_i32, %arg1 : i32, i32, i32
  }
  func.func @transform_4(%arg0: i32, %arg1: i32) -> (i32, i32, i32) {
    %c0_i32 = arith.constant 0 : i32
    %c0_i32_0 = arith.constant 0 : i32
    return %arg0, %c0_i32, %arg1 : i32, i32, i32
  }
}

</mosaic_0001>

<llo_original>
// kernel: decoder_forward.10
$region0: #{decoder_forward.10}
  #allocation0 [shape = 'u32[]', space=smem, size = 0x4, offset = 0x4, fixed_abs, tag = 'smem constant byte address 0x4 - core index']
  #allocation1 [shape = 'u32[144,128]{1,0:T(1,128)}', space=vmem, size = 0x12000, scoped, tag = 'internal scratch']
  %s0 = inlined_call_operand.vmem [shape: f32[2,32,128], index: 0, kind: input, shape index: {}]
  %s1 = inlined_call_operand.vmem [shape: f32[32,32], index: 1, kind: input, shape index: {}]
  %s2 = inlined_call_operand.vmem [shape: f32[32,1], index: 2, kind: input, shape index: {}]
  %s3 = inlined_call_operand.vmem [shape: bf16[2,32,128], index: 3, kind: output, shape index: {}]
  %s4 = sld [smem:[#allocation0]]
  $region45: #{decoder_forward.10} parent=0
    _
  %s6 = ssub.s32 1, %s4
  %s7 = scalar_select 0, %s6, %s4
  loop: start=0, step=1, limit=4
  $region2: #{decoder_forward.10} parent=0 // loop_pre_header
    _
  $region3: #{decoder_forward.10} parent=0 // loop_header
    %s9 = sphi 0, %s13
    %p10 = scmp.ge.s32.totalorder %s9, 4
    %s16 = sphi 0, %s28
    %s17 = sphi 0, %s24
    %s18 = sphi 0, %s16
    %s19 = sphi 0, %s17
    %s20 = sphi 0, %s18
    %s21 = sphi 0, %s19
    %s33 = sphi 0, %s35
    %s36 = sphi 0, %s33
    %s37 = sphi 0, %s36
    %s53 = sphi 0, %s37
    %s57 = sphi 0, %s57
    %s59 = sphi 0, %s57
    %s60 = sphi 0, %s59
    %s74 = sphi 0, %s60
    %s78 = sphi 0, %s78
    %s80 = sphi 0, %s78
    %s81 = sphi 0, %s80
    %s95 = sphi 0, %s81
    %s103 = sphi 0, %s105
    %s106 = sphi 0, %s103
    %s107 = sphi 0, %s106
    %s123 = sphi 0, %s107
  $region4: #{decoder_forward.10} parent=0 // loop_header_branch
    %12 = sbr.rel (%p10) target = $region8
  $region5: #{decoder_forward.10} parent=0 // loop_body
    %s14 = ssub.s32 %s9, 1
    %s15 = ssub.s32 %s9, 2
    %s22 = sadd.s32 1, %s17
    %p23 = scmp.ge.s32.totalorder %s22, 1
    %s24 = scalar_select %p23, 0, %s22
    %s25 = sadd.s32 1, %s16
    %s26 = scalar_select %p23, %s25, %s16
    %p27 = scmp.ge.s32.totalorder %s26, 2
    %s28 = scalar_select %p27, 0, %s26
    %s29 = ssub.s32 %s16, %s28
    %s30 = ssub.s32 %s17, %s24
    %s31 = sor.u32 %s29, %s30
    %p32 = scmp.eq.s32.totalorder %s31, 0
    %s34 = sadd.s32 %s33, 1
    %s35 = scalar_select %p32, %s33, %s34
    %p38 = pneg %p32
    %p39 = scmp.eq.s32.totalorder %s9, 1
    %p40 = por %p38, %p39
    %p41 = scmp.ne.s32.totalorder %s33, %s36
    %p42 = scmp.eq.s32.totalorder %s9, 0
    %p43 = por %p41, %p42
    %p44 = scmp.ne.s32.totalorder %s33, %s36
    %p45 = scmp.eq.s32.totalorder %s14, 1
    %p46 = por %p44, %p45
    %p47 = scmp.ne.s32.totalorder %s36, %s37
    %p48 = scmp.eq.s32.totalorder %s14, 0
    %p49 = por %p47, %p48
    %p50 = scmp.ne.s32.totalorder %s36, %s37
    %p51 = scmp.eq.s32.totalorder %s15, 1
    %p52 = por %p50, %p51
    %p54 = scmp.ne.s32.totalorder %s37, %s53
    %p55 = scmp.eq.s32.totalorder %s15, 0
    %p56 = por %p54, %p55
    %s58 = sadd.s32 %s57, 1
    %p61 = scmp.eq.s32.totalorder %s9, 1
    %p62 = scmp.ne.s32.totalorder %s57, %s59
    %p63 = scmp.eq.s32.totalorder %s9, 0
    %p64 = por %p62, %p63
    %p65 = scmp.ne.s32.totalorder %s57, %s59
    %p66 = scmp.eq.s32.totalorder %s14, 1
    %p67 = por %p65, %p66
    %p68 = scmp.ne.s32.totalorder %s59, %s60
    %p69 = scmp.eq.s32.totalorder %s14, 0
    %p70 = por %p68, %p69
    %p71 = scmp.ne.s32.totalorder %s59, %s60
    %p72 = scmp.eq.s32.totalorder %s15, 1
    %p73 = por %p71, %p72
    %p75 = scmp.ne.s32.totalorder %s60, %s74
    %p76 = scmp.eq.s32.totalorder %s15, 0
    %p77 = por %p75, %p76
    %s79 = sadd.s32 %s78, 1
    %p82 = scmp.eq.s32.totalorder %s9, 1
    %p83 = scmp.ne.s32.totalorder %s78, %s80
    %p84 = scmp.eq.s32.totalorder %s9, 0
    %p85 = por %p83, %p84
    %p86 = scmp.ne.s32.totalorder %s78, %s80
    %p87 = scmp.eq.s32.totalorder %s14, 1
    %p88 = por %p86, %p87
    %p89 = scmp.ne.s32.totalorder %s80, %s81
    %p90 = scmp.eq.s32.totalorder %s14, 0
    %p91 = por %p89, %p90
    %p92 = scmp.ne.s32.totalorder %s80, %s81
    %p93 = scmp.eq.s32.totalorder %s15, 1
    %p94 = por %p92, %p93
    %p96 = scmp.ne.s32.totalorder %s81, %s95
    %p97 = scmp.eq.s32.totalorder %s15, 0
    %p98 = por %p96, %p97
    %s99 = ssub.s32 %s16, %s28
    %s100 = ssub.s32 %s17, %s24
    %s101 = sor.u32 %s99, %s100
    %p102 = scmp.eq.s32.totalorder %s101, 0
    %s104 = sadd.s32 %s103, 1
    %s105 = scalar_select %p102, %s103, %s104
    %p108 = pneg %p102
    %p109 = scmp.eq.s32.totalorder %s9, 1
    %p110 = por %p108, %p109
    %p111 = scmp.ne.s32.totalorder %s103, %s106
    %p112 = scmp.eq.s32.totalorder %s9, 0
    %p113 = por %p111, %p112
    %p114 = scmp.ne.s32.totalorder %s103, %s106
    %p115 = scmp.eq.s32.totalorder %s14, 1
    %p116 = por %p114, %p115
    %p117 = scmp.ne.s32.totalorder %s106, %s107
    %p118 = scmp.eq.s32.totalorder %s14, 0
    %p119 = por %p117, %p118
    %p120 = scmp.ne.s32.totalorder %s106, %s107
    %p121 = scmp.eq.s32.totalorder %s15, 1
    %p122 = por %p120, %p121
    %p124 = scmp.ne.s32.totalorder %s107, %s123
    %p125 = scmp.eq.s32.totalorder %s15, 0
    %p126 = por %p124, %p125
    %p127 = scmp.le.s32.totalorder 1, %s9
    %p128 = scmp.lt.s32.totalorder %s9, 3
    %p129 = pnand %p127, %p128
    %p130 = pneg %p129
    // Predicated region
    $region9: #{decoder_forward.10} parent=5 // pred_check
      _
    $region10: #{decoder_forward.10} parent=5 // pred_check_branch
      %132 = sbr.rel (%p129) target = $region12
    $region11: #{decoder_forward.10} parent=5 // pred_region
      %s133 = ssub.s32 %s9, 1
      // Predicated region
      $region13: #{decoder_forward.10} parent=11 // pred_check
        %p134 = pneg %p70
      $region14: #{decoder_forward.10} parent=11 // pred_check_branch
        %136 = sbr.rel (%p134) target = $region16
      $region15: #{decoder_forward.10} parent=11 // pred_region
        _
      $region16: #{decoder_forward.10} parent=11 // pred_fallthru
        _
      // Predicated region
      $region17: #{decoder_forward.10} parent=11 // pred_check
        %p137 = pneg %p91
      $region18: #{decoder_forward.10} parent=11 // pred_check_branch
        %139 = sbr.rel (%p137) target = $region20
      $region19: #{decoder_forward.10} parent=11 // pred_region
        _
      $region20: #{decoder_forward.10} parent=11 // pred_fallthru
        _
    $region12: #{decoder_forward.10} parent=5 // pred_fallthru
      _
    %p140 = scmp.lt.s32.totalorder %s9, 2
    // Predicated region
    $region21: #{decoder_forward.10} parent=5 // pred_check
      %p141 = pneg %p140
    $region22: #{decoder_forward.10} parent=5 // pred_check_branch
      %143 = sbr.rel (%p141) target = $region24
    $region23: #{decoder_forward.10} parent=5 // pred_region
      // Predicated region
      $region25: #{decoder_forward.10} parent=23 // pred_check
        %p144 = pneg %p43
      $region26: #{decoder_forward.10} parent=23 // pred_check_branch
        %146 = sbr.rel (%p144) target = $region28
      $region27: #{decoder_forward.10} parent=23 // pred_region
        %p147 = scmp.lt.s32.totalorder %s16, 1
        %s148 = scalar_select %p147, %s16, 1
        %p149 = scmp.lt.s32.totalorder %s17, 0
        %s150 = scalar_select %p149, %s17, 0
        %s151 = smul.addr %s148, 4
        %s152 = sadd.s32 %s150, %s151
        %s153 = smul.addr %s152, 8
        %s154 = scalar_lea.vmem %s0, %s153
      $region28: #{decoder_forward.10} parent=23 // pred_fallthru
        _
    $region24: #{decoder_forward.10} parent=5 // pred_fallthru
      _
    %p155 = scmp.le.s32.totalorder 1, %s9
    %p156 = scmp.lt.s32.totalorder %s9, 3
    %p157 = pnand %p155, %p156
    %p158 = pneg %p157
    // Predicated region
    $region29: #{decoder_forward.10} parent=5 // pred_check
      _
    $region30: #{decoder_forward.10} parent=5 // pred_check_branch
      %160 = sbr.rel (%p157) target = $region32
    $region31: #{decoder_forward.10} parent=5 // pred_region
      %s161 = ssub.s32 %s9, 1
      %p162 = scmp.lt.s32.totalorder %s18, 1
      %s163 = scalar_select %p162, %s18, 1
      %p164 = scmp.lt.s32.totalorder %s19, 0
      %s165 = scalar_select %p164, %s19, 0
      %s166 = smul.addr %s163, 4
      %s167 = sadd.s32 %s165, %s166
      %s168 = smul.addr %s167, 8
      %s169 = scalar_lea.vmem %s0, %s168
      %p170 = pneg %p49
      %p171 = pneg %p46
      %p172 = pneg %p70
      %p173 = pneg %p67
      %p174 = pneg %p91
      %p175 = pneg %p88
      %p176 = pneg %p119
      %p177 = pneg %p116
      %p178 = scmp.lt.s32.totalorder %s18, 1
      %s179 = scalar_select %p178, %s18, 1
      %p180 = scmp.lt.s32.totalorder %s19, 0
      %s181 = scalar_select %p180, %s19, 0
      %s182 = smul.addr %s179, 4
      %s183 = sadd.s32 %s181, %s182
      %s184 = smul.addr %s183, 4
      %s185 = scalar_lea.vmem %s3, %s184
      %p186 = scmp.lt.s32.totalorder %s18, 1
      %s187 = scalar_select %p186, %s18, 1
      %p188 = scmp.lt.s32.totalorder %s19, 0
      %s189 = scalar_select %p188, %s19, 0
      %s190 = smul.addr %s187, 4
      %s191 = sadd.s32 %s189, %s190
      %s192 = smul.addr %s191, 8
      %s193 = scalar_lea.vmem %s0, %s192
      %p194 = scmp.lt.s32.totalorder %s18, 1
      %s195 = scalar_select %p194, %s18, 1
      %p196 = scmp.lt.s32.totalorder %s19, 0
      %s197 = scalar_select %p196, %s19, 0
      %s198 = smul.addr %s195, 4
      %s199 = sadd.s32 %s197, %s198
      %s200 = smul.addr %s199, 4
      %s201 = scalar_lea.vmem %s3, %s200
      %v203 = vld [vmem:[%s193] sm:$0xff]
      %v204 = vld [vmem:[%s193 + $0x8] sm:$0xff]
      %v205 = vld [vmem:[%s193 + $0x10] sm:$0xff]
      %v206 = vld [vmem:[%s193 + $0x18] sm:$0xff]
      %v207 = vpack.c.bf16 %v204, %v203
      %v208 = vpack.c.bf16 %v206, %v205
      %v209 = vld [vmem:[%s1] sm:$0xff]
      %v210 = vld [vmem:[%s1 + $0x8] sm:$0xff]
      %v211 = vld [vmem:[%s1 + $0x10] sm:$0xff]
      %v212 = vld [vmem:[%s1 + $0x18] sm:$0xff]
      %v213 = vpack.c.bf16 %v210, %v209
      %v214 = vpack.c.bf16 %v212, %v211
      %v215 = vld [vmem:[%s2] sm:$0xff]
      %v216 = vld [vmem:[%s2 + $0x8] sm:$0xff]
      %v217 = vld [vmem:[%s2 + $0x10] sm:$0xff]
      %v218 = vld [vmem:[%s2 + $0x18] sm:$0xff]
      %220 = vset.pattern.permute.xlu0 0
      %221 = vperm.xlu0 %220, %v215
      %v222 = vpop.permute.xlu0 %221
      %225 = vset.pattern.permute.xlu0 0
      %226 = vperm.xlu0 %225, %v216
      %v227 = vpop.permute.xlu0 %226
      %230 = vset.pattern.permute.xlu0 0
      %231 = vperm.xlu0 %230, %v217
      %v232 = vpop.permute.xlu0 %231
      %235 = vset.pattern.permute.xlu0 0
      %236 = vperm.xlu0 %235, %v218
      %v237 = vpop.permute.xlu0 %236
      %vm239 = vcmask 261120
      %v241 = vsel %vm239, %v213, 0
      %v244 = vsel %vm239, %v214, 0
      %246 = vmatprep.subr.bf16.mxu0 0
      %247 = vmatpush1.bf16.msra.mxu0 %v207
      %248 = vmatprep.subr.bf16.mxu0 0
      %249 = vmatpush1.bf16.msra.mxu0 %v208
      %250 = vmatprep.subr.bf16.mxu0 0
      %251 = vmatpush1.bf16.msra.mxu0 0
      %252 = vmatprep.subr.bf16.mxu0 0
      %253 = vmatpush1.bf16.msra.mxu0 0
      %254 = vmatprep.subr.bf16.mxu0 0
      %255 = vmatpush1.bf16.msra.mxu0 0
      %256 = vmatprep.subr.bf16.mxu0 0
      %257 = vmatpush1.bf16.msra.mxu0 0
      %258 = vmatprep.subr.bf16.mxu0 0
      %259 = vmatpush1.bf16.msra.mxu0 0
      %260 = vmatprep.subr.bf16.mxu0 0
      %261 = vmatpush1.bf16.msra.mxu0 0
      %262 = vmatprep.subr.bf16.mxu0 0
      %263 = vmatpush1.bf16.msra.mxu0 0
      %264 = vmatprep.subr.bf16.mxu0 0
      %265 = vmatpush1.bf16.msra.mxu0 0
      %266 = vmatprep.subr.bf16.mxu0 0
      %267 = vmatpush1.bf16.msra.mxu0 0
      %268 = vmatprep.subr.bf16.mxu0 0
      %269 = vmatpush1.bf16.msra.mxu0 0
      %270 = vmatprep.subr.bf16.mxu0 0
      %271 = vmatpush1.bf16.msra.mxu0 0
      %272 = vmatprep.subr.bf16.mxu0 0
      %273 = vmatpush1.bf16.msra.mxu0 0
      %274 = vmatprep.subr.bf16.mxu0 0
      %275 = vmatpush1.bf16.msra.mxu0 0
      %276 = vmatprep.subr.bf16.mxu0 0
      %277 = vmatpush1.bf16.msra.mxu0 0
      %278 = vmatprep.mubr.bf16.mxu0 0
      %279 = vmatmul.mubr.bf16.gmra.mrb[0].mxu0 %v241
      %v280 = vpop.f32.mrb[0].mxu0
      %v281 = vadd.f32 %v222, %v280
      %v282 = vpop.f32.mrb[0].mxu0
      %v283 = vpop.f32.mrb[0].mxu0
      %v284 = vadd.f32 %v227, %v283
      %v285 = vpop.f32.mrb[0].mxu0
      %286 = vmatprep.mubr.bf16.mxu0 0
      %287 = vmatmul.mubr.bf16.gmra.mrb[0].mxu0 %v244
      %v288 = vpop.f32.mrb[0].mxu0
      %v289 = vadd.f32 %v232, %v288
      %v290 = vpop.f32.mrb[0].mxu0
      %v291 = vpop.f32.mrb[0].mxu0
      %v292 = vadd.f32 %v237, %v291
      %v293 = vpop.f32.mrb[0].mxu0
      %294 = vdwg.mxu0
      %v295 = vpack.c.bf16 %v284, %v281
      %v296 = vpack.c.bf16 %v292, %v289
      %v299 = vunpack.c.l.b16 %v295
      %v300 = vunpack.c.h.b16 %v295
      %v301 = vunpack.c.l.b16 %v296
      %v302 = vunpack.c.h.b16 %v296
      %v303 = vpack.c.b16 %v299, %v299
      %v304 = vpack.c.b16 %v300, %v300
      %v305 = vpack.c.b16 %v301, %v301
      %v306 = vpack.c.b16 %v302, %v302
      %311 = vst [vmem:[%s201] sm:$0xf] %v303
      %312 = vst [vmem:[%s201 + $0x4] sm:$0xf] %v304
      %313 = vst [vmem:[%s201 + $0x8] sm:$0xf] %v305
      %314 = vst [vmem:[%s201 + $0xc] sm:$0xf] %v306
      %p315 = scmp.lt.s32.totalorder %s18, 1
      %s316 = scalar_select %p315, %s18, 1
      %p317 = scmp.lt.s32.totalorder %s19, 0
      %s318 = scalar_select %p317, %s19, 0
      %s319 = smul.addr %s316, 4
      %s320 = sadd.s32 %s318, %s319
      %s321 = smul.addr %s320, 4
      %s322 = scalar_lea.vmem %s3, %s321
      // Predicated region
      $region33: #{decoder_forward.10} parent=31 // pred_check
        %p323 = pneg %p116
      $region34: #{decoder_forward.10} parent=31 // pred_check_branch
        %325 = sbr.rel (%p323) target = $region36
      $region35: #{decoder_forward.10} parent=31 // pred_region
        _
      $region36: #{decoder_forward.10} parent=31 // pred_fallthru
        _
    $region32: #{decoder_forward.10} parent=5 // pred_fallthru
      _
    %p326 = scmp.le.s32.totalorder 2, %s9
    // Predicated region
    $region37: #{decoder_forward.10} parent=5 // pred_check
      %p327 = pneg %p326
    $region38: #{decoder_forward.10} parent=5 // pred_check_branch
      %329 = sbr.rel (%p327) target = $region40
    $region39: #{decoder_forward.10} parent=5 // pred_region
      %s330 = ssub.s32 %s9, 2
      // Predicated region
      $region41: #{decoder_forward.10} parent=39 // pred_check
        %p331 = pneg %p122
      $region42: #{decoder_forward.10} parent=39 // pred_check_branch
        %333 = sbr.rel (%p331) target = $region44
      $region43: #{decoder_forward.10} parent=39 // pred_region
        %p334 = scmp.lt.s32.totalorder %s20, 1
        %s335 = scalar_select %p334, %s20, 1
        %p336 = scmp.lt.s32.totalorder %s21, 0
        %s337 = scalar_select %p336, %s21, 0
        %s338 = smul.addr %s335, 4
        %s339 = sadd.s32 %s337, %s338
        %s340 = smul.addr %s339, 4
        %s341 = scalar_lea.vmem %s3, %s340
      $region44: #{decoder_forward.10} parent=39 // pred_fallthru
        _
    $region40: #{decoder_forward.10} parent=5 // pred_fallthru
      _
  $region6: #{decoder_forward.10} parent=0 // loop_footer
    %s13 = sadd.s32 1, %s9
  $region7: #{decoder_forward.10} parent=0 // loop_footer_branch
    %8 = sbr.rel target = $region3
  $region8: #{decoder_forward.10} parent=0 // loop_exit
    _

// kernel: decoder_forward.9
$region0: #{decoder_forward.9}
  #allocation0 [shape = 'u32[]', space=smem, size = 0x4, offset = 0x4, fixed_abs, tag = 'smem constant byte address 0x4 - core index']
  #allocation1 [shape = 'u32[144,128]{1,0:T(1,128)}', space=vmem, size = 0x12000, scoped, tag = 'internal scratch']
  %s0 = inlined_call_operand.vmem [shape: f32[2,8,128], index: 0, kind: input, shape index: {}]
  %s1 = inlined_call_operand.vmem [shape: f32[32,8], index: 1, kind: input, shape index: {}]
  %s2 = inlined_call_operand.vmem [shape: f32[32,1], index: 2, kind: input, shape index: {}]
  %s3 = inlined_call_operand.vmem [shape: bf16[2,32,128], index: 3, kind: output, shape index: {}]
  %s4 = sld [smem:[#allocation0]]
  $region45: #{decoder_forward.9} parent=0
    _
  %s6 = ssub.s32 1, %s4
  %s7 = scalar_select 0, %s6, %s4
  loop: start=0, step=1, limit=4
  $region2: #{decoder_forward.9} parent=0 // loop_pre_header
    _
  $region3: #{decoder_forward.9} parent=0 // loop_header
    %s9 = sphi 0, %s13
    %p10 = scmp.ge.s32.totalorder %s9, 4
    %s16 = sphi 0, %s28
    %s17 = sphi 0, %s24
    %s18 = sphi 0, %s16
    %s19 = sphi 0, %s17
    %s20 = sphi 0, %s18
    %s21 = sphi 0, %s19
    %s33 = sphi 0, %s35
    %s36 = sphi 0, %s33
    %s37 = sphi 0, %s36
    %s53 = sphi 0, %s37
    %s57 = sphi 0, %s57
    %s59 = sphi 0, %s57
    %s60 = sphi 0, %s59
    %s74 = sphi 0, %s60
    %s78 = sphi 0, %s78
    %s80 = sphi 0, %s78
    %s81 = sphi 0, %s80
    %s95 = sphi 0, %s81
    %s103 = sphi 0, %s105
    %s106 = sphi 0, %s103
    %s107 = sphi 0, %s106
    %s123 = sphi 0, %s107
  $region4: #{decoder_forward.9} parent=0 // loop_header_branch
    %12 = sbr.rel (%p10) target = $region8
  $region5: #{decoder_forward.9} parent=0 // loop_body
    %s14 = ssub.s32 %s9, 1
    %s15 = ssub.s32 %s9, 2
    %s22 = sadd.s32 1, %s17
    %p23 = scmp.ge.s32.totalorder %s22, 1
    %s24 = scalar_select %p23, 0, %s22
    %s25 = sadd.s32 1, %s16
    %s26 = scalar_select %p23, %s25, %s16
    %p27 = scmp.ge.s32.totalorder %s26, 2
    %s28 = scalar_select %p27, 0, %s26
    %s29 = ssub.s32 %s16, %s28
    %s30 = ssub.s32 %s17, %s24
    %s31 = sor.u32 %s29, %s30
    %p32 = scmp.eq.s32.totalorder %s31, 0
    %s34 = sadd.s32 %s33, 1
    %s35 = scalar_select %p32, %s33, %s34
    %p38 = pneg %p32
    %p39 = scmp.eq.s32.totalorder %s9, 1
    %p40 = por %p38, %p39
    %p41 = scmp.ne.s32.totalorder %s33, %s36
    %p42 = scmp.eq.s32.totalorder %s9, 0
    %p43 = por %p41, %p42
    %p44 = scmp.ne.s32.totalorder %s33, %s36
    %p45 = scmp.eq.s32.totalorder %s14, 1
    %p46 = por %p44, %p45
    %p47 = scmp.ne.s32.totalorder %s36, %s37
    %p48 = scmp.eq.s32.totalorder %s14, 0
    %p49 = por %p47, %p48
    %p50 = scmp.ne.s32.totalorder %s36, %s37
    %p51 = scmp.eq.s32.totalorder %s15, 1
    %p52 = por %p50, %p51
    %p54 = scmp.ne.s32.totalorder %s37, %s53
    %p55 = scmp.eq.s32.totalorder %s15, 0
    %p56 = por %p54, %p55
    %s58 = sadd.s32 %s57, 1
    %p61 = scmp.eq.s32.totalorder %s9, 1
    %p62 = scmp.ne.s32.totalorder %s57, %s59
    %p63 = scmp.eq.s32.totalorder %s9, 0
    %p64 = por %p62, %p63
    %p65 = scmp.ne.s32.totalorder %s57, %s59
    %p66 = scmp.eq.s32.totalorder %s14, 1
    %p67 = por %p65, %p66
    %p68 = scmp.ne.s32.totalorder %s59, %s60
    %p69 = scmp.eq.s32.totalorder %s14, 0
    %p70 = por %p68, %p69
    %p71 = scmp.ne.s32.totalorder %s59, %s60
    %p72 = scmp.eq.s32.totalorder %s15, 1
    %p73 = por %p71, %p72
    %p75 = scmp.ne.s32.totalorder %s60, %s74
    %p76 = scmp.eq.s32.totalorder %s15, 0
    %p77 = por %p75, %p76
    %s79 = sadd.s32 %s78, 1
    %p82 = scmp.eq.s32.totalorder %s9, 1
    %p83 = scmp.ne.s32.totalorder %s78, %s80
    %p84 = scmp.eq.s32.totalorder %s9, 0
    %p85 = por %p83, %p84
    %p86 = scmp.ne.s32.totalorder %s78, %s80
    %p87 = scmp.eq.s32.totalorder %s14, 1
    %p88 = por %p86, %p87
    %p89 = scmp.ne.s32.totalorder %s80, %s81
    %p90 = scmp.eq.s32.totalorder %s14, 0
    %p91 = por %p89, %p90
    %p92 = scmp.ne.s32.totalorder %s80, %s81
    %p93 = scmp.eq.s32.totalorder %s15, 1
    %p94 = por %p92, %p93
    %p96 = scmp.ne.s32.totalorder %s81, %s95
    %p97 = scmp.eq.s32.totalorder %s15, 0
    %p98 = por %p96, %p97
    %s99 = ssub.s32 %s16, %s28
    %s100 = ssub.s32 %s17, %s24
    %s101 = sor.u32 %s99, %s100
    %p102 = scmp.eq.s32.totalorder %s101, 0
    %s104 = sadd.s32 %s103, 1
    %s105 = scalar_select %p102, %s103, %s104
    %p108 = pneg %p102
    %p109 = scmp.eq.s32.totalorder %s9, 1
    %p110 = por %p108, %p109
    %p111 = scmp.ne.s32.totalorder %s103, %s106
    %p112 = scmp.eq.s32.totalorder %s9, 0
    %p113 = por %p111, %p112
    %p114 = scmp.ne.s32.totalorder %s103, %s106
    %p115 = scmp.eq.s32.totalorder %s14, 1
    %p116 = por %p114, %p115
    %p117 = scmp.ne.s32.totalorder %s106, %s107
    %p118 = scmp.eq.s32.totalorder %s14, 0
    %p119 = por %p117, %p118
    %p120 = scmp.ne.s32.totalorder %s106, %s107
    %p121 = scmp.eq.s32.totalorder %s15, 1
    %p122 = por %p120, %p121
    %p124 = scmp.ne.s32.totalorder %s107, %s123
    %p125 = scmp.eq.s32.totalorder %s15, 0
    %p126 = por %p124, %p125
    %p127 = scmp.le.s32.totalorder 1, %s9
    %p128 = scmp.lt.s32.totalorder %s9, 3
    %p129 = pnand %p127, %p128
    %p130 = pneg %p129
    // Predicated region
    $region9: #{decoder_forward.9} parent=5 // pred_check
      _
    $region10: #{decoder_forward.9} parent=5 // pred_check_branch
      %132 = sbr.rel (%p129) target = $region12
    $region11: #{decoder_forward.9} parent=5 // pred_region
      %s133 = ssub.s32 %s9, 1
      // Predicated region
      $region13: #{decoder_forward.9} parent=11 // pred_check
        %p134 = pneg %p70
      $region14: #{decoder_forward.9} parent=11 // pred_check_branch
        %136 = sbr.rel (%p134) target = $region16
      $region15: #{decoder_forward.9} parent=11 // pred_region
        _
      $region16: #{decoder_forward.9} parent=11 // pred_fallthru
        _
      // Predicated region
      $region17: #{decoder_forward.9} parent=11 // pred_check
        %p137 = pneg %p91
      $region18: #{decoder_forward.9} parent=11 // pred_check_branch
        %139 = sbr.rel (%p137) target = $region20
      $region19: #{decoder_forward.9} parent=11 // pred_region
        _
      $region20: #{decoder_forward.9} parent=11 // pred_fallthru
        _
    $region12: #{decoder_forward.9} parent=5 // pred_fallthru
      _
    %p140 = scmp.lt.s32.totalorder %s9, 2
    // Predicated region
    $region21: #{decoder_forward.9} parent=5 // pred_check
      %p141 = pneg %p140
    $region22: #{decoder_forward.9} parent=5 // pred_check_branch
      %143 = sbr.rel (%p141) target = $region24
    $region23: #{decoder_forward.9} parent=5 // pred_region
      // Predicated region
      $region25: #{decoder_forward.9} parent=23 // pred_check
        %p144 = pneg %p43
      $region26: #{decoder_forward.9} parent=23 // pred_check_branch
        %146 = sbr.rel (%p144) target = $region28
      $region27: #{decoder_forward.9} parent=23 // pred_region
        %p147 = scmp.lt.s32.totalorder %s16, 1
        %s148 = scalar_select %p147, %s16, 1
        %p149 = scmp.lt.s32.totalorder %s17, 0
        %s150 = scalar_select %p149, %s17, 0
        %s151 = sadd.s32 %s150, %s148
        %s152 = smul.addr %s151, 8
        %s153 = scalar_lea.vmem %s0, %s152
      $region28: #{decoder_forward.9} parent=23 // pred_fallthru
        _
    $region24: #{decoder_forward.9} parent=5 // pred_fallthru
      _
    %p154 = scmp.le.s32.totalorder 1, %s9
    %p155 = scmp.lt.s32.totalorder %s9, 3
    %p156 = pnand %p154, %p155
    %p157 = pneg %p156
    // Predicated region
    $region29: #{decoder_forward.9} parent=5 // pred_check
      _
    $region30: #{decoder_forward.9} parent=5 // pred_check_branch
      %159 = sbr.rel (%p156) target = $region32
    $region31: #{decoder_forward.9} parent=5 // pred_region
      %s160 = ssub.s32 %s9, 1
      %p161 = scmp.lt.s32.totalorder %s18, 1
      %s162 = scalar_select %p161, %s18, 1
      %p163 = scmp.lt.s32.totalorder %s19, 0
      %s164 = scalar_select %p163, %s19, 0
      %s165 = sadd.s32 %s164, %s162
      %s166 = smul.addr %s165, 8
      %s167 = scalar_lea.vmem %s0, %s166
      %p168 = pneg %p49
      %p169 = pneg %p46
      %p170 = pneg %p70
      %p171 = pneg %p67
      %p172 = pneg %p91
      %p173 = pneg %p88
      %p174 = pneg %p119
      %p175 = pneg %p116
      %p176 = scmp.lt.s32.totalorder %s18, 1
      %s177 = scalar_select %p176, %s18, 1
      %p178 = scmp.lt.s32.totalorder %s19, 0
      %s179 = scalar_select %p178, %s19, 0
      %s180 = smul.addr %s177, 4
      %s181 = sadd.s32 %s179, %s180
      %s182 = smul.addr %s181, 4
      %s183 = scalar_lea.vmem %s3, %s182
      %p184 = scmp.lt.s32.totalorder %s18, 1
      %s185 = scalar_select %p184, %s18, 1
      %p186 = scmp.lt.s32.totalorder %s19, 0
      %s187 = scalar_select %p186, %s19, 0
      %s188 = sadd.s32 %s187, %s185
      %s189 = smul.addr %s188, 8
      %s190 = scalar_lea.vmem %s0, %s189
      %p191 = scmp.lt.s32.totalorder %s18, 1
      %s192 = scalar_select %p191, %s18, 1
      %p193 = scmp.lt.s32.totalorder %s19, 0
      %s194 = scalar_select %p193, %s19, 0
      %s195 = smul.addr %s192, 4
      %s196 = sadd.s32 %s194, %s195
      %s197 = smul.addr %s196, 4
      %s198 = scalar_lea.vmem %s3, %s197
      %v200 = vld [vmem:[%s190] sm:$0xff]
      %v201 = vpack.c.bf16 %v200, %v200
      %v202 = vld [vmem:[%s1] sm:$0xff]
      %v203 = vld [vmem:[%s1 + $0x8] sm:$0xff]
      %v204 = vld [vmem:[%s1 + $0x10] sm:$0xff]
      %v205 = vld [vmem:[%s1 + $0x18] sm:$0xff]
      %v206 = vpack.c.bf16 %v203, %v202
      %v207 = vpack.c.bf16 %v205, %v204
      %v208 = vld [vmem:[%s2] sm:$0xff]
      %v209 = vld [vmem:[%s2 + $0x8] sm:$0xff]
      %v210 = vld [vmem:[%s2 + $0x10] sm:$0xff]
      %v211 = vld [vmem:[%s2 + $0x18] sm:$0xff]
      %213 = vset.pattern.permute.xlu0 0
      %214 = vperm.xlu0 %213, %v208
      %v215 = vpop.permute.xlu0 %214
      %218 = vset.pattern.permute.xlu0 0
      %219 = vperm.xlu0 %218, %v209
      %v220 = vpop.permute.xlu0 %219
      %223 = vset.pattern.permute.xlu0 0
      %224 = vperm.xlu0 %223, %v210
      %v225 = vpop.permute.xlu0 %224
      %228 = vset.pattern.permute.xlu0 0
      %229 = vperm.xlu0 %228, %v211
      %v230 = vpop.permute.xlu0 %229
      %vm232 = vcmask 64512
      %v234 = vsel %vm232, %v206, 0
      %v237 = vsel %vm232, %v207, 0
      %vm239 = vcmask 1043456
      %v241 = vsel %vm239, %v201, 0
      %243 = vmatprep.subr.bf16.mxu0 0
      %244 = vmatpush1.bf16.msra.mxu0 %v241
      %245 = vmatprep.subr.bf16.mxu0 0
      %246 = vmatpush1.bf16.msra.mxu0 0
      %247 = vmatprep.subr.bf16.mxu0 0
      %248 = vmatpush1.bf16.msra.mxu0 0
      %249 = vmatprep.subr.bf16.mxu0 0
      %250 = vmatpush1.bf16.msra.mxu0 0
      %251 = vmatprep.subr.bf16.mxu0 0
      %252 = vmatpush1.bf16.msra.mxu0 0
      %253 = vmatprep.subr.bf16.mxu0 0
      %254 = vmatpush1.bf16.msra.mxu0 0
      %255 = vmatprep.subr.bf16.mxu0 0
      %256 = vmatpush1.bf16.msra.mxu0 0
      %257 = vmatprep.subr.bf16.mxu0 0
      %258 = vmatpush1.bf16.msra.mxu0 0
      %259 = vmatprep.subr.bf16.mxu0 0
      %260 = vmatpush1.bf16.msra.mxu0 0
      %261 = vmatprep.subr.bf16.mxu0 0
      %262 = vmatpush1.bf16.msra.mxu0 0
      %263 = vmatprep.subr.bf16.mxu0 0
      %264 = vmatpush1.bf16.msra.mxu0 0
      %265 = vmatprep.subr.bf16.mxu0 0
      %266 = vmatpush1.bf16.msra.mxu0 0
      %267 = vmatprep.subr.bf16.mxu0 0
      %268 = vmatpush1.bf16.msra.mxu0 0
      %269 = vmatprep.subr.bf16.mxu0 0
      %270 = vmatpush1.bf16.msra.mxu0 0
      %271 = vmatprep.subr.bf16.mxu0 0
      %272 = vmatpush1.bf16.msra.mxu0 0
      %273 = vmatprep.subr.bf16.mxu0 0
      %274 = vmatpush1.bf16.msra.mxu0 0
      %275 = vmatprep.mubr.bf16.mxu0 0
      %276 = vmatmul.mubr.bf16.gmra.mrb[0].mxu0 %v234
      %v277 = vpop.f32.mrb[0].mxu0
      %v278 = vadd.f32 %v215, %v277
      %v279 = vpop.f32.mrb[0].mxu0
      %v280 = vpop.f32.mrb[0].mxu0
      %v281 = vadd.f32 %v220, %v280
      %v282 = vpop.f32.mrb[0].mxu0
      %283 = vmatprep.mubr.bf16.mxu0 0
      %284 = vmatmul.mubr.bf16.gmra.mrb[0].mxu0 %v237
      %v285 = vpop.f32.mrb[0].mxu0
      %v286 = vadd.f32 %v225, %v285
      %v287 = vpop.f32.mrb[0].mxu0
      %v288 = vpop.f32.mrb[0].mxu0
      %v289 = vadd.f32 %v230, %v288
      %v290 = vpop.f32.mrb[0].mxu0
      %291 = vdwg.mxu0
      %v292 = vpack.c.bf16 %v281, %v278
      %v293 = vpack.c.bf16 %v289, %v286
      %v296 = vunpack.c.l.b16 %v292
      %v297 = vunpack.c.h.b16 %v292
      %v298 = vunpack.c.l.b16 %v293
      %v299 = vunpack.c.h.b16 %v293
      %v300 = vpack.c.b16 %v296, %v296
      %v301 = vpack.c.b16 %v297, %v297
      %v302 = vpack.c.b16 %v298, %v298
      %v303 = vpack.c.b16 %v299, %v299
      %308 = vst [vmem:[%s198] sm:$0xf] %v300
      %309 = vst [vmem:[%s198 + $0x4] sm:$0xf] %v301
      %310 = vst [vmem:[%s198 + $0x8] sm:$0xf] %v302
      %311 = vst [vmem:[%s198 + $0xc] sm:$0xf] %v303
      %p312 = scmp.lt.s32.totalorder %s18, 1
      %s313 = scalar_select %p312, %s18, 1
      %p314 = scmp.lt.s32.totalorder %s19, 0
      %s315 = scalar_select %p314, %s19, 0
      %s316 = smul.addr %s313, 4
      %s317 = sadd.s32 %s315, %s316
      %s318 = smul.addr %s317, 4
      %s319 = scalar_lea.vmem %s3, %s318
      // Predicated region
      $region33: #{decoder_forward.9} parent=31 // pred_check
        %p320 = pneg %p116
      $region34: #{decoder_forward.9} parent=31 // pred_check_branch
        %322 = sbr.rel (%p320) target = $region36
      $region35: #{decoder_forward.9} parent=31 // pred_region
        _
      $region36: #{decoder_forward.9} parent=31 // pred_fallthru
        _
    $region32: #{decoder_forward.9} parent=5 // pred_fallthru
      _
    %p323 = scmp.le.s32.totalorder 2, %s9
    // Predicated region
    $region37: #{decoder_forward.9} parent=5 // pred_check
      %p324 = pneg %p323
    $region38: #{decoder_forward.9} parent=5 // pred_check_branch
      %326 = sbr.rel (%p324) target = $region40
    $region39: #{decoder_forward.9} parent=5 // pred_region
      %s327 = ssub.s32 %s9, 2
      // Predicated region
      $region41: #{decoder_forward.9} parent=39 // pred_check
        %p328 = pneg %p122
      $region42: #{decoder_forward.9} parent=39 // pred_check_branch
        %330 = sbr.rel (%p328) target = $region44
      $region43: #{decoder_forward.9} parent=39 // pred_region
        %p331 = scmp.lt.s32.totalorder %s20, 1
        %s332 = scalar_select %p331, %s20, 1
        %p333 = scmp.lt.s32.totalorder %s21, 0
        %s334 = scalar_select %p333, %s21, 0
        %s335 = smul.addr %s332, 4
        %s336 = sadd.s32 %s334, %s335
        %s337 = smul.addr %s336, 4
        %s338 = scalar_lea.vmem %s3, %s337
      $region44: #{decoder_forward.9} parent=39 // pred_fallthru
        _
    $region40: #{decoder_forward.9} parent=5 // pred_fallthru
      _
  $region6: #{decoder_forward.9} parent=0 // loop_footer
    %s13 = sadd.s32 1, %s9
  $region7: #{decoder_forward.9} parent=0 // loop_footer_branch
    %8 = sbr.rel target = $region3
  $region8: #{decoder_forward.9} parent=0 // loop_exit
    _

// kernel: decoder_forward.11
$region0: #{decoder_forward.11}
  #allocation0 [shape = 'u32[]', space=smem, size = 0x4, offset = 0x4, fixed_abs, tag = 'smem constant byte address 0x4 - core index']
  #allocation1 [shape = 'u32[144,128]{1,0:T(1,128)}', space=vmem, size = 0x12000, scoped, tag = 'internal scratch']
  %s0 = inlined_call_operand.vmem [shape: bf16[2,32,128], index: 0, kind: input, shape index: {}]
  %s1 = inlined_call_operand.vmem [shape: f32[32,32], index: 1, kind: input, shape index: {}]
  %s2 = inlined_call_operand.vmem [shape: f32[32,1], index: 2, kind: input, shape index: {}]
  %s3 = inlined_call_operand.vmem [shape: f32[32,32], index: 3, kind: input, shape index: {}]
  %s4 = inlined_call_operand.vmem [shape: f32[32,1], index: 4, kind: input, shape index: {}]
  %s5 = inlined_call_operand.vmem [shape: bf16[2,32,128], index: 5, kind: output, shape index: {0}]
  %s6 = inlined_call_operand.vmem [shape: bf16[2,16,128], index: 6, kind: output, shape index: {1}]
  %s7 = inlined_call_operand.vmem [shape: bf16[2,16,128], index: 7, kind: output, shape index: {2}]
  %8 = xla_tuple %s5, %s6, %s7
  %s9 = sld [smem:[#allocation0]]
  $region69: #{decoder_forward.11} parent=0
    _
  %s11 = ssub.s32 1, %s9
  %s12 = scalar_select 0, %s11, %s9
  loop: start=0, step=1, limit=4
  $region2: #{decoder_forward.11} parent=0 // loop_pre_header
    _
  $region3: #{decoder_forward.11} parent=0 // loop_header
    %s14 = sphi 0, %s18
    %p15 = scmp.ge.s32.totalorder %s14, 4
    %s21 = sphi 0, %s33
    %s22 = sphi 0, %s29
    %s23 = sphi 0, %s21
    %s24 = sphi 0, %s22
    %s25 = sphi 0, %s23
    %s26 = sphi 0, %s24
    %s38 = sphi 0, %s40
    %s41 = sphi 0, %s38
    %s42 = sphi 0, %s41
    %s58 = sphi 0, %s42
    %s62 = sphi 0, %s62
    %s64 = sphi 0, %s62
    %s65 = sphi 0, %s64
    %s79 = sphi 0, %s65
    %s83 = sphi 0, %s83
    %s85 = sphi 0, %s83
    %s86 = sphi 0, %s85
    %s100 = sphi 0, %s86
    %s104 = sphi 0, %s104
    %s106 = sphi 0, %s104
    %s107 = sphi 0, %s106
    %s121 = sphi 0, %s107
    %s125 = sphi 0, %s125
    %s127 = sphi 0, %s125
    %s128 = sphi 0, %s127
    %s142 = sphi 0, %s128
    %s150 = sphi 0, %s152
    %s153 = sphi 0, %s150
    %s154 = sphi 0, %s153
    %s170 = sphi 0, %s154
    %s178 = sphi 0, %s180
    %s181 = sphi 0, %s178
    %s182 = sphi 0, %s181
    %s198 = sphi 0, %s182
    %s206 = sphi 0, %s208
    %s209 = sphi 0, %s206
    %s210 = sphi 0, %s209
    %s226 = sphi 0, %s210
  $region4: #{decoder_forward.11} parent=0 // loop_header_branch
    %17 = sbr.rel (%p15) target = $region8
  $region5: #{decoder_forward.11} parent=0 // loop_body
    %s19 = ssub.s32 %s14, 1
    %s20 = ssub.s32 %s14, 2
    %s27 = sadd.s32 1, %s22
    %p28 = scmp.ge.s32.totalorder %s27, 1
    %s29 = scalar_select %p28, 0, %s27
    %s30 = sadd.s32 1, %s21
    %s31 = scalar_select %p28, %s30, %s21
    %p32 = scmp.ge.s32.totalorder %s31, 2
    %s33 = scalar_select %p32, 0, %s31
    %s34 = ssub.s32 %s21, %s33
    %s35 = ssub.s32 %s22, %s29
    %s36 = sor.u32 %s34, %s35
    %p37 = scmp.eq.s32.totalorder %s36, 0
    %s39 = sadd.s32 %s38, 1
    %s40 = scalar_select %p37, %s38, %s39
    %p43 = pneg %p37
    %p44 = scmp.eq.s32.totalorder %s14, 1
    %p45 = por %p43, %p44
    %p46 = scmp.ne.s32.totalorder %s38, %s41
    %p47 = scmp.eq.s32.totalorder %s14, 0
    %p48 = por %p46, %p47
    %p49 = scmp.ne.s32.totalorder %s38, %s41
    %p50 = scmp.eq.s32.totalorder %s19, 1
    %p51 = por %p49, %p50
    %p52 = scmp.ne.s32.totalorder %s41, %s42
    %p53 = scmp.eq.s32.totalorder %s19, 0
    %p54 = por %p52, %p53
    %p55 = scmp.ne.s32.totalorder %s41, %s42
    %p56 = scmp.eq.s32.totalorder %s20, 1
    %p57 = por %p55, %p56
    %p59 = scmp.ne.s32.totalorder %s42, %s58
    %p60 = scmp.eq.s32.totalorder %s20, 0
    %p61 = por %p59, %p60
    %s63 = sadd.s32 %s62, 1
    %p66 = scmp.eq.s32.totalorder %s14, 1
    %p67 = scmp.ne.s32.totalorder %s62, %s64
    %p68 = scmp.eq.s32.totalorder %s14, 0
    %p69 = por %p67, %p68
    %p70 = scmp.ne.s32.totalorder %s62, %s64
    %p71 = scmp.eq.s32.totalorder %s19, 1
    %p72 = por %p70, %p71
    %p73 = scmp.ne.s32.totalorder %s64, %s65
    %p74 = scmp.eq.s32.totalorder %s19, 0
    %p75 = por %p73, %p74
    %p76 = scmp.ne.s32.totalorder %s64, %s65
    %p77 = scmp.eq.s32.totalorder %s20, 1
    %p78 = por %p76, %p77
    %p80 = scmp.ne.s32.totalorder %s65, %s79
    %p81 = scmp.eq.s32.totalorder %s20, 0
    %p82 = por %p80, %p81
    %s84 = sadd.s32 %s83, 1
    %p87 = scmp.eq.s32.totalorder %s14, 1
    %p88 = scmp.ne.s32.totalorder %s83, %s85
    %p89 = scmp.eq.s32.totalorder %s14, 0
    %p90 = por %p88, %p89
    %p91 = scmp.ne.s32.totalorder %s83, %s85
    %p92 = scmp.eq.s32.totalorder %s19, 1
    %p93 = por %p91, %p92
    %p94 = scmp.ne.s32.totalorder %s85, %s86
    %p95 = scmp.eq.s32.totalorder %s19, 0
    %p96 = por %p94, %p95
    %p97 = scmp.ne.s32.totalorder %s85, %s86
    %p98 = scmp.eq.s32.totalorder %s20, 1
    %p99 = por %p97, %p98
    %p101 = scmp.ne.s32.totalorder %s86, %s100
    %p102 = scmp.eq.s32.totalorder %s20, 0
    %p103 = por %p101, %p102
    %s105 = sadd.s32 %s104, 1
    %p108 = scmp.eq.s32.totalorder %s14, 1
    %p109 = scmp.ne.s32.totalorder %s104, %s106
    %p110 = scmp.eq.s32.totalorder %s14, 0
    %p111 = por %p109, %p110
    %p112 = scmp.ne.s32.totalorder %s104, %s106
    %p113 = scmp.eq.s32.totalorder %s19, 1
    %p114 = por %p112, %p113
    %p115 = scmp.ne.s32.totalorder %s106, %s107
    %p116 = scmp.eq.s32.totalorder %s19, 0
    %p117 = por %p115, %p116
    %p118 = scmp.ne.s32.totalorder %s106, %s107
    %p119 = scmp.eq.s32.totalorder %s20, 1
    %p120 = por %p118, %p119
    %p122 = scmp.ne.s32.totalorder %s107, %s121
    %p123 = scmp.eq.s32.totalorder %s20, 0
    %p124 = por %p122, %p123
    %s126 = sadd.s32 %s125, 1
    %p129 = scmp.eq.s32.totalorder %s14, 1
    %p130 = scmp.ne.s32.totalorder %s125, %s127
    %p131 = scmp.eq.s32.totalorder %s14, 0
    %p132 = por %p130, %p131
    %p133 = scmp.ne.s32.totalorder %s125, %s127
    %p134 = scmp.eq.s32.totalorder %s19, 1
    %p135 = por %p133, %p134
    %p136 = scmp.ne.s32.totalorder %s127, %s128
    %p137 = scmp.eq.s32.totalorder %s19, 0
    %p138 = por %p136, %p137
    %p139 = scmp.ne.s32.totalorder %s127, %s128
    %p140 = scmp.eq.s32.totalorder %s20, 1
    %p141 = por %p139, %p140
    %p143 = scmp.ne.s32.totalorder %s128, %s142
    %p144 = scmp.eq.s32.totalorder %s20, 0
    %p145 = por %p143, %p144
    %s146 = ssub.s32 %s21, %s33
    %s147 = ssub.s32 %s22, %s29
    %s148 = sor.u32 %s146, %s147
    %p149 = scmp.eq.s32.totalorder %s148, 0
    %s151 = sadd.s32 %s150, 1
    %s152 = scalar_select %p149, %s150, %s151
    %p155 = pneg %p149
    %p156 = scmp.eq.s32.totalorder %s14, 1
    %p157 = por %p155, %p156
    %p158 = scmp.ne.s32.totalorder %s150, %s153
    %p159 = scmp.eq.s32.totalorder %s14, 0
    %p160 = por %p158, %p159
    %p161 = scmp.ne.s32.totalorder %s150, %s153
    %p162 = scmp.eq.s32.totalorder %s19, 1
    %p163 = por %p161, %p162
    %p164 = scmp.ne.s32.totalorder %s153, %s154
    %p165 = scmp.eq.s32.totalorder %s19, 0
    %p166 = por %p164, %p165
    %p167 = scmp.ne.s32.totalorder %s153, %s154
    %p168 = scmp.eq.s32.totalorder %s20, 1
    %p169 = por %p167, %p168
    %p171 = scmp.ne.s32.totalorder %s154, %s170
    %p172 = scmp.eq.s32.totalorder %s20, 0
    %p173 = por %p171, %p172
    %s174 = ssub.s32 %s21, %s33
    %s175 = ssub.s32 %s22, %s29
    %s176 = sor.u32 %s174, %s175
    %p177 = scmp.eq.s32.totalorder %s176, 0
    %s179 = sadd.s32 %s178, 1
    %s180 = scalar_select %p177, %s178, %s179
    %p183 = pneg %p177
    %p184 = scmp.eq.s32.totalorder %s14, 1
    %p185 = por %p183, %p184
    %p186 = scmp.ne.s32.totalorder %s178, %s181
    %p187 = scmp.eq.s32.totalorder %s14, 0
    %p188 = por %p186, %p187
    %p189 = scmp.ne.s32.totalorder %s178, %s181
    %p190 = scmp.eq.s32.totalorder %s19, 1
    %p191 = por %p189, %p190
    %p192 = scmp.ne.s32.totalorder %s181, %s182
    %p193 = scmp.eq.s32.totalorder %s19, 0
    %p194 = por %p192, %p193
    %p195 = scmp.ne.s32.totalorder %s181, %s182
    %p196 = scmp.eq.s32.totalorder %s20, 1
    %p197 = por %p195, %p196
    %p199 = scmp.ne.s32.totalorder %s182, %s198
    %p200 = scmp.eq.s32.totalorder %s20, 0
    %p201 = por %p199, %p200
    %s202 = ssub.s32 %s21, %s33
    %s203 = ssub.s32 %s22, %s29
    %s204 = sor.u32 %s202, %s203
    %p205 = scmp.eq.s32.totalorder %s204, 0
    %s207 = sadd.s32 %s206, 1
    %s208 = scalar_select %p205, %s206, %s207
    %p211 = pneg %p205
    %p212 = scmp.eq.s32.totalorder %s14, 1
    %p213 = por %p211, %p212
    %p214 = scmp.ne.s32.totalorder %s206, %s209
    %p215 = scmp.eq.s32.totalorder %s14, 0
    %p216 = por %p214, %p215
    %p217 = scmp.ne.s32.totalorder %s206, %s209
    %p218 = scmp.eq.s32.totalorder %s19, 1
    %p219 = por %p217, %p218
    %p220 = scmp.ne.s32.totalorder %s209, %s210
    %p221 = scmp.eq.s32.totalorder %s19, 0
    %p222 = por %p220, %p221
    %p223 = scmp.ne.s32.totalorder %s209, %s210
    %p224 = scmp.eq.s32.totalorder %s20, 1
    %p225 = por %p223, %p224
    %p227 = scmp.ne.s32.totalorder %s210, %s226
    %p228 = scmp.eq.s32.totalorder %s20, 0
    %p229 = por %p227, %p228
    %p230 = scmp.le.s32.totalorder 1, %s14
    %p231 = scmp.lt.s32.totalorder %s14, 3
    %p232 = pnand %p230, %p231
    %p233 = pneg %p232
    // Predicated region
    $region9: #{decoder_forward.11} parent=5 // pred_check
      _
    $region10: #{decoder_forward.11} parent=5 // pred_check_branch
      %235 = sbr.rel (%p232) target = $region12
    $region11: #{decoder_forward.11} parent=5 // pred_region
      %s236 = ssub.s32 %s14, 1
      // Predicated region
      $region13: #{decoder_forward.11} parent=11 // pred_check
        %p237 = pneg %p75
      $region14: #{decoder_forward.11} parent=11 // pred_check_branch
        %239 = sbr.rel (%p237) target = $region16
      $region15: #{decoder_forward.11} parent=11 // pred_region
        _
      $region16: #{decoder_forward.11} parent=11 // pred_fallthru
        _
      // Predicated region
      $region17: #{decoder_forward.11} parent=11 // pred_check
        %p240 = pneg %p96
      $region18: #{decoder_forward.11} parent=11 // pred_check_branch
        %242 = sbr.rel (%p240) target = $region20
      $region19: #{decoder_forward.11} parent=11 // pred_region
        _
      $region20: #{decoder_forward.11} parent=11 // pred_fallthru
        _
      // Predicated region
      $region21: #{decoder_forward.11} parent=11 // pred_check
        %p243 = pneg %p117
      $region22: #{decoder_forward.11} parent=11 // pred_check_branch
        %245 = sbr.rel (%p243) target = $region24
      $region23: #{decoder_forward.11} parent=11 // pred_region
        _
      $region24: #{decoder_forward.11} parent=11 // pred_fallthru
        _
      // Predicated region
      $region25: #{decoder_forward.11} parent=11 // pred_check
        %p246 = pneg %p138
      $region26: #{decoder_forward.11} parent=11 // pred_check_branch
        %248 = sbr.rel (%p246) target = $region28
      $region27: #{decoder_forward.11} parent=11 // pred_region
        _
      $region28: #{decoder_forward.11} parent=11 // pred_fallthru
        _
    $region12: #{decoder_forward.11} parent=5 // pred_fallthru
      _
    %p249 = scmp.lt.s32.totalorder %s14, 2
    // Predicated region
    $region29: #{decoder_forward.11} parent=5 // pred_check
      %p250 = pneg %p249
    $region30: #{decoder_forward.11} parent=5 // pred_check_branch
      %252 = sbr.rel (%p250) target = $region32
    $region31: #{decoder_forward.11} parent=5 // pred_region
      // Predicated region
      $region33: #{decoder_forward.11} parent=31 // pred_check
        %p253 = pneg %p48
      $region34: #{decoder_forward.11} parent=31 // pred_check_branch
        %255 = sbr.rel (%p253) target = $region36
      $region35: #{decoder_forward.11} parent=31 // pred_region
        %p256 = scmp.lt.s32.totalorder %s21, 1
        %s257 = scalar_select %p256, %s21, 1
        %p258 = scmp.lt.s32.totalorder %s22, 0
        %s259 = scalar_select %p258, %s22, 0
        %s260 = smul.addr %s257, 4
        %s261 = sadd.s32 %s259, %s260
        %s262 = smul.addr %s261, 4
        %s263 = scalar_lea.vmem %s0, %s262
      $region36: #{decoder_forward.11} parent=31 // pred_fallthru
        _
    $region32: #{decoder_forward.11} parent=5 // pred_fallthru
      _
    %p264 = scmp.le.s32.totalorder 1, %s14
    %p265 = scmp.lt.s32.totalorder %s14, 3
    %p266 = pnand %p264, %p265
    %p267 = pneg %p266
    // Predicated region
    $region37: #{decoder_forward.11} parent=5 // pred_check
      _
    $region38: #{decoder_forward.11} parent=5 // pred_check_branch
      %269 = sbr.rel (%p266) target = $region40
    $region39: #{decoder_forward.11} parent=5 // pred_region
      %s270 = ssub.s32 %s14, 1
      %p271 = scmp.lt.s32.totalorder %s23, 1
      %s272 = scalar_select %p271, %s23, 1
      %p273 = scmp.lt.s32.totalorder %s24, 0
      %s274 = scalar_select %p273, %s24, 0
      %s275 = smul.addr %s272, 4
      %s276 = sadd.s32 %s274, %s275
      %s277 = smul.addr %s276, 4
      %s278 = scalar_lea.vmem %s0, %s277
      %p279 = pneg %p54
      %p280 = pneg %p51
      %p281 = pneg %p75
      %p282 = pneg %p72
      %p283 = pneg %p96
      %p284 = pneg %p93
      %p285 = pneg %p117
      %p286 = pneg %p114
      %p287 = pneg %p138
      %p288 = pneg %p135
      %p289 = pneg %p166
      %p290 = pneg %p163
      %p291 = scmp.lt.s32.totalorder %s23, 1
      %s292 = scalar_select %p291, %s23, 1
      %p293 = scmp.lt.s32.totalorder %s24, 0
      %s294 = scalar_select %p293, %s24, 0
      %s295 = smul.addr %s292, 4
      %s296 = sadd.s32 %s294, %s295
      %s297 = smul.addr %s296, 4
      %s298 = scalar_lea.vmem %s5, %s297
      %p299 = pneg %p194
      %p300 = pneg %p191
      %p301 = scmp.lt.s32.totalorder %s23, 1
      %s302 = scalar_select %p301, %s23, 1
      %p303 = scmp.lt.s32.totalorder %s24, 0
      %s304 = scalar_select %p303, %s24, 0
      %s305 = smul.addr %s302, 2
      %s306 = sadd.s32 %s304, %s305
      %s307 = smul.addr %s306, 4
      %s308 = scalar_lea.vmem %s6, %s307
      %p309 = pneg %p222
      %p310 = pneg %p219
      %p311 = scmp.lt.s32.totalorder %s23, 1
      %s312 = scalar_select %p311, %s23, 1
      %p313 = scmp.lt.s32.totalorder %s24, 0
      %s314 = scalar_select %p313, %s24, 0
      %s315 = smul.addr %s312, 2
      %s316 = sadd.s32 %s314, %s315
      %s317 = smul.addr %s316, 4
      %s318 = scalar_lea.vmem %s7, %s317
      %p319 = scmp.lt.s32.totalorder %s23, 1
      %s320 = scalar_select %p319, %s23, 1
      %p321 = scmp.lt.s32.totalorder %s24, 0
      %s322 = scalar_select %p321, %s24, 0
      %s323 = smul.addr %s320, 4
      %s324 = sadd.s32 %s322, %s323
      %s325 = smul.addr %s324, 4
      %s326 = scalar_lea.vmem %s0, %s325
      %p327 = scmp.lt.s32.totalorder %s23, 1
      %s328 = scalar_select %p327, %s23, 1
      %p329 = scmp.lt.s32.totalorder %s24, 0
      %s330 = scalar_select %p329, %s24, 0
      %s331 = smul.addr %s328, 4
      %s332 = sadd.s32 %s330, %s331
      %s333 = smul.addr %s332, 4
      %s334 = scalar_lea.vmem %s5, %s333
      %p335 = scmp.lt.s32.totalorder %s23, 1
      %s336 = scalar_select %p335, %s23, 1
      %p337 = scmp.lt.s32.totalorder %s24, 0
      %s338 = scalar_select %p337, %s24, 0
      %s339 = smul.addr %s336, 2
      %s340 = sadd.s32 %s338, %s339
      %s341 = smul.addr %s340, 4
      %s342 = scalar_lea.vmem %s6, %s341
      %p343 = scmp.lt.s32.totalorder %s23, 1
      %s344 = scalar_select %p343, %s23, 1
      %p345 = scmp.lt.s32.totalorder %s24, 0
      %s346 = scalar_select %p345, %s24, 0
      %s347 = smul.addr %s344, 2
      %s348 = sadd.s32 %s346, %s347
      %s349 = smul.addr %s348, 4
      %s350 = scalar_lea.vmem %s7, %s349
      %v352 = vld [vmem:[%s326] sm:$0xf]
      %v353 = vld [vmem:[%s326 + $0x4] sm:$0xf]
      %v354 = vld [vmem:[%s326 + $0x8] sm:$0xf]
      %v355 = vld [vmem:[%s326 + $0xc] sm:$0xf]
      %v356 = vld [vmem:[%s1] sm:$0xff]
      %v357 = vld [vmem:[%s1 + $0x8] sm:$0xff]
      %v358 = vld [vmem:[%s1 + $0x10] sm:$0xff]
      %v359 = vld [vmem:[%s1 + $0x18] sm:$0xff]
      %v360 = vpack.c.bf16 %v357, %v356
      %v361 = vpack.c.bf16 %v359, %v358
      %v362 = vld [vmem:[%s2] sm:$0xff]
      %v363 = vld [vmem:[%s2 + $0x8] sm:$0xff]
      %v364 = vld [vmem:[%s2 + $0x10] sm:$0xff]
      %v365 = vld [vmem:[%s2 + $0x18] sm:$0xff]
      %367 = vset.pattern.permute.xlu0 0
      %368 = vperm.xlu0 %367, %v362
      %v369 = vpop.permute.xlu0 %368
      %372 = vset.pattern.permute.xlu0 0
      %373 = vperm.xlu0 %372, %v363
      %v374 = vpop.permute.xlu0 %373
      %377 = vset.pattern.permute.xlu0 0
      %378 = vperm.xlu0 %377, %v364
      %v379 = vpop.permute.xlu0 %378
      %382 = vset.pattern.permute.xlu0 0
      %383 = vperm.xlu0 %382, %v365
      %v384 = vpop.permute.xlu0 %383
      %v390 = vunpack.c.l.b16 %v352
      %v391 = vunpack.c.l.b16 %v353
      %v392 = vunpack.c.l.b16 %v354
      %v393 = vunpack.c.l.b16 %v355
      %v394 = vpack.c.b16 %v391, %v390
      %v395 = vpack.c.b16 %v393, %v392
      %vm398 = vcmask 261120
      %v400 = vsel %vm398, %v360, 0
      %v403 = vsel %vm398, %v361, 0
      %405 = vmatprep.subr.bf16.mxu0 0
      %406 = vmatpush1.bf16.msra.mxu0 %v394
      %407 = vmatprep.subr.bf16.mxu0 0
      %408 = vmatpush1.bf16.msra.mxu0 %v395
      %409 = vmatprep.subr.bf16.mxu0 0
      %410 = vmatpush1.bf16.msra.mxu0 0
      %411 = vmatprep.subr.bf16.mxu0 0
      %412 = vmatpush1.bf16.msra.mxu0 0
      %413 = vmatprep.subr.bf16.mxu0 0
      %414 = vmatpush1.bf16.msra.mxu0 0
      %415 = vmatprep.subr.bf16.mxu0 0
      %416 = vmatpush1.bf16.msra.mxu0 0
      %417 = vmatprep.subr.bf16.mxu0 0
      %418 = vmatpush1.bf16.msra.mxu0 0
      %419 = vmatprep.subr.bf16.mxu0 0
      %420 = vmatpush1.bf16.msra.mxu0 0
      %421 = vmatprep.subr.bf16.mxu0 0
      %422 = vmatpush1.bf16.msra.mxu0 0
      %423 = vmatprep.subr.bf16.mxu0 0
      %424 = vmatpush1.bf16.msra.mxu0 0
      %425 = vmatprep.subr.bf16.mxu0 0
      %426 = vmatpush1.bf16.msra.mxu0 0
      %427 = vmatprep.subr.bf16.mxu0 0
      %428 = vmatpush1.bf16.msra.mxu0 0
      %429 = vmatprep.subr.bf16.mxu0 0
      %430 = vmatpush1.bf16.msra.mxu0 0
      %431 = vmatprep.subr.bf16.mxu0 0
      %432 = vmatpush1.bf16.msra.mxu0 0
      %433 = vmatprep.subr.bf16.mxu0 0
      %434 = vmatpush1.bf16.msra.mxu0 0
      %435 = vmatprep.subr.bf16.mxu0 0
      %436 = vmatpush1.bf16.msra.mxu0 0
      %437 = vmatprep.mubr.bf16.mxu0 0
      %438 = vmatmul.mubr.bf16.gmra.mrb[0].mxu0 %v400
      %v439 = vpop.f32.mrb[0].mxu0
      %v440 = vadd.f32 %v369, %v439
      %v441 = vpop.f32.mrb[0].mxu0
      %v442 = vpop.f32.mrb[0].mxu0
      %v443 = vadd.f32 %v374, %v442
      %v444 = vpop.f32.mrb[0].mxu0
      %445 = vmatprep.mubr.bf16.mxu0 0
      %446 = vmatmul.mubr.bf16.gmra.mrb[0].mxu0 %v403
      %v447 = vpop.f32.mrb[0].mxu0
      %v448 = vadd.f32 %v379, %v447
      %v449 = vpop.f32.mrb[0].mxu0
      %v450 = vpop.f32.mrb[0].mxu0
      %v451 = vadd.f32 %v384, %v450
      %v452 = vpop.f32.mrb[0].mxu0
      %453 = vdwg.mxu0
      %v454 = vmax.f32 %v440, 0.0
      %v455 = vmax.f32 %v443, 0.0
      %v456 = vmax.f32 %v448, 0.0
      %v457 = vmax.f32 %v451, 0.0
      %v458 = vpack.c.bf16 %v455, %v454
      %v459 = vpack.c.bf16 %v457, %v456
      %v462 = vunpack.c.l.b16 %v458
      %v463 = vunpack.c.h.b16 %v458
      %v464 = vunpack.c.l.b16 %v459
      %v465 = vunpack.c.h.b16 %v459
      %v466 = vpack.c.b16 %v462, %v462
      %v467 = vpack.c.b16 %v463, %v463
      %v468 = vpack.c.b16 %v464, %v464
      %v469 = vpack.c.b16 %v465, %v465
      %474 = vst [vmem:[%s334] sm:$0xf] %v466
      %475 = vst [vmem:[%s334 + $0x4] sm:$0xf] %v467
      %476 = vst [vmem:[%s334 + $0x8] sm:$0xf] %v468
      %477 = vst [vmem:[%s334 + $0xc] sm:$0xf] %v469
      %v478 = vadd.f32 %v454, %v455
      %v479 = vadd.f32 %v478, %v456
      %v480 = vadd.f32 %v479, %v457
      %v481 = vrot.slane %v480, 4
      %v482 = vadd.f32 %v480, %v481
      %v483 = vrot.slane %v482, 2
      %v484 = vadd.f32 %v482, %v483
      %v485 = vrot.slane %v484, 1
      %v486 = vadd.f32 %v484, %v485
      %v487 = vrcp.pop 32.0
      %v488 = vmul.f32 %v486, %v487
      %v489 = vsub.f32 %v454, %v488
      %v490 = vsub.f32 %v455, %v488
      %v491 = vsub.f32 %v456, %v488
      %v492 = vsub.f32 %v457, %v488
      %v493 = vmul.f32 %v489, %v489
      %v494 = vmul.f32 %v490, %v490
      %v495 = vmul.f32 %v491, %v491
      %v496 = vmul.f32 %v492, %v492
      %v497 = vadd.f32 %v493, %v494
      %v498 = vadd.f32 %v497, %v495
      %v499 = vadd.f32 %v498, %v496
      %v500 = vrot.slane %v499, 4
      %v501 = vadd.f32 %v499, %v500
      %v502 = vrot.slane %v501, 2
      %v503 = vadd.f32 %v501, %v502
      %v504 = vrot.slane %v503, 1
      %v505 = vadd.f32 %v503, %v504
      %v506 = vmul.f32 %v505, %v487
      %v507 = vadd.f32 %v506, 1e-05
      %v508 = vrsqrt.pop %v507
      %v509 = vmul.f32 %v489, %v508
      %v510 = vmul.f32 %v490, %v508
      %v511 = vmul.f32 %v491, %v508
      %v512 = vmul.f32 %v492, %v508
      %v513 = vld [vmem:[%s3] sm:$0xff]
      %v514 = vld [vmem:[%s3 + $0x8] sm:$0xff]
      %v515 = vld [vmem:[%s3 + $0x10] sm:$0xff]
      %v516 = vld [vmem:[%s3 + $0x18] sm:$0xff]
      %v517 = vpack.c.bf16 %v514, %v513
      %v518 = vpack.c.bf16 %v516, %v515
      %v519 = vpack.c.bf16 %v510, %v509
      %v520 = vpack.c.bf16 %v512, %v511
      %v521 = vld [vmem:[%s4] sm:$0xff]
      %v522 = vld [vmem:[%s4 + $0x8] sm:$0xff]
      %v523 = vld [vmem:[%s4 + $0x10] sm:$0xff]
      %v524 = vld [vmem:[%s4 + $0x18] sm:$0xff]
      %526 = vset.pattern.permute.xlu0 0
      %527 = vperm.xlu0 %526, %v521
      %v528 = vpop.permute.xlu0 %527
      %531 = vset.pattern.permute.xlu0 0
      %532 = vperm.xlu0 %531, %v522
      %v533 = vpop.permute.xlu0 %532
      %536 = vset.pattern.permute.xlu0 0
      %537 = vperm.xlu0 %536, %v523
      %v538 = vpop.permute.xlu0 %537
      %541 = vset.pattern.permute.xlu0 0
      %542 = vperm.xlu0 %541, %v524
      %v543 = vpop.permute.xlu0 %542
      %v546 = vsel %vm398, %v517, 0
      %v549 = vsel %vm398, %v518, 0
      %551 = vmatprep.subr.bf16.mxu0 0
      %552 = vmatpush1.bf16.msra.mxu0 %v519
      %553 = vmatprep.subr.bf16.mxu0 0
      %554 = vmatpush1.bf16.msra.mxu0 %v520
      %555 = vmatprep.subr.bf16.mxu0 0
      %556 = vmatpush1.bf16.msra.mxu0 0
      %557 = vmatprep.subr.bf16.mxu0 0
      %558 = vmatpush1.bf16.msra.mxu0 0
      %559 = vmatprep.subr.bf16.mxu0 0
      %560 = vmatpush1.bf16.msra.mxu0 0
      %561 = vmatprep.subr.bf16.mxu0 0
      %562 = vmatpush1.bf16.msra.mxu0 0
      %563 = vmatprep.subr.bf16.mxu0 0
      %564 = vmatpush1.bf16.msra.mxu0 0
      %565 = vmatprep.subr.bf16.mxu0 0
      %566 = vmatpush1.bf16.msra.mxu0 0
      %567 = vmatprep.subr.bf16.mxu0 0
      %568 = vmatpush1.bf16.msra.mxu0 0
      %569 = vmatprep.subr.bf16.mxu0 0
      %570 = vmatpush1.bf16.msra.mxu0 0
      %571 = vmatprep.subr.bf16.mxu0 0
      %572 = vmatpush1.bf16.msra.mxu0 0
      %573 = vmatprep.subr.bf16.mxu0 0
      %574 = vmatpush1.bf16.msra.mxu0 0
      %575 = vmatprep.subr.bf16.mxu0 0
      %576 = vmatpush1.bf16.msra.mxu0 0
      %577 = vmatprep.subr.bf16.mxu0 0
      %578 = vmatpush1.bf16.msra.mxu0 0
      %579 = vmatprep.subr.bf16.mxu0 0
      %580 = vmatpush1.bf16.msra.mxu0 0
      %581 = vmatprep.subr.bf16.mxu0 0
      %582 = vmatpush1.bf16.msra.mxu0 0
      %583 = vmatprep.mubr.bf16.mxu0 0
      %584 = vmatmul.mubr.bf16.gmra.mrb[0].mxu0 %v546
      %v585 = vpop.f32.mrb[0].mxu0
      %v586 = vadd.f32 %v528, %v585
      %v587 = vpop.f32.mrb[0].mxu0
      %v588 = vpop.f32.mrb[0].mxu0
      %v589 = vadd.f32 %v533, %v588
      %v590 = vpop.f32.mrb[0].mxu0
      %591 = vmatprep.mubr.bf16.mxu0 0
      %592 = vmatmul.mubr.bf16.gmra.mrb[0].mxu0 %v549
      %v593 = vpop.f32.mrb[0].mxu0
      %v594 = vadd.f32 %v538, %v593
      %v595 = vpop.f32.mrb[0].mxu0
      %v596 = vpop.f32.mrb[0].mxu0
      %v597 = vadd.f32 %v543, %v596
      %v598 = vpop.f32.mrb[0].mxu0
      %599 = vdwg.mxu0
      %v600 = vpack.c.bf16 %v589, %v586
      %v602 = vunpack.c.l.b16 %v600
      %v603 = vunpack.c.h.b16 %v600
      %v604 = vpack.c.b16 %v602, %v602
      %v605 = vpack.c.b16 %v603, %v603
      %608 = vst [vmem:[%s342] sm:$0xf] %v604
      %609 = vst [vmem:[%s342 + $0x4] sm:$0xf] %v605
      %v610 = vpack.c.bf16 %v597, %v594
      %v612 = vunpack.c.l.b16 %v610
      %v613 = vunpack.c.h.b16 %v610
      %v614 = vpack.c.b16 %v612, %v612
      %v615 = vpack.c.b16 %v613, %v613
      %618 = vst [vmem:[%s350] sm:$0xf] %v614
      %619 = vst [vmem:[%s350 + $0x4] sm:$0xf] %v615
      %p620 = scmp.lt.s32.totalorder %s23, 1
      %s621 = scalar_select %p620, %s23, 1
      %p622 = scmp.lt.s32.totalorder %s24, 0
      %s623 = scalar_select %p622, %s24, 0
      %s624 = smul.addr %s621, 4
      %s625 = sadd.s32 %s623, %s624
      %s626 = smul.addr %s625, 4
      %s627 = scalar_lea.vmem %s5, %s626
      %p628 = scmp.lt.s32.totalorder %s23, 1
      %s629 = scalar_select %p628, %s23, 1
      %p630 = scmp.lt.s32.totalorder %s24, 0
      %s631 = scalar_select %p630, %s24, 0
      %s632 = smul.addr %s629, 2
      %s633 = sadd.s32 %s631, %s632
      %s634 = smul.addr %s633, 4
      %s635 = scalar_lea.vmem %s6, %s634
      %p636 = scmp.lt.s32.totalorder %s23, 1
      %s637 = scalar_select %p636, %s23, 1
      %p638 = scmp.lt.s32.totalorder %s24, 0
      %s639 = scalar_select %p638, %s24, 0
      %s640 = smul.addr %s637, 2
      %s641 = sadd.s32 %s639, %s640
      %s642 = smul.addr %s641, 4
      %s643 = scalar_lea.vmem %s7, %s642
      // Predicated region
      $region41: #{decoder_forward.11} parent=39 // pred_check
        %p644 = pneg %p163
      $region42: #{decoder_forward.11} parent=39 // pred_check_branch
        %646 = sbr.rel (%p644) target = $region44
      $region43: #{decoder_forward.11} parent=39 // pred_region
        _
      $region44: #{decoder_forward.11} parent=39 // pred_fallthru
        _
      // Predicated region
      $region45: #{decoder_forward.11} parent=39 // pred_check
        %p647 = pneg %p191
      $region46: #{decoder_forward.11} parent=39 // pred_check_branch
        %649 = sbr.rel (%p647) target = $region48
      $region47: #{decoder_forward.11} parent=39 // pred_region
        _
      $region48: #{decoder_forward.11} parent=39 // pred_fallthru
        _
      // Predicated region
      $region49: #{decoder_forward.11} parent=39 // pred_check
        %p650 = pneg %p219
      $region50: #{decoder_forward.11} parent=39 // pred_check_branch
        %652 = sbr.rel (%p650) target = $region52
      $region51: #{decoder_forward.11} parent=39 // pred_region
        _
      $region52: #{decoder_forward.11} parent=39 // pred_fallthru
        _
    $region40: #{decoder_forward.11} parent=5 // pred_fallthru
      _
    %p653 = scmp.le.s32.totalorder 2, %s14
    // Predicated region
    $region53: #{decoder_forward.11} parent=5 // pred_check
      %p654 = pneg %p653
    $region54: #{decoder_forward.11} parent=5 // pred_check_branch
      %656 = sbr.rel (%p654) target = $region56
    $region55: #{decoder_forward.11} parent=5 // pred_region
      %s657 = ssub.s32 %s14, 2
      // Predicated region
      $region57: #{decoder_forward.11} parent=55 // pred_check
        %p658 = pneg %p169
      $region58: #{decoder_forward.11} parent=55 // pred_check_branch
        %660 = sbr.rel (%p658) target = $region60
      $region59: #{decoder_forward.11} parent=55 // pred_region
        %p661 = scmp.lt.s32.totalorder %s25, 1
        %s662 = scalar_select %p661, %s25, 1
        %p663 = scmp.lt.s32.totalorder %s26, 0
        %s664 = scalar_select %p663, %s26, 0
        %s665 = smul.addr %s662, 4
        %s666 = sadd.s32 %s664, %s665
        %s667 = smul.addr %s666, 4
        %s668 = scalar_lea.vmem %s5, %s667
      $region60: #{decoder_forward.11} parent=55 // pred_fallthru
        _
      // Predicated region
      $region61: #{decoder_forward.11} parent=55 // pred_check
        %p669 = pneg %p197
      $region62: #{decoder_forward.11} parent=55 // pred_check_branch
        %671 = sbr.rel (%p669) target = $region64
      $region63: #{decoder_forward.11} parent=55 // pred_region
        %p672 = scmp.lt.s32.totalorder %s25, 1
        %s673 = scalar_select %p672, %s25, 1
        %p674 = scmp.lt.s32.totalorder %s26, 0
        %s675 = scalar_select %p674, %s26, 0
        %s676 = smul.addr %s673, 2
        %s677 = sadd.s32 %s675, %s676
        %s678 = smul.addr %s677, 4
        %s679 = scalar_lea.vmem %s6, %s678
      $region64: #{decoder_forward.11} parent=55 // pred_fallthru
        _
      // Predicated region
      $region65: #{decoder_forward.11} parent=55 // pred_check
        %p680 = pneg %p225
      $region66: #{decoder_forward.11} parent=55 // pred_check_branch
        %682 = sbr.rel (%p680) target = $region68
      $region67: #{decoder_forward.11} parent=55 // pred_region
        %p683 = scmp.lt.s32.totalorder %s25, 1
        %s684 = scalar_select %p683, %s25, 1
        %p685 = scmp.lt.s32.totalorder %s26, 0
        %s686 = scalar_select %p685, %s26, 0
        %s687 = smul.addr %s684, 2
        %s688 = sadd.s32 %s686, %s687
        %s689 = smul.addr %s688, 4
        %s690 = scalar_lea.vmem %s7, %s689
      $region68: #{decoder_forward.11} parent=55 // pred_fallthru
        _
    $region56: #{decoder_forward.11} parent=5 // pred_fallthru
      _
  $region6: #{decoder_forward.11} parent=0 // loop_footer
    %s18 = sadd.s32 1, %s14
  $region7: #{decoder_forward.11} parent=0 // loop_footer_branch
    %13 = sbr.rel target = $region3
  $region8: #{decoder_forward.11} parent=0 // loop_exit
    _

// kernel: decoder_forward.12
$region0: #{decoder_forward.12}
  #allocation0 [shape = 'u32[]', space=smem, size = 0x4, offset = 0x4, fixed_abs, tag = 'smem constant byte address 0x4 - core index']
  #allocation1 [shape = 'u32[144,128]{1,0:T(1,128)}', space=vmem, size = 0x12000, scoped, tag = 'internal scratch']
  #allocation2 [shape = 'f32[1,128]{1,0:T(1,128)}', space=vmem, size = 0x200, scoped, tag = 'scratch operand']
  #allocation3 [shape = 'f32[1,128]{1,0:T(1,128)}', space=vmem, size = 0x200, scoped, tag = 'scratch operand']
  #allocation4 [shape = 'f32[16,128]{1,0:T(8,128)}', space=vmem, size = 0x2000, scoped, tag = 'scratch operand']
  %s0 = inlined_call_operand.vmem [shape: bf16[2,16,128], index: 0, kind: input, shape index: {}]
  %s1 = inlined_call_operand.vmem [shape: bf16[2,16,128], index: 1, kind: input, shape index: {}]
  %s2 = inlined_call_operand.vmem [shape: bf16[2,2,16,128], index: 2, kind: input, shape index: {}]
  %s3 = inlined_call_operand.vmem [shape: f32[2,128,1], index: 3, kind: input, shape index: {}]
  %s4 = inlined_call_operand.vmem [shape: f32[2,128,1], index: 4, kind: input, shape index: {}]
  %s5 = inlined_call_operand.vmem [shape: bf16[2,16,128], index: 5, kind: output, shape index: {}]
  %s6 = sld [smem:[#allocation0]]
  $region61: #{decoder_forward.12} parent=0
    _
  %s8 = ssub.s32 1, %s6
  %s9 = scalar_select 0, %s8, %s6
  loop: start=0, step=1, limit=4
  $region2: #{decoder_forward.12} parent=0 // loop_pre_header
    _
  $region3: #{decoder_forward.12} parent=0 // loop_header
    %s11 = sphi 0, %s15
    %p12 = scmp.ge.s32.totalorder %s11, 4
    %s18 = sphi 0, %s37
    %s19 = sphi 0, %s33
    %s20 = sphi 0, %s29
    %s21 = sphi 0, %s18
    %s22 = sphi 0, %s19
    %s23 = sphi 0, %s20
    %s24 = sphi 0, %s21
    %s25 = sphi 0, %s22
    %s26 = sphi 0, %s23
    %s42 = sphi 0, %s44
    %s45 = sphi 0, %s42
    %s46 = sphi 0, %s45
    %s62 = sphi 0, %s46
    %s70 = sphi 0, %s72
    %s73 = sphi 0, %s70
    %s74 = sphi 0, %s73
    %s90 = sphi 0, %s74
    %s98 = sphi 0, %s100
    %s101 = sphi 0, %s98
    %s102 = sphi 0, %s101
    %s118 = sphi 0, %s102
    %s126 = sphi 0, %s128
    %s129 = sphi 0, %s126
    %s130 = sphi 0, %s129
    %s146 = sphi 0, %s130
    %s154 = sphi 0, %s156
    %s157 = sphi 0, %s154
    %s158 = sphi 0, %s157
    %s174 = sphi 0, %s158
    %s182 = sphi 0, %s184
    %s185 = sphi 0, %s182
    %s186 = sphi 0, %s185
    %s202 = sphi 0, %s186
  $region4: #{decoder_forward.12} parent=0 // loop_header_branch
    %14 = sbr.rel (%p12) target = $region8
  $region5: #{decoder_forward.12} parent=0 // loop_body
    %s16 = ssub.s32 %s11, 1
    %s17 = ssub.s32 %s11, 2
    %s27 = sadd.s32 1, %s20
    %p28 = scmp.ge.s32.totalorder %s27, 1
    %s29 = scalar_select %p28, 0, %s27
    %s30 = sadd.s32 1, %s19
    %s31 = scalar_select %p28, %s30, %s19
    %p32 = scmp.ge.s32.totalorder %s31, 1
    %s33 = scalar_select %p32, 0, %s31
    %s34 = sadd.s32 1, %s18
    %s35 = scalar_select %p32, %s34, %s18
    %p36 = scmp.ge.s32.totalorder %s35, 2
    %s37 = scalar_select %p36, 0, %s35
    %s38 = ssub.s32 %s18, %s37
    %s39 = ssub.s32 %s19, %s33
    %s40 = sor.u32 %s38, %s39
    %p41 = scmp.eq.s32.totalorder %s40, 0
    %s43 = sadd.s32 %s42, 1
    %s44 = scalar_select %p41, %s42, %s43
    %p47 = pneg %p41
    %p48 = scmp.eq.s32.totalorder %s11, 1
    %p49 = por %p47, %p48
    %p50 = scmp.ne.s32.totalorder %s42, %s45
    %p51 = scmp.eq.s32.totalorder %s11, 0
    %p52 = por %p50, %p51
    %p53 = scmp.ne.s32.totalorder %s42, %s45
    %p54 = scmp.eq.s32.totalorder %s16, 1
    %p55 = por %p53, %p54
    %p56 = scmp.ne.s32.totalorder %s45, %s46
    %p57 = scmp.eq.s32.totalorder %s16, 0
    %p58 = por %p56, %p57
    %p59 = scmp.ne.s32.totalorder %s45, %s46
    %p60 = scmp.eq.s32.totalorder %s17, 1
    %p61 = por %p59, %p60
    %p63 = scmp.ne.s32.totalorder %s46, %s62
    %p64 = scmp.eq.s32.totalorder %s17, 0
    %p65 = por %p63, %p64
    %s66 = ssub.s32 %s18, %s37
    %s67 = ssub.s32 %s20, %s29
    %s68 = sor.u32 %s66, %s67
    %p69 = scmp.eq.s32.totalorder %s68, 0
    %s71 = sadd.s32 %s70, 1
    %s72 = scalar_select %p69, %s70, %s71
    %p75 = pneg %p69
    %p76 = scmp.eq.s32.totalorder %s11, 1
    %p77 = por %p75, %p76
    %p78 = scmp.ne.s32.totalorder %s70, %s73
    %p79 = scmp.eq.s32.totalorder %s11, 0
    %p80 = por %p78, %p79
    %p81 = scmp.ne.s32.totalorder %s70, %s73
    %p82 = scmp.eq.s32.totalorder %s16, 1
    %p83 = por %p81, %p82
    %p84 = scmp.ne.s32.totalorder %s73, %s74
    %p85 = scmp.eq.s32.totalorder %s16, 0
    %p86 = por %p84, %p85
    %p87 = scmp.ne.s32.totalorder %s73, %s74
    %p88 = scmp.eq.s32.totalorder %s17, 1
    %p89 = por %p87, %p88
    %p91 = scmp.ne.s32.totalorder %s74, %s90
    %p92 = scmp.eq.s32.totalorder %s17, 0
    %p93 = por %p91, %p92
    %s94 = ssub.s32 %s18, %s37
    %s95 = ssub.s32 %s20, %s29
    %s96 = sor.u32 %s94, %s95
    %p97 = scmp.eq.s32.totalorder %s96, 0
    %s99 = sadd.s32 %s98, 1
    %s100 = scalar_select %p97, %s98, %s99
    %p103 = pneg %p97
    %p104 = scmp.eq.s32.totalorder %s11, 1
    %p105 = por %p103, %p104
    %p106 = scmp.ne.s32.totalorder %s98, %s101
    %p107 = scmp.eq.s32.totalorder %s11, 0
    %p108 = por %p106, %p107
    %p109 = scmp.ne.s32.totalorder %s98, %s101
    %p110 = scmp.eq.s32.totalorder %s16, 1
    %p111 = por %p109, %p110
    %p112 = scmp.ne.s32.totalorder %s101, %s102
    %p113 = scmp.eq.s32.totalorder %s16, 0
    %p114 = por %p112, %p113
    %p115 = scmp.ne.s32.totalorder %s101, %s102
    %p116 = scmp.eq.s32.totalorder %s17, 1
    %p117 = por %p115, %p116
    %p119 = scmp.ne.s32.totalorder %s102, %s118
    %p120 = scmp.eq.s32.totalorder %s17, 0
    %p121 = por %p119, %p120
    %s122 = ssub.s32 %s18, %s37
    %s123 = ssub.s32 %s20, %s29
    %s124 = sor.u32 %s122, %s123
    %p125 = scmp.eq.s32.totalorder %s124, 0
    %s127 = sadd.s32 %s126, 1
    %s128 = scalar_select %p125, %s126, %s127
    %p131 = pneg %p125
    %p132 = scmp.eq.s32.totalorder %s11, 1
    %p133 = por %p131, %p132
    %p134 = scmp.ne.s32.totalorder %s126, %s129
    %p135 = scmp.eq.s32.totalorder %s11, 0
    %p136 = por %p134, %p135
    %p137 = scmp.ne.s32.totalorder %s126, %s129
    %p138 = scmp.eq.s32.totalorder %s16, 1
    %p139 = por %p137, %p138
    %p140 = scmp.ne.s32.totalorder %s129, %s130
    %p141 = scmp.eq.s32.totalorder %s16, 0
    %p142 = por %p140, %p141
    %p143 = scmp.ne.s32.totalorder %s129, %s130
    %p144 = scmp.eq.s32.totalorder %s17, 1
    %p145 = por %p143, %p144
    %p147 = scmp.ne.s32.totalorder %s130, %s146
    %p148 = scmp.eq.s32.totalorder %s17, 0
    %p149 = por %p147, %p148
    %s150 = ssub.s32 %s18, %s37
    %s151 = ssub.s32 %s20, %s29
    %s152 = sor.u32 %s150, %s151
    %p153 = scmp.eq.s32.totalorder %s152, 0
    %s155 = sadd.s32 %s154, 1
    %s156 = scalar_select %p153, %s154, %s155
    %p159 = pneg %p153
    %p160 = scmp.eq.s32.totalorder %s11, 1
    %p161 = por %p159, %p160
    %p162 = scmp.ne.s32.totalorder %s154, %s157
    %p163 = scmp.eq.s32.totalorder %s11, 0
    %p164 = por %p162, %p163
    %p165 = scmp.ne.s32.totalorder %s154, %s157
    %p166 = scmp.eq.s32.totalorder %s16, 1
    %p167 = por %p165, %p166
    %p168 = scmp.ne.s32.totalorder %s157, %s158
    %p169 = scmp.eq.s32.totalorder %s16, 0
    %p170 = por %p168, %p169
    %p171 = scmp.ne.s32.totalorder %s157, %s158
    %p172 = scmp.eq.s32.totalorder %s17, 1
    %p173 = por %p171, %p172
    %p175 = scmp.ne.s32.totalorder %s158, %s174
    %p176 = scmp.eq.s32.totalorder %s17, 0
    %p177 = por %p175, %p176
    %s178 = ssub.s32 %s18, %s37
    %s179 = ssub.s32 %s19, %s33
    %s180 = sor.u32 %s178, %s179
    %p181 = scmp.eq.s32.totalorder %s180, 0
    %s183 = sadd.s32 %s182, 1
    %s184 = scalar_select %p181, %s182, %s183
    %p187 = pneg %p181
    %p188 = scmp.eq.s32.totalorder %s11, 1
    %p189 = por %p187, %p188
    %p190 = scmp.ne.s32.totalorder %s182, %s185
    %p191 = scmp.eq.s32.totalorder %s11, 0
    %p192 = por %p190, %p191
    %p193 = scmp.ne.s32.totalorder %s182, %s185
    %p194 = scmp.eq.s32.totalorder %s16, 1
    %p195 = por %p193, %p194
    %p196 = scmp.ne.s32.totalorder %s185, %s186
    %p197 = scmp.eq.s32.totalorder %s16, 0
    %p198 = por %p196, %p197
    %p199 = scmp.ne.s32.totalorder %s185, %s186
    %p200 = scmp.eq.s32.totalorder %s17, 1
    %p201 = por %p199, %p200
    %p203 = scmp.ne.s32.totalorder %s186, %s202
    %p204 = scmp.eq.s32.totalorder %s17, 0
    %p205 = por %p203, %p204
    %p206 = scmp.le.s32.totalorder 1, %s11
    %p207 = scmp.lt.s32.totalorder %s11, 3
    %p208 = pnand %p206, %p207
    %p209 = pneg %p208
    // Predicated region
    $region9: #{decoder_forward.12} parent=5 // pred_check
      _
    $region10: #{decoder_forward.12} parent=5 // pred_check_branch
      %211 = sbr.rel (%p208) target = $region12
    $region11: #{decoder_forward.12} parent=5 // pred_region
      %s212 = ssub.s32 %s11, 1
    $region12: #{decoder_forward.12} parent=5 // pred_fallthru
      _
    %p213 = scmp.lt.s32.totalorder %s11, 2
    // Predicated region
    $region13: #{decoder_forward.12} parent=5 // pred_check
      %p214 = pneg %p213
    $region14: #{decoder_forward.12} parent=5 // pred_check_branch
      %216 = sbr.rel (%p214) target = $region16
    $region15: #{decoder_forward.12} parent=5 // pred_region
      // Predicated region
      $region17: #{decoder_forward.12} parent=15 // pred_check
        %p217 = pneg %p52
      $region18: #{decoder_forward.12} parent=15 // pred_check_branch
        %219 = sbr.rel (%p217) target = $region20
      $region19: #{decoder_forward.12} parent=15 // pred_region
        %p220 = scmp.lt.s32.totalorder %s18, 1
        %s221 = scalar_select %p220, %s18, 1
        %p222 = scmp.lt.s32.totalorder %s19, 0
        %s223 = scalar_select %p222, %s19, 0
        %s224 = smul.addr %s221, 2
        %s225 = sadd.s32 %s223, %s224
        %s226 = smul.addr %s225, 4
        %s227 = scalar_lea.vmem %s0, %s226
      $region20: #{decoder_forward.12} parent=15 // pred_fallthru
        _
      // Predicated region
      $region21: #{decoder_forward.12} parent=15 // pred_check
        %p228 = pneg %p80
      $region22: #{decoder_forward.12} parent=15 // pred_check_branch
        %230 = sbr.rel (%p228) target = $region24
      $region23: #{decoder_forward.12} parent=15 // pred_region
        %p231 = scmp.lt.s32.totalorder %s18, 1
        %s232 = scalar_select %p231, %s18, 1
        %p233 = scmp.lt.s32.totalorder %s20, 0
        %s234 = scalar_select %p233, %s20, 0
        %s235 = smul.addr %s232, 2
        %s236 = sadd.s32 %s234, %s235
        %s237 = smul.addr %s236, 4
        %s238 = scalar_lea.vmem %s1, %s237
      $region24: #{decoder_forward.12} parent=15 // pred_fallthru
        _
      // Predicated region
      $region25: #{decoder_forward.12} parent=15 // pred_check
        %p239 = pneg %p108
      $region26: #{decoder_forward.12} parent=15 // pred_check_branch
        %241 = sbr.rel (%p239) target = $region28
      $region27: #{decoder_forward.12} parent=15 // pred_region
        %p242 = scmp.lt.s32.totalorder %s18, 1
        %s243 = scalar_select %p242, %s18, 1
        %p244 = scmp.lt.s32.totalorder %s20, 0
        %s245 = scalar_select %p244, %s20, 0
        %s246 = smul.addr %s243, 4
        %s247 = sadd.s32 %s245, %s246
        %s248 = smul.addr %s247, 4
        %s249 = scalar_lea.vmem %s2, %s248
      $region28: #{decoder_forward.12} parent=15 // pred_fallthru
        _
      // Predicated region
      $region29: #{decoder_forward.12} parent=15 // pred_check
        %p250 = pneg %p136
      $region30: #{decoder_forward.12} parent=15 // pred_check_branch
        %252 = sbr.rel (%p250) target = $region32
      $region31: #{decoder_forward.12} parent=15 // pred_region
        %s253 = smul.u32 16, %s20
        %p254 = scmp.lt.s32.totalorder %s18, 1
        %s255 = scalar_select %p254, %s18, 1
        %p256 = scmp.lt.s32.totalorder %s253, 15
        %s257 = scalar_select %p256, %s253, 15
        %s258 = smul.addr %s255, 16
        %s259 = sadd.s32 %s257, %s258
        %s260 = smul.addr %s259, 8
        %s261 = scalar_lea.vmem %s3, %s260
        %s262 = smul.u32 16, %s20
      $region32: #{decoder_forward.12} parent=15 // pred_fallthru
        _
      // Predicated region
      $region33: #{decoder_forward.12} parent=15 // pred_check
        %p263 = pneg %p164
      $region34: #{decoder_forward.12} parent=15 // pred_check_branch
        %265 = sbr.rel (%p263) target = $region36
      $region35: #{decoder_forward.12} parent=15 // pred_region
        %s266 = smul.u32 16, %s20
        %p267 = scmp.lt.s32.totalorder %s18, 1
        %s268 = scalar_select %p267, %s18, 1
        %p269 = scmp.lt.s32.totalorder %s266, 15
        %s270 = scalar_select %p269, %s266, 15
        %s271 = smul.addr %s268, 16
        %s272 = sadd.s32 %s270, %s271
        %s273 = smul.addr %s272, 8
        %s274 = scalar_lea.vmem %s4, %s273
        %s275 = smul.u32 16, %s20
      $region36: #{decoder_forward.12} parent=15 // pred_fallthru
        _
    $region16: #{decoder_forward.12} parent=5 // pred_fallthru
      _
    %p276 = scmp.le.s32.totalorder 1, %s11
    %p277 = scmp.lt.s32.totalorder %s11, 3
    %p278 = pnand %p276, %p277
    %p279 = pneg %p278
    // Predicated region
    $region37: #{decoder_forward.12} parent=5 // pred_check
      _
    $region38: #{decoder_forward.12} parent=5 // pred_check_branch
      %281 = sbr.rel (%p278) target = $region40
    $region39: #{decoder_forward.12} parent=5 // pred_region
      %s282 = ssub.s32 %s11, 1
      %p283 = scmp.lt.s32.totalorder %s21, 1
      %s284 = scalar_select %p283, %s21, 1
      %p285 = scmp.lt.s32.totalorder %s22, 0
      %s286 = scalar_select %p285, %s22, 0
      %s287 = smul.addr %s284, 2
      %s288 = sadd.s32 %s286, %s287
      %s289 = smul.addr %s288, 4
      %s290 = scalar_lea.vmem %s0, %s289
      %p291 = pneg %p58
      %p292 = pneg %p55
      %p293 = scmp.lt.s32.totalorder %s21, 1
      %s294 = scalar_select %p293, %s21, 1
      %p295 = scmp.lt.s32.totalorder %s23, 0
      %s296 = scalar_select %p295, %s23, 0
      %s297 = smul.addr %s294, 2
      %s298 = sadd.s32 %s296, %s297
      %s299 = smul.addr %s298, 4
      %s300 = scalar_lea.vmem %s1, %s299
      %p301 = pneg %p86
      %p302 = pneg %p83
      %p303 = scmp.lt.s32.totalorder %s21, 1
      %s304 = scalar_select %p303, %s21, 1
      %p305 = scmp.lt.s32.totalorder %s23, 0
      %s306 = scalar_select %p305, %s23, 0
      %s307 = smul.addr %s304, 4
      %s308 = sadd.s32 %s306, %s307
      %s309 = smul.addr %s308, 4
      %s310 = scalar_lea.vmem %s2, %s309
      %p311 = pneg %p114
      %p312 = pneg %p111
      %s313 = smul.u32 16, %s23
      %p314 = scmp.lt.s32.totalorder %s21, 1
      %s315 = scalar_select %p314, %s21, 1
      %p316 = scmp.lt.s32.totalorder %s313, 15
      %s317 = scalar_select %p316, %s313, 15
      %s318 = smul.addr %s315, 16
      %s319 = sadd.s32 %s317, %s318
      %s320 = smul.addr %s319, 8
      %s321 = scalar_lea.vmem %s3, %s320
      %p322 = pneg %p142
      %p323 = pneg %p139
      %s324 = smul.u32 16, %s23
      %p325 = scmp.lt.s32.totalorder %s21, 1
      %s326 = scalar_select %p325, %s21, 1
      %p327 = scmp.lt.s32.totalorder %s324, 15
      %s328 = scalar_select %p327, %s324, 15
      %s329 = smul.addr %s326, 16
      %s330 = sadd.s32 %s328, %s329
      %s331 = smul.addr %s330, 8
      %s332 = scalar_lea.vmem %s4, %s331
      %p333 = pneg %p170
      %p334 = pneg %p167
      %p335 = pneg %p198
      %p336 = pneg %p195
      %p337 = scmp.lt.s32.totalorder %s21, 1
      %s338 = scalar_select %p337, %s21, 1
      %p339 = scmp.lt.s32.totalorder %s22, 0
      %s340 = scalar_select %p339, %s22, 0
      %s341 = smul.addr %s338, 2
      %s342 = sadd.s32 %s340, %s341
      %s343 = smul.addr %s342, 4
      %s344 = scalar_lea.vmem %s5, %s343
      %p345 = scmp.lt.s32.totalorder %s21, 1
      %s346 = scalar_select %p345, %s21, 1
      %p347 = scmp.lt.s32.totalorder %s22, 0
      %s348 = scalar_select %p347, %s22, 0
      %s349 = smul.addr %s346, 2
      %s350 = sadd.s32 %s348, %s349
      %s351 = smul.addr %s350, 4
      %s352 = scalar_lea.vmem %s0, %s351
      %p353 = scmp.lt.s32.totalorder %s21, 1
      %s354 = scalar_select %p353, %s21, 1
      %p355 = scmp.lt.s32.totalorder %s23, 0
      %s356 = scalar_select %p355, %s23, 0
      %s357 = smul.addr %s354, 2
      %s358 = sadd.s32 %s356, %s357
      %s359 = smul.addr %s358, 4
      %s360 = scalar_lea.vmem %s1, %s359
      %p361 = scmp.lt.s32.totalorder %s21, 1
      %s362 = scalar_select %p361, %s21, 1
      %p363 = scmp.lt.s32.totalorder %s23, 0
      %s364 = scalar_select %p363, %s23, 0
      %s365 = smul.addr %s362, 4
      %s366 = sadd.s32 %s364, %s365
      %s367 = smul.addr %s366, 4
      %s368 = scalar_lea.vmem %s2, %s367
      %s369 = smul.u32 16, %s23
      %p370 = scmp.lt.s32.totalorder %s21, 1
      %s371 = scalar_select %p370, %s21, 1
      %p372 = scmp.lt.s32.totalorder %s369, 15
      %s373 = scalar_select %p372, %s369, 15
      %s374 = smul.addr %s371, 16
      %s375 = sadd.s32 %s373, %s374
      %s376 = smul.addr %s375, 8
      %s377 = scalar_lea.vmem %s3, %s376
      %s378 = smul.u32 16, %s23
      %s379 = smul.u32 16, %s23
      %p380 = scmp.lt.s32.totalorder %s21, 1
      %s381 = scalar_select %p380, %s21, 1
      %p382 = scmp.lt.s32.totalorder %s379, 15
      %s383 = scalar_select %p382, %s379, 15
      %s384 = smul.addr %s381, 16
      %s385 = sadd.s32 %s383, %s384
      %s386 = smul.addr %s385, 8
      %s387 = scalar_lea.vmem %s4, %s386
      %s388 = smul.u32 16, %s23
      %p389 = scmp.lt.s32.totalorder %s21, 1
      %s390 = scalar_select %p389, %s21, 1
      %p391 = scmp.lt.s32.totalorder %s22, 0
      %s392 = scalar_select %p391, %s22, 0
      %s393 = smul.addr %s390, 2
      %s394 = sadd.s32 %s392, %s393
      %s395 = smul.addr %s394, 4
      %s396 = scalar_lea.vmem %s5, %s395
      %p398 = scmp.eq.s32.totalorder %s23, 0
      // Predicated region
      $region41: #{decoder_forward.12} parent=39 // pred_check
        %p399 = pneg %p398
      $region42: #{decoder_forward.12} parent=39 // pred_check_branch
        %401 = sbr.rel (%p399) target = $region44
      $region43: #{decoder_forward.12} parent=39 // pred_region
        %402 = vst [vmem:[#allocation2] sm:$0x1] -1e+30
        %403 = vst [vmem:[#allocation3] sm:$0x1] 0.0
        %404 = vst [vmem:[#allocation4] sm:$0xff] 0.0
        %405 = vst [vmem:[#allocation4 + $0x8] sm:$0xff] 0.0
      $region44: #{decoder_forward.12} parent=39 // pred_fallthru
        _
      %v406 = vld [vmem:[%s352] sm:$0xf]
      %v407 = vld [vmem:[%s352 + $0x4] sm:$0xf]
      %v408 = vunpack.c.l.bf16 %v406
      %v409 = vunpack.c.l.bf16 %v407
      %v410 = vld [vmem:[%s360] sm:$0xf]
      %v411 = vld [vmem:[%s360 + $0x4] sm:$0xf]
      %v412 = vunpack.c.l.bf16 %v410
      %v413 = vunpack.c.l.bf16 %v411
      %v414 = vld [vmem:[%s368] sm:$0xf]
      %v415 = vld [vmem:[%s368 + $0x4] sm:$0xf]
      %416 = vxpose.xlu0.b32.start [1/16] %v412, 128
      %417 = vxpose.xlu0.b32.cont [2/16] %v413, 128
      %418 = vxpose.xlu0.b32.cont [3/16] 0.0, 128
      %419 = vxpose.xlu0.b32.cont [4/16] 0.0, 128
      %420 = vxpose.xlu0.b32.cont [5/16] 0.0, 128
      %421 = vxpose.xlu0.b32.cont [6/16] 0.0, 128
      %422 = vxpose.xlu0.b32.cont [7/16] 0.0, 128
      %423 = vxpose.xlu0.b32.cont [8/16] 0.0, 128
      %424 = vxpose.xlu0.b32.cont [9/16] 0.0, 128
      %425 = vxpose.xlu0.b32.cont [10/16] 0.0, 128
      %426 = vxpose.xlu0.b32.cont [11/16] 0.0, 128
      %427 = vxpose.xlu0.b32.cont [12/16] 0.0, 128
      %428 = vxpose.xlu0.b32.cont [13/16] 0.0, 128
      %429 = vxpose.xlu0.b32.cont [14/16] 0.0, 128
      %430 = vxpose.xlu0.b32.cont [15/16] 0.0, 128
      %431 = vxpose.xlu0.b32.end [16/16] 0.0, 128
      %v432 = vpop.trf.xlu0
      %v433 = vpop.trf.xlu0
      %v434 = vpop.trf.xlu0
      %v435 = vpop.trf.xlu0
      %v436 = vpop.trf.xlu0
      %v437 = vpop.trf.xlu0
      %v438 = vpop.trf.xlu0
      %v439 = vpop.trf.xlu0
      %v440 = vpop.trf.xlu0
      %v441 = vpop.trf.xlu0
      %v442 = vpop.trf.xlu0
      %v443 = vpop.trf.xlu0
      %v444 = vpop.trf.xlu0
      %v445 = vpop.trf.xlu0
      %v446 = vpop.trf.xlu0
      %v447 = vpop.trf.xlu0
      %vm448 = vcmask 130048
      %v450 = vsel %vm448, %v432, 0
      %v453 = vsel %vm448, %v433, 0
      %v456 = vsel %vm448, %v434, 0
      %v459 = vsel %vm448, %v435, 0
      %v462 = vsel %vm448, %v436, 0
      %v465 = vsel %vm448, %v437, 0
      %v468 = vsel %vm448, %v438, 0
      %v471 = vsel %vm448, %v439, 0
      %v474 = vsel %vm448, %v440, 0
      %v477 = vsel %vm448, %v441, 0
      %v480 = vsel %vm448, %v442, 0
      %v483 = vsel %vm448, %v443, 0
      %v486 = vsel %vm448, %v444, 0
      %v489 = vsel %vm448, %v445, 0
      %v492 = vsel %vm448, %v446, 0
      %v495 = vsel %vm448, %v447, 0
      %497 = vmatprep.subr.mxu0 0.0
      %498 = vmatpush1.msra.mxu0 %v408
      %499 = vmatprep.subr.mxu0 0.0
      %500 = vmatpush1.msra.mxu0 %v409
      %501 = vmatprep.subr.mxu0 0.0
      %502 = vmatpush1.msra.mxu0 0.0
      %503 = vmatprep.subr.mxu0 0.0
      %504 = vmatpush1.msra.mxu0 0.0
      %505 = vmatprep.subr.mxu0 0.0
      %506 = vmatpush1.msra.mxu0 0.0
      %507 = vmatprep.subr.mxu0 0.0
      %508 = vmatpush1.msra.mxu0 0.0
      %509 = vmatprep.subr.mxu0 0.0
      %510 = vmatpush1.msra.mxu0 0.0
      %511 = vmatprep.subr.mxu0 0.0
      %512 = vmatpush1.msra.mxu0 0.0
      %513 = vmatprep.subr.mxu0 0.0
      %514 = vmatpush1.msra.mxu0 0.0
      %515 = vmatprep.subr.mxu0 0.0
      %516 = vmatpush1.msra.mxu0 0.0
      %517 = vmatprep.subr.mxu0 0.0
      %518 = vmatpush1.msra.mxu0 0.0
      %519 = vmatprep.subr.mxu0 0.0
      %520 = vmatpush1.msra.mxu0 0.0
      %521 = vmatprep.subr.mxu0 0.0
      %522 = vmatpush1.msra.mxu0 0.0
      %523 = vmatprep.subr.mxu0 0.0
      %524 = vmatpush1.msra.mxu0 0.0
      %525 = vmatprep.subr.mxu0 0.0
      %526 = vmatpush1.msra.mxu0 0.0
      %527 = vmatprep.subr.mxu0 0.0
      %528 = vmatpush1.msra.mxu0 0.0
      %529 = vmatprep.subr.mxu0 0.0
      %530 = vmatpush1.msra.mxu0 0.0
      %531 = vmatprep.subr.mxu0 0.0
      %532 = vmatpush1.msra.mxu0 0.0
      %533 = vmatprep.subr.mxu0 0.0
      %534 = vmatpush1.msra.mxu0 0.0
      %535 = vmatprep.subr.mxu0 0.0
      %536 = vmatpush1.msra.mxu0 0.0
      %537 = vmatprep.subr.mxu0 0.0
      %538 = vmatpush1.msra.mxu0 0.0
      %539 = vmatprep.subr.mxu0 0.0
      %540 = vmatpush1.msra.mxu0 0.0
      %541 = vmatprep.subr.mxu0 0.0
      %542 = vmatpush1.msra.mxu0 0.0
      %543 = vmatprep.subr.mxu0 0.0
      %544 = vmatpush1.msra.mxu0 0.0
      %545 = vmatprep.subr.mxu0 0.0
      %546 = vmatpush1.msra.mxu0 0.0
      %547 = vmatprep.subr.mxu0 0.0
      %548 = vmatpush1.msra.mxu0 0.0
      %549 = vmatprep.subr.mxu0 0.0
      %550 = vmatpush1.msra.mxu0 0.0
      %551 = vmatprep.subr.mxu0 0.0
      %552 = vmatpush1.msra.mxu0 0.0
      %553 = vmatprep.subr.mxu0 0.0
      %554 = vmatpush1.msra.mxu0 0.0
      %555 = vmatprep.subr.mxu0 0.0
      %556 = vmatpush1.msra.mxu0 0.0
      %557 = vmatprep.subr.mxu0 0.0
      %558 = vmatpush1.msra.mxu0 0.0
      %559 = vmatprep.subr.mxu0 0.0
      %560 = vmatpush1.msra.mxu0 0.0
      %561 = vmatprep.mubr.f32.mxu0 0.0
      %562 = vmatmul.mubr.f32.gmra.mrb[0].mxu0 %v450
      %v563 = vpop.f32.mrb[0].mxu0
      %v564 = vadd.f32 0.0, %v563
      %v565 = vpop.f32.mrb[0].mxu0
      %566 = vmatprep.mubr.f32.mxu0 0.0
      %567 = vmatmul.mubr.f32.gmra.mrb[0].mxu0 %v453
      %v568 = vpop.f32.mrb[0].mxu0
      %v569 = vadd.f32 0.0, %v568
      %v570 = vpop.f32.mrb[0].mxu0
      %571 = vmatprep.mubr.f32.mxu0 0.0
      %572 = vmatmul.mubr.f32.gmra.mrb[0].mxu0 %v456
      %v573 = vpop.f32.mrb[0].mxu0
      %v574 = vadd.f32 0.0, %v573
      %v575 = vpop.f32.mrb[0].mxu0
      %576 = vmatprep.mubr.f32.mxu0 0.0
      %577 = vmatmul.mubr.f32.gmra.mrb[0].mxu0 %v459
      %v578 = vpop.f32.mrb[0].mxu0
      %v579 = vadd.f32 0.0, %v578
      %v580 = vpop.f32.mrb[0].mxu0
      %581 = vmatprep.mubr.f32.mxu0 0.0
      %582 = vmatmul.mubr.f32.gmra.mrb[0].mxu0 %v462
      %v583 = vpop.f32.mrb[0].mxu0
      %v584 = vadd.f32 0.0, %v583
      %v585 = vpop.f32.mrb[0].mxu0
      %586 = vmatprep.mubr.f32.mxu0 0.0
      %587 = vmatmul.mubr.f32.gmra.mrb[0].mxu0 %v465
      %v588 = vpop.f32.mrb[0].mxu0
      %v589 = vadd.f32 0.0, %v588
      %v590 = vpop.f32.mrb[0].mxu0
      %591 = vmatprep.mubr.f32.mxu0 0.0
      %592 = vmatmul.mubr.f32.gmra.mrb[0].mxu0 %v468
      %v593 = vpop.f32.mrb[0].mxu0
      %v594 = vadd.f32 0.0, %v593
      %v595 = vpop.f32.mrb[0].mxu0
      %596 = vmatprep.mubr.f32.mxu0 0.0
      %597 = vmatmul.mubr.f32.gmra.mrb[0].mxu0 %v471
      %v598 = vpop.f32.mrb[0].mxu0
      %v599 = vadd.f32 0.0, %v598
      %v600 = vpop.f32.mrb[0].mxu0
      %601 = vmatprep.mubr.f32.mxu0 0.0
      %602 = vmatmul.mubr.f32.gmra.mrb[0].mxu0 %v474
      %v603 = vpop.f32.mrb[0].mxu0
      %v604 = vadd.f32 0.0, %v603
      %v605 = vpop.f32.mrb[0].mxu0
      %606 = vmatprep.mubr.f32.mxu0 0.0
      %607 = vmatmul.mubr.f32.gmra.mrb[0].mxu0 %v477
      %v608 = vpop.f32.mrb[0].mxu0
      %v609 = vadd.f32 0.0, %v608
      %v610 = vpop.f32.mrb[0].mxu0
      %611 = vmatprep.mubr.f32.mxu0 0.0
      %612 = vmatmul.mubr.f32.gmra.mrb[0].mxu0 %v480
      %v613 = vpop.f32.mrb[0].mxu0
      %v614 = vadd.f32 0.0, %v613
      %v615 = vpop.f32.mrb[0].mxu0
      %616 = vmatprep.mubr.f32.mxu0 0.0
      %617 = vmatmul.mubr.f32.gmra.mrb[0].mxu0 %v483
      %v618 = vpop.f32.mrb[0].mxu0
      %v619 = vadd.f32 0.0, %v618
      %v620 = vpop.f32.mrb[0].mxu0
      %621 = vmatprep.mubr.f32.mxu0 0.0
      %622 = vmatmul.mubr.f32.gmra.mrb[0].mxu0 %v486
      %v623 = vpop.f32.mrb[0].mxu0
      %v624 = vadd.f32 0.0, %v623
      %v625 = vpop.f32.mrb[0].mxu0
      %626 = vmatprep.mubr.f32.mxu0 0.0
      %627 = vmatmul.mubr.f32.gmra.mrb[0].mxu0 %v489
      %v628 = vpop.f32.mrb[0].mxu0
      %v629 = vadd.f32 0.0, %v628
      %v630 = vpop.f32.mrb[0].mxu0
      %631 = vmatprep.mubr.f32.mxu0 0.0
      %632 = vmatmul.mubr.f32.gmra.mrb[0].mxu0 %v492
      %v633 = vpop.f32.mrb[0].mxu0
      %v634 = vadd.f32 0.0, %v633
      %v635 = vpop.f32.mrb[0].mxu0
      %636 = vmatprep.mubr.f32.mxu0 0.0
      %637 = vmatmul.mubr.f32.gmra.mrb[0].mxu0 %v495
      %v638 = vpop.f32.mrb[0].mxu0
      %v639 = vadd.f32 0.0, %v638
      %v640 = vpop.f32.mrb[0].mxu0
      %641 = vdwg.mxu0
      %v642 = vld [vmem:[%s377] sm:$0xff]
      %v643 = vld [vmem:[%s377 + $0x8] sm:$0xff]
      %v644 = vld [vmem:[%s377 + $0x10] sm:$0xff]
      %v645 = vld [vmem:[%s377 + $0x18] sm:$0xff]
      %v646 = vld [vmem:[%s377 + $0x20] sm:$0xff]
      %v647 = vld [vmem:[%s377 + $0x28] sm:$0xff]
      %v648 = vld [vmem:[%s377 + $0x30] sm:$0xff]
      %v649 = vld [vmem:[%s377 + $0x38] sm:$0xff]
      %v650 = vld [vmem:[%s377 + $0x40] sm:$0xff]
      %v651 = vld [vmem:[%s377 + $0x48] sm:$0xff]
      %v652 = vld [vmem:[%s377 + $0x50] sm:$0xff]
      %v653 = vld [vmem:[%s377 + $0x58] sm:$0xff]
      %v654 = vld [vmem:[%s377 + $0x60] sm:$0xff]
      %v655 = vld [vmem:[%s377 + $0x68] sm:$0xff]
      %v656 = vld [vmem:[%s377 + $0x70] sm:$0xff]
      %v657 = vld [vmem:[%s377 + $0x78] sm:$0xff]
      %659 = vset.pattern.permute.xlu0 0
      %660 = vperm.xlu0 %659, %v642
      %v661 = vpop.permute.xlu0 %660
      %664 = vset.pattern.permute.xlu0 0
      %665 = vperm.xlu0 %664, %v643
      %v666 = vpop.permute.xlu0 %665
      %669 = vset.pattern.permute.xlu0 0
      %670 = vperm.xlu0 %669, %v644
      %v671 = vpop.permute.xlu0 %670
      %674 = vset.pattern.permute.xlu0 0
      %675 = vperm.xlu0 %674, %v645
      %v676 = vpop.permute.xlu0 %675
      %679 = vset.pattern.permute.xlu0 0
      %680 = vperm.xlu0 %679, %v646
      %v681 = vpop.permute.xlu0 %680
      %684 = vset.pattern.permute.xlu0 0
      %685 = vperm.xlu0 %684, %v647
      %v686 = vpop.permute.xlu0 %685
      %689 = vset.pattern.permute.xlu0 0
      %690 = vperm.xlu0 %689, %v648
      %v691 = vpop.permute.xlu0 %690
      %694 = vset.pattern.permute.xlu0 0
      %695 = vperm.xlu0 %694, %v649
      %v696 = vpop.permute.xlu0 %695
      %699 = vset.pattern.permute.xlu0 0
      %700 = vperm.xlu0 %699, %v650
      %v701 = vpop.permute.xlu0 %700
      %704 = vset.pattern.permute.xlu0 0
      %705 = vperm.xlu0 %704, %v651
      %v706 = vpop.permute.xlu0 %705
      %709 = vset.pattern.permute.xlu0 0
      %710 = vperm.xlu0 %709, %v652
      %v711 = vpop.permute.xlu0 %710
      %714 = vset.pattern.permute.xlu0 0
      %715 = vperm.xlu0 %714, %v653
      %v716 = vpop.permute.xlu0 %715
      %719 = vset.pattern.permute.xlu0 0
      %720 = vperm.xlu0 %719, %v654
      %v721 = vpop.permute.xlu0 %720
      %724 = vset.pattern.permute.xlu0 0
      %725 = vperm.xlu0 %724, %v655
      %v726 = vpop.permute.xlu0 %725
      %729 = vset.pattern.permute.xlu0 0
      %730 = vperm.xlu0 %729, %v656
      %v731 = vpop.permute.xlu0 %730
      %734 = vset.pattern.permute.xlu0 0
      %735 = vperm.xlu0 %734, %v657
      %v736 = vpop.permute.xlu0 %735
      %v738 = vmul.f32 %v564, %v661
      %v739 = vmul.f32 %v569, %v666
      %v740 = vmul.f32 %v574, %v671
      %v741 = vmul.f32 %v579, %v676
      %v742 = vmul.f32 %v584, %v681
      %v743 = vmul.f32 %v589, %v686
      %v744 = vmul.f32 %v594, %v691
      %v745 = vmul.f32 %v599, %v696
      %v746 = vmul.f32 %v604, %v701
      %v747 = vmul.f32 %v609, %v706
      %v748 = vmul.f32 %v614, %v711
      %v749 = vmul.f32 %v619, %v716
      %v750 = vmul.f32 %v624, %v721
      %v751 = vmul.f32 %v629, %v726
      %v752 = vmul.f32 %v634, %v731
      %v753 = vmul.f32 %v639, %v736
      %v754 = vld [vmem:[%s387] sm:$0xff]
      %v755 = vld [vmem:[%s387 + $0x8] sm:$0xff]
      %v756 = vld [vmem:[%s387 + $0x10] sm:$0xff]
      %v757 = vld [vmem:[%s387 + $0x18] sm:$0xff]
      %v758 = vld [vmem:[%s387 + $0x20] sm:$0xff]
      %v759 = vld [vmem:[%s387 + $0x28] sm:$0xff]
      %v760 = vld [vmem:[%s387 + $0x30] sm:$0xff]
      %v761 = vld [vmem:[%s387 + $0x38] sm:$0xff]
      %v762 = vld [vmem:[%s387 + $0x40] sm:$0xff]
      %v763 = vld [vmem:[%s387 + $0x48] sm:$0xff]
      %v764 = vld [vmem:[%s387 + $0x50] sm:$0xff]
      %v765 = vld [vmem:[%s387 + $0x58] sm:$0xff]
      %v766 = vld [vmem:[%s387 + $0x60] sm:$0xff]
      %v767 = vld [vmem:[%s387 + $0x68] sm:$0xff]
      %v768 = vld [vmem:[%s387 + $0x70] sm:$0xff]
      %v769 = vld [vmem:[%s387 + $0x78] sm:$0xff]
      %771 = vset.pattern.permute.xlu0 0
      %772 = vperm.xlu0 %771, %v754
      %v773 = vpop.permute.xlu0 %772
      %776 = vset.pattern.permute.xlu0 0
      %777 = vperm.xlu0 %776, %v755
      %v778 = vpop.permute.xlu0 %777
      %781 = vset.pattern.permute.xlu0 0
      %782 = vperm.xlu0 %781, %v756
      %v783 = vpop.permute.xlu0 %782
      %786 = vset.pattern.permute.xlu0 0
      %787 = vperm.xlu0 %786, %v757
      %v788 = vpop.permute.xlu0 %787
      %791 = vset.pattern.permute.xlu0 0
      %792 = vperm.xlu0 %791, %v758
      %v793 = vpop.permute.xlu0 %792
      %796 = vset.pattern.permute.xlu0 0
      %797 = vperm.xlu0 %796, %v759
      %v798 = vpop.permute.xlu0 %797
      %801 = vset.pattern.permute.xlu0 0
      %802 = vperm.xlu0 %801, %v760
      %v803 = vpop.permute.xlu0 %802
      %806 = vset.pattern.permute.xlu0 0
      %807 = vperm.xlu0 %806, %v761
      %v808 = vpop.permute.xlu0 %807
      %811 = vset.pattern.permute.xlu0 0
      %812 = vperm.xlu0 %811, %v762
      %v813 = vpop.permute.xlu0 %812
      %816 = vset.pattern.permute.xlu0 0
      %817 = vperm.xlu0 %816, %v763
      %v818 = vpop.permute.xlu0 %817
      %821 = vset.pattern.permute.xlu0 0
      %822 = vperm.xlu0 %821, %v764
      %v823 = vpop.permute.xlu0 %822
      %826 = vset.pattern.permute.xlu0 0
      %827 = vperm.xlu0 %826, %v765
      %v828 = vpop.permute.xlu0 %827
      %831 = vset.pattern.permute.xlu0 0
      %832 = vperm.xlu0 %831, %v766
      %v833 = vpop.permute.xlu0 %832
      %836 = vset.pattern.permute.xlu0 0
      %837 = vperm.xlu0 %836, %v767
      %v838 = vpop.permute.xlu0 %837
      %841 = vset.pattern.permute.xlu0 0
      %842 = vperm.xlu0 %841, %v768
      %v843 = vpop.permute.xlu0 %842
      %846 = vset.pattern.permute.xlu0 0
      %847 = vperm.xlu0 %846, %v769
      %v848 = vpop.permute.xlu0 %847
      %v850 = vadd.f32 %v738, %v773
      %v851 = vadd.f32 %v739, %v778
      %v852 = vadd.f32 %v740, %v783
      %v853 = vadd.f32 %v741, %v788
      %v854 = vadd.f32 %v742, %v793
      %v855 = vadd.f32 %v743, %v798
      %v856 = vadd.f32 %v744, %v803
      %v857 = vadd.f32 %v745, %v808
      %v858 = vadd.f32 %v746, %v813
      %v859 = vadd.f32 %v747, %v818
      %v860 = vadd.f32 %v748, %v823
      %v861 = vadd.f32 %v749, %v828
      %v862 = vadd.f32 %v750, %v833
      %v863 = vadd.f32 %v751, %v838
      %v864 = vadd.f32 %v752, %v843
      %v865 = vadd.f32 %v753, %v848
      %v866 = vld [vmem:[#allocation2] sm:$0x1]
      %v867 = vmax.f32 %v850, %v854
      %v868 = vmax.f32 %v851, %v855
      %v869 = vmax.f32 %v852, %v856
      %v870 = vmax.f32 %v853, %v857
      %v871 = vmax.f32 %v867, %v858
      %v872 = vmax.f32 %v868, %v859
      %v873 = vmax.f32 %v869, %v860
      %v874 = vmax.f32 %v870, %v861
      %v875 = vmax.f32 %v871, %v862
      %v876 = vmax.f32 %v872, %v863
      %v877 = vmax.f32 %v873, %v864
      %v878 = vmax.f32 %v874, %v865
      %v879 = vmax.f32 %v875, %v876
      %v880 = vmax.f32 %v877, %v878
      %v881 = vmax.f32 %v879, %v880
      %v882 = vrot.slane %v881, 4
      %v883 = vmax.f32 %v881, %v882
      %v884 = vrot.slane %v883, 2
      %v885 = vmax.f32 %v883, %v884
      %v886 = vrot.slane %v885, 1
      %v887 = vmax.f32 %v885, %v886
      %v888 = vmax.f32 %v866, %v887
      %v889 = vsub.f32 %v866, %v888
      %v890 = vmul.f32 %v889, 1.442695
      %v891 = vpow.pop %v890
      %v893 = vlaneseq
      %v894 = vshrl.u32 %v893, 7
      %v895 = vsub.s32 0, %v894
      %v896 = vrot.slane %v888, %v895
      %v898 = vsub.f32 %v850, %v896
      %v899 = vsub.f32 %v851, %v896
      %v900 = vsub.f32 %v852, %v896
      %v901 = vsub.f32 %v853, %v896
      %v902 = vsub.f32 %v854, %v896
      %v903 = vsub.f32 %v855, %v896
      %v904 = vsub.f32 %v856, %v896
      %v905 = vsub.f32 %v857, %v896
      %v906 = vsub.f32 %v858, %v896
      %v907 = vsub.f32 %v859, %v896
      %v908 = vsub.f32 %v860, %v896
      %v909 = vsub.f32 %v861, %v896
      %v910 = vsub.f32 %v862, %v896
      %v911 = vsub.f32 %v863, %v896
      %v912 = vsub.f32 %v864, %v896
      %v913 = vsub.f32 %v865, %v896
      %v914 = vmul.f32 %v898, 1.442695
      %v915 = vpow.pop %v914
      %v916 = vmul.f32 %v899, 1.442695
      %v917 = vpow.pop %v916
      %v918 = vmul.f32 %v900, 1.442695
      %v919 = vpow.pop %v918
      %v920 = vmul.f32 %v901, 1.442695
      %v921 = vpow.pop %v920
      %v922 = vmul.f32 %v902, 1.442695
      %v923 = vpow.pop %v922
      %v924 = vmul.f32 %v903, 1.442695
      %v925 = vpow.pop %v924
      %v926 = vmul.f32 %v904, 1.442695
      %v927 = vpow.pop %v926
      %v928 = vmul.f32 %v905, 1.442695
      %v929 = vpow.pop %v928
      %v930 = vmul.f32 %v906, 1.442695
      %v931 = vpow.pop %v930
      %v932 = vmul.f32 %v907, 1.442695
      %v933 = vpow.pop %v932
      %v934 = vmul.f32 %v908, 1.442695
      %v935 = vpow.pop %v934
      %v936 = vmul.f32 %v909, 1.442695
      %v937 = vpow.pop %v936
      %v938 = vmul.f32 %v910, 1.442695
      %v939 = vpow.pop %v938
      %v940 = vmul.f32 %v911, 1.442695
      %v941 = vpow.pop %v940
      %v942 = vmul.f32 %v912, 1.442695
      %v943 = vpow.pop %v942
      %v944 = vmul.f32 %v913, 1.442695
      %v945 = vpow.pop %v944
      %v946 = vld [vmem:[#allocation3] sm:$0x1]
      %v947 = vmul.f32 %v891, %v946
      %v948 = vadd.f32 %v915, %v917
      %v949 = vadd.f32 %v948, %v919
      %v950 = vadd.f32 %v949, %v921
      %v951 = vadd.f32 %v950, %v923
      %v952 = vadd.f32 %v951, %v925
      %v953 = vadd.f32 %v952, %v927
      %v954 = vadd.f32 %v953, %v929
      %v955 = vadd.f32 %v954, %v931
      %v956 = vadd.f32 %v955, %v933
      %v957 = vadd.f32 %v956, %v935
      %v958 = vadd.f32 %v957, %v937
      %v959 = vadd.f32 %v958, %v939
      %v960 = vadd.f32 %v959, %v941
      %v961 = vadd.f32 %v960, %v943
      %v962 = vadd.f32 %v961, %v945
      %v963 = vrot.slane %v962, 4
      %v964 = vadd.f32 %v962, %v963
      %v965 = vrot.slane %v964, 2
      %v966 = vadd.f32 %v964, %v965
      %v967 = vrot.slane %v966, 1
      %v968 = vadd.f32 %v966, %v967
      %v969 = vadd.f32 %v947, %v968
      %970 = vst [vmem:[#allocation3] sm:$0x1] %v969
      %v971 = vld [vmem:[#allocation4] sm:$0xff]
      %v972 = vld [vmem:[#allocation4 + $0x8] sm:$0xff]
      %v974 = vlaneseq
      %v975 = vshrl.u32 %v974, 7
      %v976 = vsub.s32 0, %v975
      %v977 = vrot.slane %v891, %v976
      %v979 = vmul.f32 %v977, %v971
      %v980 = vmul.f32 %v977, %v972
      %v981 = vpack.c.bf16 %v917, %v915
      %v982 = vpack.c.bf16 %v921, %v919
      %v983 = vpack.c.bf16 %v925, %v923
      %v984 = vpack.c.bf16 %v929, %v927
      %v985 = vpack.c.bf16 %v933, %v931
      %v986 = vpack.c.bf16 %v937, %v935
      %v987 = vpack.c.bf16 %v941, %v939
      %v988 = vpack.c.bf16 %v945, %v943
      %v991 = vunpack.c.l.b16 %v414
      %v992 = vunpack.c.l.b16 %v415
      %v993 = vpack.c.b16 %v992, %v991
      %995 = vmatprep.subr.bf16.mxu0 0
      %996 = vmatpush1.bf16.msra.mxu0 %v981
      %997 = vmatprep.subr.bf16.mxu0 0
      %998 = vmatpush1.bf16.msra.mxu0 %v982
      %999 = vmatprep.subr.bf16.mxu0 0
      %1000 = vmatpush1.bf16.msra.mxu0 %v983
      %1001 = vmatprep.subr.bf16.mxu0 0
      %1002 = vmatpush1.bf16.msra.mxu0 %v984
      %1003 = vmatprep.subr.bf16.mxu0 0
      %1004 = vmatpush1.bf16.msra.mxu0 %v985
      %1005 = vmatprep.subr.bf16.mxu0 0
      %1006 = vmatpush1.bf16.msra.mxu0 %v986
      %1007 = vmatprep.subr.bf16.mxu0 0
      %1008 = vmatpush1.bf16.msra.mxu0 %v987
      %1009 = vmatprep.subr.bf16.mxu0 0
      %1010 = vmatpush1.bf16.msra.mxu0 %v988
      %1011 = vmatprep.subr.bf16.mxu0 0
      %1012 = vmatpush1.bf16.msra.mxu0 0
      %1013 = vmatprep.subr.bf16.mxu0 0
      %1014 = vmatpush1.bf16.msra.mxu0 0
      %1015 = vmatprep.subr.bf16.mxu0 0
      %1016 = vmatpush1.bf16.msra.mxu0 0
      %1017 = vmatprep.subr.bf16.mxu0 0
      %1018 = vmatpush1.bf16.msra.mxu0 0
      %1019 = vmatprep.subr.bf16.mxu0 0
      %1020 = vmatpush1.bf16.msra.mxu0 0
      %1021 = vmatprep.subr.bf16.mxu0 0
      %1022 = vmatpush1.bf16.msra.mxu0 0
      %1023 = vmatprep.subr.bf16.mxu0 0
      %1024 = vmatpush1.bf16.msra.mxu0 0
      %1025 = vmatprep.subr.bf16.mxu0 0
      %1026 = vmatpush1.bf16.msra.mxu0 0
      %1027 = vmatprep.mubr.bf16.mxu0 0
      %1028 = vmatmul.mubr.bf16.gmra.mrb[0].mxu0 %v993
      %v1029 = vpop.f32.mrb[0].mxu0
      %v1030 = vadd.f32 0.0, %v1029
      %v1031 = vpop.f32.mrb[0].mxu0
      %v1032 = vpop.f32.mrb[0].mxu0
      %v1033 = vadd.f32 0.0, %v1032
      %v1034 = vpop.f32.mrb[0].mxu0
      %1035 = vdwg.mxu0
      %v1036 = vadd.f32 %v979, %v1030
      %v1037 = vadd.f32 %v980, %v1033
      %1038 = vst [vmem:[#allocation4] sm:$0xff] %v1036
      %1039 = vst [vmem:[#allocation4 + $0x8] sm:$0xff] %v1037
      %1040 = vst [vmem:[#allocation2] sm:$0x1] %v888
      // Predicated region
      $region45: #{decoder_forward.12} parent=39 // pred_check
        %p1041 = pneg %p398
      $region46: #{decoder_forward.12} parent=39 // pred_check_branch
        %1043 = sbr.rel (%p1041) target = $region48
      $region47: #{decoder_forward.12} parent=39 // pred_region
        %v1044 = vld [vmem:[#allocation3] sm:$0x1]
        %v1045 = vrcp.pop %v1044
        %v1046 = vld [vmem:[#allocation4] sm:$0xff]
        %v1047 = vld [vmem:[#allocation4 + $0x8] sm:$0xff]
        %v1049 = vlaneseq
        %v1050 = vshrl.u32 %v1049, 7
        %v1051 = vsub.s32 0, %v1050
        %v1052 = vrot.slane %v1045, %v1051
        %v1054 = vmul.f32 %v1046, %v1052
        %v1055 = vmul.f32 %v1047, %v1052
        %v1056 = vmax.f32 %v1054, 0.0
        %v1057 = vmax.f32 %v1055, 0.0
        %v1058 = vpack.c.bf16 %v1057, %v1056
        %v1060 = vunpack.c.l.b16 %v1058
        %v1061 = vunpack.c.h.b16 %v1058
        %v1062 = vpack.c.b16 %v1060, %v1060
        %v1063 = vpack.c.b16 %v1061, %v1061
        %1066 = vst [vmem:[%s396] sm:$0xf] %v1062
        %1067 = vst [vmem:[%s396 + $0x4] sm:$0xf] %v1063
      $region48: #{decoder_forward.12} parent=39 // pred_fallthru
        _
      %p1068 = scmp.lt.s32.totalorder %s21, 1
      %s1069 = scalar_select %p1068, %s21, 1
      %p1070 = scmp.lt.s32.totalorder %s22, 0
      %s1071 = scalar_select %p1070, %s22, 0
      %s1072 = smul.addr %s1069, 2
      %s1073 = sadd.s32 %s1071, %s1072
      %s1074 = smul.addr %s1073, 4
      %s1075 = scalar_lea.vmem %s5, %s1074
      // Predicated region
      $region49: #{decoder_forward.12} parent=39 // pred_check
        %p1076 = pneg %p195
      $region50: #{decoder_forward.12} parent=39 // pred_check_branch
        %1078 = sbr.rel (%p1076) target = $region52
      $region51: #{decoder_forward.12} parent=39 // pred_region
        _
      $region52: #{decoder_forward.12} parent=39 // pred_fallthru
        _
    $region40: #{decoder_forward.12} parent=5 // pred_fallthru
      _
    %p1079 = scmp.le.s32.totalorder 2, %s11
    // Predicated region
    $region53: #{decoder_forward.12} parent=5 // pred_check
      %p1080 = pneg %p1079
    $region54: #{decoder_forward.12} parent=5 // pred_check_branch
      %1082 = sbr.rel (%p1080) target = $region56
    $region55: #{decoder_forward.12} parent=5 // pred_region
      %s1083 = ssub.s32 %s11, 2
      // Predicated region
      $region57: #{decoder_forward.12} parent=55 // pred_check
        %p1084 = pneg %p201
      $region58: #{decoder_forward.12} parent=55 // pred_check_branch
        %1086 = sbr.rel (%p1084) target = $region60
      $region59: #{decoder_forward.12} parent=55 // pred_region
        %p1087 = scmp.lt.s32.totalorder %s24, 1
        %s1088 = scalar_select %p1087, %s24, 1
        %p1089 = scmp.lt.s32.totalorder %s25, 0
        %s1090 = scalar_select %p1089, %s25, 0
        %s1091 = smul.addr %s1088, 2
        %s1092 = sadd.s32 %s1090, %s1091
        %s1093 = smul.addr %s1092, 4
        %s1094 = scalar_lea.vmem %s5, %s1093
      $region60: #{decoder_forward.12} parent=55 // pred_fallthru
        _
    $region56: #{decoder_forward.12} parent=5 // pred_fallthru
      _
  $region6: #{decoder_forward.12} parent=0 // loop_footer
    %s15 = sadd.s32 1, %s11
  $region7: #{decoder_forward.12} parent=0 // loop_footer_branch
    %10 = sbr.rel target = $region3
  $region8: #{decoder_forward.12} parent=0 // loop_exit
    _

// kernel: decoder_forward.17
$region0: #{decoder_forward.17}
  #allocation0 [shape = 'u32[]', space=smem, size = 0x4, offset = 0x4, fixed_abs, tag = 'smem constant byte address 0x4 - core index']
  #allocation1 [shape = 'u32[144,128]{1,0:T(1,128)}', space=vmem, size = 0x12000, scoped, tag = 'internal scratch']
  %s0 = inlined_call_operand.vmem [shape: bf16[2,32,128], index: 0, kind: input, shape index: {}]
  %s1 = inlined_call_operand.vmem [shape: f32[8,32], index: 1, kind: input, shape index: {}]
  %s2 = inlined_call_operand.vmem [shape: f32[8,1], index: 2, kind: input, shape index: {}]
  %s3 = inlined_call_operand.vmem [shape: f32[2,1,128], index: 3, kind: input, shape index: {}]
  %s4 = inlined_call_operand.hbm [shape: f32[2,8,128], index: 4, kind: output, shape index: {}]
  %s5 = sld [smem:[#allocation0]]
  $region49: #{decoder_forward.17} parent=0
    _
  %s7 = ssub.s32 1, %s5
  %s8 = scalar_select 0, %s7, %s5
  $region1: #{decoder_forward.17} parent=0
    #allocation2 [shape = 'u8[8192]{0}', space=vmem, size = 0x2000, scoped, tag = 'output window, operand 0']
    #allocation3 [shape = 's32[2]{0}', space=sflag, size = 0x8, scoped, tag = 'scoped memory for decoder_forward.17']
    %9 = vsyncpa [#allocation3], 0
    %s10 = scalar_lea.sflag [#allocation3], 1
    %11 = vsyncpa %s10, 0
    loop: start=0, step=1, limit=4
    $region2: #{decoder_forward.17} parent=1 // loop_pre_header
      _
    $region3: #{decoder_forward.17} parent=1 // loop_header
      %s13 = sphi 0, %s17
      %p14 = scmp.ge.s32.totalorder %s13, 4
      %s20 = sphi 0, %s32
      %s21 = sphi 0, %s28
      %s22 = sphi 0, %s20
      %s23 = sphi 0, %s21
      %s24 = sphi 0, %s22
      %s25 = sphi 0, %s23
      %s37 = sphi 0, %s39
      %s40 = sphi 0, %s37
      %s41 = sphi 0, %s40
      %s57 = sphi 0, %s41
      %s61 = sphi 0, %s61
      %s63 = sphi 0, %s61
      %s64 = sphi 0, %s63
      %s78 = sphi 0, %s64
      %s82 = sphi 0, %s82
      %s84 = sphi 0, %s82
      %s85 = sphi 0, %s84
      %s99 = sphi 0, %s85
      %s107 = sphi 0, %s109
      %s110 = sphi 0, %s107
      %s111 = sphi 0, %s110
      %s127 = sphi 0, %s111
      %s135 = sphi 0, %s137
      %s138 = sphi 0, %s135
      %s139 = sphi 0, %s138
      %s155 = sphi 0, %s139
    $region4: #{decoder_forward.17} parent=1 // loop_header_branch
      %16 = sbr.rel (%p14) target = $region8
    $region5: #{decoder_forward.17} parent=1 // loop_body
      %s18 = ssub.s32 %s13, 1
      %s19 = ssub.s32 %s13, 2
      %s26 = sadd.s32 1, %s21
      %p27 = scmp.ge.s32.totalorder %s26, 1
      %s28 = scalar_select %p27, 0, %s26
      %s29 = sadd.s32 1, %s20
      %s30 = scalar_select %p27, %s29, %s20
      %p31 = scmp.ge.s32.totalorder %s30, 2
      %s32 = scalar_select %p31, 0, %s30
      %s33 = ssub.s32 %s20, %s32
      %s34 = ssub.s32 %s21, %s28
      %s35 = sor.u32 %s33, %s34
      %p36 = scmp.eq.s32.totalorder %s35, 0
      %s38 = sadd.s32 %s37, 1
      %s39 = scalar_select %p36, %s37, %s38
      %p42 = pneg %p36
      %p43 = scmp.eq.s32.totalorder %s13, 1
      %p44 = por %p42, %p43
      %p45 = scmp.ne.s32.totalorder %s37, %s40
      %p46 = scmp.eq.s32.totalorder %s13, 0
      %p47 = por %p45, %p46
      %p48 = scmp.ne.s32.totalorder %s37, %s40
      %p49 = scmp.eq.s32.totalorder %s18, 1
      %p50 = por %p48, %p49
      %p51 = scmp.ne.s32.totalorder %s40, %s41
      %p52 = scmp.eq.s32.totalorder %s18, 0
      %p53 = por %p51, %p52
      %p54 = scmp.ne.s32.totalorder %s40, %s41
      %p55 = scmp.eq.s32.totalorder %s19, 1
      %p56 = por %p54, %p55
      %p58 = scmp.ne.s32.totalorder %s41, %s57
      %p59 = scmp.eq.s32.totalorder %s19, 0
      %p60 = por %p58, %p59
      %s62 = sadd.s32 %s61, 1
      %p65 = scmp.eq.s32.totalorder %s13, 1
      %p66 = scmp.ne.s32.totalorder %s61, %s63
      %p67 = scmp.eq.s32.totalorder %s13, 0
      %p68 = por %p66, %p67
      %p69 = scmp.ne.s32.totalorder %s61, %s63
      %p70 = scmp.eq.s32.totalorder %s18, 1
      %p71 = por %p69, %p70
      %p72 = scmp.ne.s32.totalorder %s63, %s64
      %p73 = scmp.eq.s32.totalorder %s18, 0
      %p74 = por %p72, %p73
      %p75 = scmp.ne.s32.totalorder %s63, %s64
      %p76 = scmp.eq.s32.totalorder %s19, 1
      %p77 = por %p75, %p76
      %p79 = scmp.ne.s32.totalorder %s64, %s78
      %p80 = scmp.eq.s32.totalorder %s19, 0
      %p81 = por %p79, %p80
      %s83 = sadd.s32 %s82, 1
      %p86 = scmp.eq.s32.totalorder %s13, 1
      %p87 = scmp.ne.s32.totalorder %s82, %s84
      %p88 = scmp.eq.s32.totalorder %s13, 0
      %p89 = por %p87, %p88
      %p90 = scmp.ne.s32.totalorder %s82, %s84
      %p91 = scmp.eq.s32.totalorder %s18, 1
      %p92 = por %p90, %p91
      %p93 = scmp.ne.s32.totalorder %s84, %s85
      %p94 = scmp.eq.s32.totalorder %s18, 0
      %p95 = por %p93, %p94
      %p96 = scmp.ne.s32.totalorder %s84, %s85
      %p97 = scmp.eq.s32.totalorder %s19, 1
      %p98 = por %p96, %p97
      %p100 = scmp.ne.s32.totalorder %s85, %s99
      %p101 = scmp.eq.s32.totalorder %s19, 0
      %p102 = por %p100, %p101
      %s103 = ssub.s32 %s20, %s32
      %s104 = ssub.s32 %s21, %s28
      %s105 = sor.u32 %s103, %s104
      %p106 = scmp.eq.s32.totalorder %s105, 0
      %s108 = sadd.s32 %s107, 1
      %s109 = scalar_select %p106, %s107, %s108
      %p112 = pneg %p106
      %p113 = scmp.eq.s32.totalorder %s13, 1
      %p114 = por %p112, %p113
      %p115 = scmp.ne.s32.totalorder %s107, %s110
      %p116 = scmp.eq.s32.totalorder %s13, 0
      %p117 = por %p115, %p116
      %p118 = scmp.ne.s32.totalorder %s107, %s110
      %p119 = scmp.eq.s32.totalorder %s18, 1
      %p120 = por %p118, %p119
      %p121 = scmp.ne.s32.totalorder %s110, %s111
      %p122 = scmp.eq.s32.totalorder %s18, 0
      %p123 = por %p121, %p122
      %p124 = scmp.ne.s32.totalorder %s110, %s111
      %p125 = scmp.eq.s32.totalorder %s19, 1
      %p126 = por %p124, %p125
      %p128 = scmp.ne.s32.totalorder %s111, %s127
      %p129 = scmp.eq.s32.totalorder %s19, 0
      %p130 = por %p128, %p129
      %s131 = ssub.s32 %s20, %s32
      %s132 = ssub.s32 %s21, %s28
      %s133 = sor.u32 %s131, %s132
      %p134 = scmp.eq.s32.totalorder %s133, 0
      %s136 = sadd.s32 %s135, 1
      %s137 = scalar_select %p134, %s135, %s136
      %p140 = pneg %p134
      %p141 = scmp.eq.s32.totalorder %s13, 1
      %p142 = por %p140, %p141
      %p143 = scmp.ne.s32.totalorder %s135, %s138
      %p144 = scmp.eq.s32.totalorder %s13, 0
      %p145 = por %p143, %p144
      %p146 = scmp.ne.s32.totalorder %s135, %s138
      %p147 = scmp.eq.s32.totalorder %s18, 1
      %p148 = por %p146, %p147
      %p149 = scmp.ne.s32.totalorder %s138, %s139
      %p150 = scmp.eq.s32.totalorder %s18, 0
      %p151 = por %p149, %p150
      %p152 = scmp.ne.s32.totalorder %s138, %s139
      %p153 = scmp.eq.s32.totalorder %s19, 1
      %p154 = por %p152, %p153
      %p156 = scmp.ne.s32.totalorder %s139, %s155
      %p157 = scmp.eq.s32.totalorder %s19, 0
      %p158 = por %p156, %p157
      %p159 = scmp.le.s32.totalorder 1, %s13
      %p160 = scmp.lt.s32.totalorder %s13, 3
      %p161 = pnand %p159, %p160
      %p162 = pneg %p161
      // Predicated region
      $region9: #{decoder_forward.17} parent=5 // pred_check
        _
      $region10: #{decoder_forward.17} parent=5 // pred_check_branch
        %164 = sbr.rel (%p161) target = $region12
      $region11: #{decoder_forward.17} parent=5 // pred_region
        %s165 = ssub.s32 %s13, 1
        // Predicated region
        $region13: #{decoder_forward.17} parent=11 // pred_check
          %p166 = pneg %p74
        $region14: #{decoder_forward.17} parent=11 // pred_check_branch
          %168 = sbr.rel (%p166) target = $region16
        $region15: #{decoder_forward.17} parent=11 // pred_region
          _
        $region16: #{decoder_forward.17} parent=11 // pred_fallthru
          _
        // Predicated region
        $region17: #{decoder_forward.17} parent=11 // pred_check
          %p169 = pneg %p95
        $region18: #{decoder_forward.17} parent=11 // pred_check_branch
          %171 = sbr.rel (%p169) target = $region20
        $region19: #{decoder_forward.17} parent=11 // pred_region
          _
        $region20: #{decoder_forward.17} parent=11 // pred_fallthru
          _
      $region12: #{decoder_forward.17} parent=5 // pred_fallthru
        _
      %p172 = scmp.lt.s32.totalorder %s13, 2
      // Predicated region
      $region21: #{decoder_forward.17} parent=5 // pred_check
        %p173 = pneg %p172
      $region22: #{decoder_forward.17} parent=5 // pred_check_branch
        %175 = sbr.rel (%p173) target = $region24
      $region23: #{decoder_forward.17} parent=5 // pred_region
        // Predicated region
        $region25: #{decoder_forward.17} parent=23 // pred_check
          %p176 = pneg %p47
        $region26: #{decoder_forward.17} parent=23 // pred_check_branch
          %178 = sbr.rel (%p176) target = $region28
        $region27: #{decoder_forward.17} parent=23 // pred_region
          %p179 = scmp.lt.s32.totalorder %s20, 1
          %s180 = scalar_select %p179, %s20, 1
          %p181 = scmp.lt.s32.totalorder %s21, 0
          %s182 = scalar_select %p181, %s21, 0
          %s183 = smul.addr %s180, 4
          %s184 = sadd.s32 %s182, %s183
          %s185 = smul.addr %s184, 4
          %s186 = scalar_lea.vmem %s0, %s185
        $region28: #{decoder_forward.17} parent=23 // pred_fallthru
          _
        // Predicated region
        $region29: #{decoder_forward.17} parent=23 // pred_check
          %p187 = pneg %p117
        $region30: #{decoder_forward.17} parent=23 // pred_check_branch
          %189 = sbr.rel (%p187) target = $region32
        $region31: #{decoder_forward.17} parent=23 // pred_region
          %p190 = scmp.lt.s32.totalorder %s20, 1
          %s191 = scalar_select %p190, %s20, 1
          %p192 = scmp.lt.s32.totalorder %s21, 0
          %s193 = scalar_select %p192, %s21, 0
          %s194 = sadd.s32 %s193, %s191
          %s195 = scalar_lea.vmem %s3, %s194
        $region32: #{decoder_forward.17} parent=23 // pred_fallthru
          _
      $region24: #{decoder_forward.17} parent=5 // pred_fallthru
        _
      %p196 = scmp.le.s32.totalorder 1, %s13
      %p197 = scmp.lt.s32.totalorder %s13, 3
      %p198 = pnand %p196, %p197
      %p199 = pneg %p198
      // Predicated region
      $region33: #{decoder_forward.17} parent=5 // pred_check
        _
      $region34: #{decoder_forward.17} parent=5 // pred_check_branch
        %201 = sbr.rel (%p198) target = $region36
      $region35: #{decoder_forward.17} parent=5 // pred_region
        %s202 = ssub.s32 %s13, 1
        %p203 = scmp.lt.s32.totalorder %s22, 1
        %s204 = scalar_select %p203, %s22, 1
        %p205 = scmp.lt.s32.totalorder %s23, 0
        %s206 = scalar_select %p205, %s23, 0
        %s207 = smul.addr %s204, 4
        %s208 = sadd.s32 %s206, %s207
        %s209 = smul.addr %s208, 4
        %s210 = scalar_lea.vmem %s0, %s209
        %p211 = pneg %p53
        %p212 = pneg %p50
        %p213 = pneg %p74
        %p214 = pneg %p71
        %p215 = pneg %p95
        %p216 = pneg %p92
        %p217 = scmp.lt.s32.totalorder %s22, 1
        %s218 = scalar_select %p217, %s22, 1
        %p219 = scmp.lt.s32.totalorder %s23, 0
        %s220 = scalar_select %p219, %s23, 0
        %s221 = sadd.s32 %s220, %s218
        %s222 = scalar_lea.vmem %s3, %s221
        %p223 = pneg %p123
        %p224 = pneg %p120
        %p225 = pneg %p151
        %p226 = pneg %p148
        %s227 = sand.u32 %s138, 1
        %s228 = scalar_lea.sflag [#allocation3], %s227
        %s229 = sand.u32 %s138, 1
        %s230 = smul.addr %s229, 8
        %s231 = scalar_lea.vmem [#allocation2], %s230
        %p232 = scmp.lt.s32.totalorder %s22, 1
        %s233 = scalar_select %p232, %s22, 1
        %p234 = scmp.lt.s32.totalorder %s23, 0
        %s235 = scalar_select %p234, %s23, 0
        %s236 = smul.addr %s233, 4
        %s237 = sadd.s32 %s235, %s236
        %s238 = smul.addr %s237, 4
        %s239 = scalar_lea.vmem %s0, %s238
        %p240 = scmp.lt.s32.totalorder %s22, 1
        %s241 = scalar_select %p240, %s22, 1
        %p242 = scmp.lt.s32.totalorder %s23, 0
        %s243 = scalar_select %p242, %s23, 0
        %s244 = sadd.s32 %s243, %s241
        %s245 = scalar_lea.vmem %s3, %s244
        %v247 = vld [vmem:[%s239] sm:$0xf]
        %v248 = vld [vmem:[%s239 + $0x4] sm:$0xf]
        %v249 = vld [vmem:[%s239 + $0x8] sm:$0xf]
        %v250 = vld [vmem:[%s239 + $0xc] sm:$0xf]
        %v251 = vld [vmem:[%s1] sm:$0xff]
        %v252 = vpack.c.bf16 %v251, %v251
        %v253 = vld [vmem:[%s2] sm:$0xff]
        %255 = vset.pattern.permute.xlu0 0
        %256 = vperm.xlu0 %255, %v253
        %v257 = vpop.permute.xlu0 %256
        %v263 = vunpack.c.l.b16 %v247
        %v264 = vunpack.c.l.b16 %v248
        %v265 = vunpack.c.l.b16 %v249
        %v266 = vunpack.c.l.b16 %v250
        %v267 = vpack.c.b16 %v264, %v263
        %v268 = vpack.c.b16 %v266, %v265
        %vm271 = vcmask 261120
        %v273 = vsel %vm271, %v252, 0
        %275 = vmatprep.subr.bf16.mxu0 0
        %276 = vmatpush1.bf16.msra.mxu0 %v267
        %277 = vmatprep.subr.bf16.mxu0 0
        %278 = vmatpush1.bf16.msra.mxu0 %v268
        %279 = vmatprep.subr.bf16.mxu0 0
        %280 = vmatpush1.bf16.msra.mxu0 0
        %281 = vmatprep.subr.bf16.mxu0 0
        %282 = vmatpush1.bf16.msra.mxu0 0
        %283 = vmatprep.subr.bf16.mxu0 0
        %284 = vmatpush1.bf16.msra.mxu0 0
        %285 = vmatprep.subr.bf16.mxu0 0
        %286 = vmatpush1.bf16.msra.mxu0 0
        %287 = vmatprep.subr.bf16.mxu0 0
        %288 = vmatpush1.bf16.msra.mxu0 0
        %289 = vmatprep.subr.bf16.mxu0 0
        %290 = vmatpush1.bf16.msra.mxu0 0
        %291 = vmatprep.subr.bf16.mxu0 0
        %292 = vmatpush1.bf16.msra.mxu0 0
        %293 = vmatprep.subr.bf16.mxu0 0
        %294 = vmatpush1.bf16.msra.mxu0 0
        %295 = vmatprep.subr.bf16.mxu0 0
        %296 = vmatpush1.bf16.msra.mxu0 0
        %297 = vmatprep.subr.bf16.mxu0 0
        %298 = vmatpush1.bf16.msra.mxu0 0
        %299 = vmatprep.subr.bf16.mxu0 0
        %300 = vmatpush1.bf16.msra.mxu0 0
        %301 = vmatprep.subr.bf16.mxu0 0
        %302 = vmatpush1.bf16.msra.mxu0 0
        %303 = vmatprep.subr.bf16.mxu0 0
        %304 = vmatpush1.bf16.msra.mxu0 0
        %305 = vmatprep.subr.bf16.mxu0 0
        %306 = vmatpush1.bf16.msra.mxu0 0
        %307 = vmatprep.mubr.bf16.mxu0 0
        %308 = vmatmul.mubr.bf16.gmra.mrb[0].mxu0 %v273
        %v309 = vpop.f32.mrb[0].mxu0
        %v310 = vadd.f32 %v257, %v309
        %v311 = vpop.f32.mrb[0].mxu0
        %v312 = vpop.f32.mrb[0].mxu0
        %v313 = vpop.f32.mrb[0].mxu0
        %314 = vdwg.mxu0
        %v315 = vld [vmem:[%s245] sm:$0x1]
        %v317 = vlaneseq
        %v318 = vshrl.u32 %v317, 7
        %v319 = vsub.s32 0, %v318
        %v320 = vrot.slane %v315, %v319
        %v322 = vmul.f32 %v310, %v320
        %323 = vst [vmem:[%s231] sm:$0xff] %v322
        %s324 = sand.u32 %s138, 1
        %s325 = scalar_lea.sflag [#allocation3], %s324
        %s326 = sand.u32 %s138, 1
        %s327 = smul.addr %s326, 8
        %s328 = scalar_lea.vmem [#allocation2], %s327
        // Predicated region
        $region37: #{decoder_forward.17} parent=35 // pred_check
          %p329 = pneg %p148
        $region38: #{decoder_forward.17} parent=35 // pred_check_branch
          %331 = sbr.rel (%p329) target = $region40
        $region39: #{decoder_forward.17} parent=35 // pred_region
          %s333 = ssub.s32 128, 128
          %334 = vsyncadd %s325, %s333
          %s335 = sadd.s32 %s23, %s22
          %s336 = smul.addr %s335, 128
          %s337 = scalar_lea.hbm %s4, %s336
          %s339 = sshll.u32 %s328, 4
          %s340 = int_to_ptr.vmem [resolvable:$true] %s339
          %342 = dma.vmem_to_hbm [thread:$0]  %s340, 128, %s337, %s325
        $region40: #{decoder_forward.17} parent=35 // pred_fallthru
          _
      $region36: #{decoder_forward.17} parent=5 // pred_fallthru
        _
      %p343 = scmp.le.s32.totalorder 2, %s13
      // Predicated region
      $region41: #{decoder_forward.17} parent=5 // pred_check
        %p344 = pneg %p343
      $region42: #{decoder_forward.17} parent=5 // pred_check_branch
        %346 = sbr.rel (%p344) target = $region44
      $region43: #{decoder_forward.17} parent=5 // pred_region
        %s347 = ssub.s32 %s13, 2
        // Predicated region
        $region45: #{decoder_forward.17} parent=43 // pred_check
          %p348 = pneg %p154
        $region46: #{decoder_forward.17} parent=43 // pred_check_branch
          %350 = sbr.rel (%p348) target = $region48
        $region47: #{decoder_forward.17} parent=43 // pred_region
          %s351 = sand.u32 %s139, 1
          %s352 = scalar_lea.sflag [#allocation3], %s351
          %s353 = sand.u32 %s139, 1
          %s354 = smul.addr %s353, 8
          %s355 = scalar_lea.vmem [#allocation2], %s354
          %356 = dma.done %s352, 128
        $region48: #{decoder_forward.17} parent=43 // pred_fallthru
          _
      $region44: #{decoder_forward.17} parent=5 // pred_fallthru
        _
    $region6: #{decoder_forward.17} parent=1 // loop_footer
      %s17 = sadd.s32 1, %s13
    $region7: #{decoder_forward.17} parent=1 // loop_footer_branch
      %12 = sbr.rel target = $region3
    $region8: #{decoder_forward.17} parent=1 // loop_exit
      _
    %357 = vsyncpa [#allocation3], 1
    %s358 = scalar_lea.sflag [#allocation3], 1
    %359 = vsyncpa %s358, 1

// kernel: decoder_forward.13
$region0: #{decoder_forward.13}
  #allocation0 [shape = 'u32[]', space=smem, size = 0x4, offset = 0x4, fixed_abs, tag = 'smem constant byte address 0x4 - core index']
  #allocation1 [shape = 'u32[144,128]{1,0:T(1,128)}', space=vmem, size = 0x12000, scoped, tag = 'internal scratch']
  %s0 = inlined_call_operand.vmem [shape: bf16[2,16,128], index: 0, kind: input, shape index: {}]
  %s1 = inlined_call_operand.vmem [shape: bf16[2,32,128], index: 1, kind: input, shape index: {}]
  %s2 = inlined_call_operand.vmem [shape: bf16[2,32,128], index: 2, kind: input, shape index: {}]
  %s3 = inlined_call_operand.vmem [shape: f32[2,1,128], index: 3, kind: input, shape index: {}]
  %s4 = inlined_call_operand.vmem [shape: f32[32,16], index: 4, kind: input, shape index: {}]
  %s5 = inlined_call_operand.vmem [shape: f32[32,1], index: 5, kind: input, shape index: {}]
  %s6 = inlined_call_operand.vmem [shape: f32[32,32], index: 6, kind: input, shape index: {}]
  %s7 = inlined_call_operand.vmem [shape: f32[32,1], index: 7, kind: input, shape index: {}]
  %s8 = inlined_call_operand.vmem [shape: bf16[2,32,128], index: 8, kind: output, shape index: {}]
  %s9 = sld [smem:[#allocation0]]
  $region65: #{decoder_forward.13} parent=0
    _
  %s11 = ssub.s32 1, %s9
  %s12 = scalar_select 0, %s11, %s9
  loop: start=0, step=1, limit=4
  $region2: #{decoder_forward.13} parent=0 // loop_pre_header
    _
  $region3: #{decoder_forward.13} parent=0 // loop_header
    %s14 = sphi 0, %s18
    %p15 = scmp.ge.s32.totalorder %s14, 4
    %s21 = sphi 0, %s33
    %s22 = sphi 0, %s29
    %s23 = sphi 0, %s21
    %s24 = sphi 0, %s22
    %s25 = sphi 0, %s23
    %s26 = sphi 0, %s24
    %s38 = sphi 0, %s40
    %s41 = sphi 0, %s38
    %s42 = sphi 0, %s41
    %s58 = sphi 0, %s42
    %s66 = sphi 0, %s68
    %s69 = sphi 0, %s66
    %s70 = sphi 0, %s69
    %s86 = sphi 0, %s70
    %s94 = sphi 0, %s96
    %s97 = sphi 0, %s94
    %s98 = sphi 0, %s97
    %s114 = sphi 0, %s98
    %s122 = sphi 0, %s124
    %s125 = sphi 0, %s122
    %s126 = sphi 0, %s125
    %s142 = sphi 0, %s126
    %s146 = sphi 0, %s146
    %s148 = sphi 0, %s146
    %s149 = sphi 0, %s148
    %s163 = sphi 0, %s149
    %s167 = sphi 0, %s167
    %s169 = sphi 0, %s167
    %s170 = sphi 0, %s169
    %s184 = sphi 0, %s170
    %s188 = sphi 0, %s188
    %s190 = sphi 0, %s188
    %s191 = sphi 0, %s190
    %s205 = sphi 0, %s191
    %s209 = sphi 0, %s209
    %s211 = sphi 0, %s209
    %s212 = sphi 0, %s211
    %s226 = sphi 0, %s212
    %s234 = sphi 0, %s236
    %s237 = sphi 0, %s234
    %s238 = sphi 0, %s237
    %s254 = sphi 0, %s238
  $region4: #{decoder_forward.13} parent=0 // loop_header_branch
    %17 = sbr.rel (%p15) target = $region8
  $region5: #{decoder_forward.13} parent=0 // loop_body
    %s19 = ssub.s32 %s14, 1
    %s20 = ssub.s32 %s14, 2
    %s27 = sadd.s32 1, %s22
    %p28 = scmp.ge.s32.totalorder %s27, 1
    %s29 = scalar_select %p28, 0, %s27
    %s30 = sadd.s32 1, %s21
    %s31 = scalar_select %p28, %s30, %s21
    %p32 = scmp.ge.s32.totalorder %s31, 2
    %s33 = scalar_select %p32, 0, %s31
    %s34 = ssub.s32 %s21, %s33
    %s35 = ssub.s32 %s22, %s29
    %s36 = sor.u32 %s34, %s35
    %p37 = scmp.eq.s32.totalorder %s36, 0
    %s39 = sadd.s32 %s38, 1
    %s40 = scalar_select %p37, %s38, %s39
    %p43 = pneg %p37
    %p44 = scmp.eq.s32.totalorder %s14, 1
    %p45 = por %p43, %p44
    %p46 = scmp.ne.s32.totalorder %s38, %s41
    %p47 = scmp.eq.s32.totalorder %s14, 0
    %p48 = por %p46, %p47
    %p49 = scmp.ne.s32.totalorder %s38, %s41
    %p50 = scmp.eq.s32.totalorder %s19, 1
    %p51 = por %p49, %p50
    %p52 = scmp.ne.s32.totalorder %s41, %s42
    %p53 = scmp.eq.s32.totalorder %s19, 0
    %p54 = por %p52, %p53
    %p55 = scmp.ne.s32.totalorder %s41, %s42
    %p56 = scmp.eq.s32.totalorder %s20, 1
    %p57 = por %p55, %p56
    %p59 = scmp.ne.s32.totalorder %s42, %s58
    %p60 = scmp.eq.s32.totalorder %s20, 0
    %p61 = por %p59, %p60
    %s62 = ssub.s32 %s21, %s33
    %s63 = ssub.s32 %s22, %s29
    %s64 = sor.u32 %s62, %s63
    %p65 = scmp.eq.s32.totalorder %s64, 0
    %s67 = sadd.s32 %s66, 1
    %s68 = scalar_select %p65, %s66, %s67
    %p71 = pneg %p65
    %p72 = scmp.eq.s32.totalorder %s14, 1
    %p73 = por %p71, %p72
    %p74 = scmp.ne.s32.totalorder %s66, %s69
    %p75 = scmp.eq.s32.totalorder %s14, 0
    %p76 = por %p74, %p75
    %p77 = scmp.ne.s32.totalorder %s66, %s69
    %p78 = scmp.eq.s32.totalorder %s19, 1
    %p79 = por %p77, %p78
    %p80 = scmp.ne.s32.totalorder %s69, %s70
    %p81 = scmp.eq.s32.totalorder %s19, 0
    %p82 = por %p80, %p81
    %p83 = scmp.ne.s32.totalorder %s69, %s70
    %p84 = scmp.eq.s32.totalorder %s20, 1
    %p85 = por %p83, %p84
    %p87 = scmp.ne.s32.totalorder %s70, %s86
    %p88 = scmp.eq.s32.totalorder %s20, 0
    %p89 = por %p87, %p88
    %s90 = ssub.s32 %s21, %s33
    %s91 = ssub.s32 %s22, %s29
    %s92 = sor.u32 %s90, %s91
    %p93 = scmp.eq.s32.totalorder %s92, 0
    %s95 = sadd.s32 %s94, 1
    %s96 = scalar_select %p93, %s94, %s95
    %p99 = pneg %p93
    %p100 = scmp.eq.s32.totalorder %s14, 1
    %p101 = por %p99, %p100
    %p102 = scmp.ne.s32.totalorder %s94, %s97
    %p103 = scmp.eq.s32.totalorder %s14, 0
    %p104 = por %p102, %p103
    %p105 = scmp.ne.s32.totalorder %s94, %s97
    %p106 = scmp.eq.s32.totalorder %s19, 1
    %p107 = por %p105, %p106
    %p108 = scmp.ne.s32.totalorder %s97, %s98
    %p109 = scmp.eq.s32.totalorder %s19, 0
    %p110 = por %p108, %p109
    %p111 = scmp.ne.s32.totalorder %s97, %s98
    %p112 = scmp.eq.s32.totalorder %s20, 1
    %p113 = por %p111, %p112
    %p115 = scmp.ne.s32.totalorder %s98, %s114
    %p116 = scmp.eq.s32.totalorder %s20, 0
    %p117 = por %p115, %p116
    %s118 = ssub.s32 %s21, %s33
    %s119 = ssub.s32 %s22, %s29
    %s120 = sor.u32 %s118, %s119
    %p121 = scmp.eq.s32.totalorder %s120, 0
    %s123 = sadd.s32 %s122, 1
    %s124 = scalar_select %p121, %s122, %s123
    %p127 = pneg %p121
    %p128 = scmp.eq.s32.totalorder %s14, 1
    %p129 = por %p127, %p128
    %p130 = scmp.ne.s32.totalorder %s122, %s125
    %p131 = scmp.eq.s32.totalorder %s14, 0
    %p132 = por %p130, %p131
    %p133 = scmp.ne.s32.totalorder %s122, %s125
    %p134 = scmp.eq.s32.totalorder %s19, 1
    %p135 = por %p133, %p134
    %p136 = scmp.ne.s32.totalorder %s125, %s126
    %p137 = scmp.eq.s32.totalorder %s19, 0
    %p138 = por %p136, %p137
    %p139 = scmp.ne.s32.totalorder %s125, %s126
    %p140 = scmp.eq.s32.totalorder %s20, 1
    %p141 = por %p139, %p140
    %p143 = scmp.ne.s32.totalorder %s126, %s142
    %p144 = scmp.eq.s32.totalorder %s20, 0
    %p145 = por %p143, %p144
    %s147 = sadd.s32 %s146, 1
    %p150 = scmp.eq.s32.totalorder %s14, 1
    %p151 = scmp.ne.s32.totalorder %s146, %s148
    %p152 = scmp.eq.s32.totalorder %s14, 0
    %p153 = por %p151, %p152
    %p154 = scmp.ne.s32.totalorder %s146, %s148
    %p155 = scmp.eq.s32.totalorder %s19, 1
    %p156 = por %p154, %p155
    %p157 = scmp.ne.s32.totalorder %s148, %s149
    %p158 = scmp.eq.s32.totalorder %s19, 0
    %p159 = por %p157, %p158
    %p160 = scmp.ne.s32.totalorder %s148, %s149
    %p161 = scmp.eq.s32.totalorder %s20, 1
    %p162 = por %p160, %p161
    %p164 = scmp.ne.s32.totalorder %s149, %s163
    %p165 = scmp.eq.s32.totalorder %s20, 0
    %p166 = por %p164, %p165
    %s168 = sadd.s32 %s167, 1
    %p171 = scmp.eq.s32.totalorder %s14, 1
    %p172 = scmp.ne.s32.totalorder %s167, %s169
    %p173 = scmp.eq.s32.totalorder %s14, 0
    %p174 = por %p172, %p173
    %p175 = scmp.ne.s32.totalorder %s167, %s169
    %p176 = scmp.eq.s32.totalorder %s19, 1
    %p177 = por %p175, %p176
    %p178 = scmp.ne.s32.totalorder %s169, %s170
    %p179 = scmp.eq.s32.totalorder %s19, 0
    %p180 = por %p178, %p179
    %p181 = scmp.ne.s32.totalorder %s169, %s170
    %p182 = scmp.eq.s32.totalorder %s20, 1
    %p183 = por %p181, %p182
    %p185 = scmp.ne.s32.totalorder %s170, %s184
    %p186 = scmp.eq.s32.totalorder %s20, 0
    %p187 = por %p185, %p186
    %s189 = sadd.s32 %s188, 1
    %p192 = scmp.eq.s32.totalorder %s14, 1
    %p193 = scmp.ne.s32.totalorder %s188, %s190
    %p194 = scmp.eq.s32.totalorder %s14, 0
    %p195 = por %p193, %p194
    %p196 = scmp.ne.s32.totalorder %s188, %s190
    %p197 = scmp.eq.s32.totalorder %s19, 1
    %p198 = por %p196, %p197
    %p199 = scmp.ne.s32.totalorder %s190, %s191
    %p200 = scmp.eq.s32.totalorder %s19, 0
    %p201 = por %p199, %p200
    %p202 = scmp.ne.s32.totalorder %s190, %s191
    %p203 = scmp.eq.s32.totalorder %s20, 1
    %p204 = por %p202, %p203
    %p206 = scmp.ne.s32.totalorder %s191, %s205
    %p207 = scmp.eq.s32.totalorder %s20, 0
    %p208 = por %p206, %p207
    %s210 = sadd.s32 %s209, 1
    %p213 = scmp.eq.s32.totalorder %s14, 1
    %p214 = scmp.ne.s32.totalorder %s209, %s211
    %p215 = scmp.eq.s32.totalorder %s14, 0
    %p216 = por %p214, %p215
    %p217 = scmp.ne.s32.totalorder %s209, %s211
    %p218 = scmp.eq.s32.totalorder %s19, 1
    %p219 = por %p217, %p218
    %p220 = scmp.ne.s32.totalorder %s211, %s212
    %p221 = scmp.eq.s32.totalorder %s19, 0
    %p222 = por %p220, %p221
    %p223 = scmp.ne.s32.totalorder %s211, %s212
    %p224 = scmp.eq.s32.totalorder %s20, 1
    %p225 = por %p223, %p224
    %p227 = scmp.ne.s32.totalorder %s212, %s226
    %p228 = scmp.eq.s32.totalorder %s20, 0
    %p229 = por %p227, %p228
    %s230 = ssub.s32 %s21, %s33
    %s231 = ssub.s32 %s22, %s29
    %s232 = sor.u32 %s230, %s231
    %p233 = scmp.eq.s32.totalorder %s232, 0
    %s235 = sadd.s32 %s234, 1
    %s236 = scalar_select %p233, %s234, %s235
    %p239 = pneg %p233
    %p240 = scmp.eq.s32.totalorder %s14, 1
    %p241 = por %p239, %p240
    %p242 = scmp.ne.s32.totalorder %s234, %s237
    %p243 = scmp.eq.s32.totalorder %s14, 0
    %p244 = por %p242, %p243
    %p245 = scmp.ne.s32.totalorder %s234, %s237
    %p246 = scmp.eq.s32.totalorder %s19, 1
    %p247 = por %p245, %p246
    %p248 = scmp.ne.s32.totalorder %s237, %s238
    %p249 = scmp.eq.s32.totalorder %s19, 0
    %p250 = por %p248, %p249
    %p251 = scmp.ne.s32.totalorder %s237, %s238
    %p252 = scmp.eq.s32.totalorder %s20, 1
    %p253 = por %p251, %p252
    %p255 = scmp.ne.s32.totalorder %s238, %s254
    %p256 = scmp.eq.s32.totalorder %s20, 0
    %p257 = por %p255, %p256
    %p258 = scmp.le.s32.totalorder 1, %s14
    %p259 = scmp.lt.s32.totalorder %s14, 3
    %p260 = pnand %p258, %p259
    %p261 = pneg %p260
    // Predicated region
    $region9: #{decoder_forward.13} parent=5 // pred_check
      _
    $region10: #{decoder_forward.13} parent=5 // pred_check_branch
      %263 = sbr.rel (%p260) target = $region12
    $region11: #{decoder_forward.13} parent=5 // pred_region
      %s264 = ssub.s32 %s14, 1
      // Predicated region
      $region13: #{decoder_forward.13} parent=11 // pred_check
        %p265 = pneg %p159
      $region14: #{decoder_forward.13} parent=11 // pred_check_branch
        %267 = sbr.rel (%p265) target = $region16
      $region15: #{decoder_forward.13} parent=11 // pred_region
        _
      $region16: #{decoder_forward.13} parent=11 // pred_fallthru
        _
      // Predicated region
      $region17: #{decoder_forward.13} parent=11 // pred_check
        %p268 = pneg %p180
      $region18: #{decoder_forward.13} parent=11 // pred_check_branch
        %270 = sbr.rel (%p268) target = $region20
      $region19: #{decoder_forward.13} parent=11 // pred_region
        _
      $region20: #{decoder_forward.13} parent=11 // pred_fallthru
        _
      // Predicated region
      $region21: #{decoder_forward.13} parent=11 // pred_check
        %p271 = pneg %p201
      $region22: #{decoder_forward.13} parent=11 // pred_check_branch
        %273 = sbr.rel (%p271) target = $region24
      $region23: #{decoder_forward.13} parent=11 // pred_region
        _
      $region24: #{decoder_forward.13} parent=11 // pred_fallthru
        _
      // Predicated region
      $region25: #{decoder_forward.13} parent=11 // pred_check
        %p274 = pneg %p222
      $region26: #{decoder_forward.13} parent=11 // pred_check_branch
        %276 = sbr.rel (%p274) target = $region28
      $region27: #{decoder_forward.13} parent=11 // pred_region
        _
      $region28: #{decoder_forward.13} parent=11 // pred_fallthru
        _
    $region12: #{decoder_forward.13} parent=5 // pred_fallthru
      _
    %p277 = scmp.lt.s32.totalorder %s14, 2
    // Predicated region
    $region29: #{decoder_forward.13} parent=5 // pred_check
      %p278 = pneg %p277
    $region30: #{decoder_forward.13} parent=5 // pred_check_branch
      %280 = sbr.rel (%p278) target = $region32
    $region31: #{decoder_forward.13} parent=5 // pred_region
      // Predicated region
      $region33: #{decoder_forward.13} parent=31 // pred_check
        %p281 = pneg %p48
      $region34: #{decoder_forward.13} parent=31 // pred_check_branch
        %283 = sbr.rel (%p281) target = $region36
      $region35: #{decoder_forward.13} parent=31 // pred_region
        %p284 = scmp.lt.s32.totalorder %s21, 1
        %s285 = scalar_select %p284, %s21, 1
        %p286 = scmp.lt.s32.totalorder %s22, 0
        %s287 = scalar_select %p286, %s22, 0
        %s288 = smul.addr %s285, 2
        %s289 = sadd.s32 %s287, %s288
        %s290 = smul.addr %s289, 4
        %s291 = scalar_lea.vmem %s0, %s290
      $region36: #{decoder_forward.13} parent=31 // pred_fallthru
        _
      // Predicated region
      $region37: #{decoder_forward.13} parent=31 // pred_check
        %p292 = pneg %p76
      $region38: #{decoder_forward.13} parent=31 // pred_check_branch
        %294 = sbr.rel (%p292) target = $region40
      $region39: #{decoder_forward.13} parent=31 // pred_region
        %p295 = scmp.lt.s32.totalorder %s21, 1
        %s296 = scalar_select %p295, %s21, 1
        %p297 = scmp.lt.s32.totalorder %s22, 0
        %s298 = scalar_select %p297, %s22, 0
        %s299 = smul.addr %s296, 4
        %s300 = sadd.s32 %s298, %s299
        %s301 = smul.addr %s300, 4
        %s302 = scalar_lea.vmem %s1, %s301
      $region40: #{decoder_forward.13} parent=31 // pred_fallthru
        _
      // Predicated region
      $region41: #{decoder_forward.13} parent=31 // pred_check
        %p303 = pneg %p104
      $region42: #{decoder_forward.13} parent=31 // pred_check_branch
        %305 = sbr.rel (%p303) target = $region44
      $region43: #{decoder_forward.13} parent=31 // pred_region
        %p306 = scmp.lt.s32.totalorder %s21, 1
        %s307 = scalar_select %p306, %s21, 1
        %p308 = scmp.lt.s32.totalorder %s22, 0
        %s309 = scalar_select %p308, %s22, 0
        %s310 = smul.addr %s307, 4
        %s311 = sadd.s32 %s309, %s310
        %s312 = smul.addr %s311, 4
        %s313 = scalar_lea.vmem %s2, %s312
      $region44: #{decoder_forward.13} parent=31 // pred_fallthru
        _
      // Predicated region
      $region45: #{decoder_forward.13} parent=31 // pred_check
        %p314 = pneg %p132
      $region46: #{decoder_forward.13} parent=31 // pred_check_branch
        %316 = sbr.rel (%p314) target = $region48
      $region47: #{decoder_forward.13} parent=31 // pred_region
        %p317 = scmp.lt.s32.totalorder %s21, 1
        %s318 = scalar_select %p317, %s21, 1
        %p319 = scmp.lt.s32.totalorder %s22, 0
        %s320 = scalar_select %p319, %s22, 0
        %s321 = sadd.s32 %s320, %s318
        %s322 = scalar_lea.vmem %s3, %s321
      $region48: #{decoder_forward.13} parent=31 // pred_fallthru
        _
    $region32: #{decoder_forward.13} parent=5 // pred_fallthru
      _
    %p323 = scmp.le.s32.totalorder 1, %s14
    %p324 = scmp.lt.s32.totalorder %s14, 3
    %p325 = pnand %p323, %p324
    %p326 = pneg %p325
    // Predicated region
    $region49: #{decoder_forward.13} parent=5 // pred_check
      _
    $region50: #{decoder_forward.13} parent=5 // pred_check_branch
      %328 = sbr.rel (%p325) target = $region52
    $region51: #{decoder_forward.13} parent=5 // pred_region
      %s329 = ssub.s32 %s14, 1
      %p330 = scmp.lt.s32.totalorder %s23, 1
      %s331 = scalar_select %p330, %s23, 1
      %p332 = scmp.lt.s32.totalorder %s24, 0
      %s333 = scalar_select %p332, %s24, 0
      %s334 = smul.addr %s331, 2
      %s335 = sadd.s32 %s333, %s334
      %s336 = smul.addr %s335, 4
      %s337 = scalar_lea.vmem %s0, %s336
      %p338 = pneg %p54
      %p339 = pneg %p51
      %p340 = scmp.lt.s32.totalorder %s23, 1
      %s341 = scalar_select %p340, %s23, 1
      %p342 = scmp.lt.s32.totalorder %s24, 0
      %s343 = scalar_select %p342, %s24, 0
      %s344 = smul.addr %s341, 4
      %s345 = sadd.s32 %s343, %s344
      %s346 = smul.addr %s345, 4
      %s347 = scalar_lea.vmem %s1, %s346
      %p348 = pneg %p82
      %p349 = pneg %p79
      %p350 = scmp.lt.s32.totalorder %s23, 1
      %s351 = scalar_select %p350, %s23, 1
      %p352 = scmp.lt.s32.totalorder %s24, 0
      %s353 = scalar_select %p352, %s24, 0
      %s354 = smul.addr %s351, 4
      %s355 = sadd.s32 %s353, %s354
      %s356 = smul.addr %s355, 4
      %s357 = scalar_lea.vmem %s2, %s356
      %p358 = pneg %p110
      %p359 = pneg %p107
      %p360 = scmp.lt.s32.totalorder %s23, 1
      %s361 = scalar_select %p360, %s23, 1
      %p362 = scmp.lt.s32.totalorder %s24, 0
      %s363 = scalar_select %p362, %s24, 0
      %s364 = sadd.s32 %s363, %s361
      %s365 = scalar_lea.vmem %s3, %s364
      %p366 = pneg %p138
      %p367 = pneg %p135
      %p368 = pneg %p159
      %p369 = pneg %p156
      %p370 = pneg %p180
      %p371 = pneg %p177
      %p372 = pneg %p201
      %p373 = pneg %p198
      %p374 = pneg %p222
      %p375 = pneg %p219
      %p376 = pneg %p250
      %p377 = pneg %p247
      %p378 = scmp.lt.s32.totalorder %s23, 1
      %s379 = scalar_select %p378, %s23, 1
      %p380 = scmp.lt.s32.totalorder %s24, 0
      %s381 = scalar_select %p380, %s24, 0
      %s382 = smul.addr %s379, 4
      %s383 = sadd.s32 %s381, %s382
      %s384 = smul.addr %s383, 4
      %s385 = scalar_lea.vmem %s8, %s384
      %p386 = scmp.lt.s32.totalorder %s23, 1
      %s387 = scalar_select %p386, %s23, 1
      %p388 = scmp.lt.s32.totalorder %s24, 0
      %s389 = scalar_select %p388, %s24, 0
      %s390 = smul.addr %s387, 2
      %s391 = sadd.s32 %s389, %s390
      %s392 = smul.addr %s391, 4
      %s393 = scalar_lea.vmem %s0, %s392
      %p394 = scmp.lt.s32.totalorder %s23, 1
      %s395 = scalar_select %p394, %s23, 1
      %p396 = scmp.lt.s32.totalorder %s24, 0
      %s397 = scalar_select %p396, %s24, 0
      %s398 = smul.addr %s395, 4
      %s399 = sadd.s32 %s397, %s398
      %s400 = smul.addr %s399, 4
      %s401 = scalar_lea.vmem %s1, %s400
      %p402 = scmp.lt.s32.totalorder %s23, 1
      %s403 = scalar_select %p402, %s23, 1
      %p404 = scmp.lt.s32.totalorder %s24, 0
      %s405 = scalar_select %p404, %s24, 0
      %s406 = smul.addr %s403, 4
      %s407 = sadd.s32 %s405, %s406
      %s408 = smul.addr %s407, 4
      %s409 = scalar_lea.vmem %s2, %s408
      %p410 = scmp.lt.s32.totalorder %s23, 1
      %s411 = scalar_select %p410, %s23, 1
      %p412 = scmp.lt.s32.totalorder %s24, 0
      %s413 = scalar_select %p412, %s24, 0
      %s414 = sadd.s32 %s413, %s411
      %s415 = scalar_lea.vmem %s3, %s414
      %p416 = scmp.lt.s32.totalorder %s23, 1
      %s417 = scalar_select %p416, %s23, 1
      %p418 = scmp.lt.s32.totalorder %s24, 0
      %s419 = scalar_select %p418, %s24, 0
      %s420 = smul.addr %s417, 4
      %s421 = sadd.s32 %s419, %s420
      %s422 = smul.addr %s421, 4
      %s423 = scalar_lea.vmem %s8, %s422
      %v425 = vld [vmem:[%s415] sm:$0x1]
      %v426 = vld [vmem:[%s4] sm:$0xff]
      %v427 = vld [vmem:[%s4 + $0x8] sm:$0xff]
      %v428 = vld [vmem:[%s4 + $0x10] sm:$0xff]
      %v429 = vld [vmem:[%s4 + $0x18] sm:$0xff]
      %v430 = vpack.c.bf16 %v427, %v426
      %v431 = vpack.c.bf16 %v429, %v428
      %v432 = vld [vmem:[%s393] sm:$0xf]
      %v433 = vld [vmem:[%s393 + $0x4] sm:$0xf]
      %v434 = vld [vmem:[%s5] sm:$0xff]
      %v435 = vld [vmem:[%s5 + $0x8] sm:$0xff]
      %v436 = vld [vmem:[%s5 + $0x10] sm:$0xff]
      %v437 = vld [vmem:[%s5 + $0x18] sm:$0xff]
      %439 = vset.pattern.permute.xlu0 0
      %440 = vperm.xlu0 %439, %v434
      %v441 = vpop.permute.xlu0 %440
      %444 = vset.pattern.permute.xlu0 0
      %445 = vperm.xlu0 %444, %v435
      %v446 = vpop.permute.xlu0 %445
      %449 = vset.pattern.permute.xlu0 0
      %450 = vperm.xlu0 %449, %v436
      %v451 = vpop.permute.xlu0 %450
      %454 = vset.pattern.permute.xlu0 0
      %455 = vperm.xlu0 %454, %v437
      %v456 = vpop.permute.xlu0 %455
      %v460 = vunpack.c.l.b16 %v432
      %v461 = vunpack.c.l.b16 %v433
      %v462 = vpack.c.b16 %v461, %v460
      %vm464 = vcmask 130048
      %v466 = vsel %vm464, %v430, 0
      %v469 = vsel %vm464, %v431, 0
      %471 = vmatprep.subr.bf16.mxu0 0
      %472 = vmatpush1.bf16.msra.mxu0 %v462
      %473 = vmatprep.subr.bf16.mxu0 0
      %474 = vmatpush1.bf16.msra.mxu0 0
      %475 = vmatprep.subr.bf16.mxu0 0
      %476 = vmatpush1.bf16.msra.mxu0 0
      %477 = vmatprep.subr.bf16.mxu0 0
      %478 = vmatpush1.bf16.msra.mxu0 0
      %479 = vmatprep.subr.bf16.mxu0 0
      %480 = vmatpush1.bf16.msra.mxu0 0
      %481 = vmatprep.subr.bf16.mxu0 0
      %482 = vmatpush1.bf16.msra.mxu0 0
      %483 = vmatprep.subr.bf16.mxu0 0
      %484 = vmatpush1.bf16.msra.mxu0 0
      %485 = vmatprep.subr.bf16.mxu0 0
      %486 = vmatpush1.bf16.msra.mxu0 0
      %487 = vmatprep.subr.bf16.mxu0 0
      %488 = vmatpush1.bf16.msra.mxu0 0
      %489 = vmatprep.subr.bf16.mxu0 0
      %490 = vmatpush1.bf16.msra.mxu0 0
      %491 = vmatprep.subr.bf16.mxu0 0
      %492 = vmatpush1.bf16.msra.mxu0 0
      %493 = vmatprep.subr.bf16.mxu0 0
      %494 = vmatpush1.bf16.msra.mxu0 0
      %495 = vmatprep.subr.bf16.mxu0 0
      %496 = vmatpush1.bf16.msra.mxu0 0
      %497 = vmatprep.subr.bf16.mxu0 0
      %498 = vmatpush1.bf16.msra.mxu0 0
      %499 = vmatprep.subr.bf16.mxu0 0
      %500 = vmatpush1.bf16.msra.mxu0 0
      %501 = vmatprep.subr.bf16.mxu0 0
      %502 = vmatpush1.bf16.msra.mxu0 0
      %503 = vmatprep.mubr.bf16.mxu0 0
      %504 = vmatmul.mubr.bf16.gmra.mrb[0].mxu0 %v466
      %v505 = vpop.f32.mrb[0].mxu0
      %v506 = vadd.f32 %v441, %v505
      %v507 = vpop.f32.mrb[0].mxu0
      %v508 = vpop.f32.mrb[0].mxu0
      %v509 = vadd.f32 %v446, %v508
      %v510 = vpop.f32.mrb[0].mxu0
      %511 = vmatprep.mubr.bf16.mxu0 0
      %512 = vmatmul.mubr.bf16.gmra.mrb[0].mxu0 %v469
      %v513 = vpop.f32.mrb[0].mxu0
      %v514 = vadd.f32 %v451, %v513
      %v515 = vpop.f32.mrb[0].mxu0
      %v516 = vpop.f32.mrb[0].mxu0
      %v517 = vadd.f32 %v456, %v516
      %v518 = vpop.f32.mrb[0].mxu0
      %519 = vdwg.mxu0
      %v521 = vlaneseq
      %v522 = vshrl.u32 %v521, 7
      %v523 = vsub.s32 0, %v522
      %v524 = vrot.slane %v425, %v523
      %v526 = vmul.f32 %v506, %v524
      %v527 = vmul.f32 %v509, %v524
      %v528 = vmul.f32 %v514, %v524
      %v529 = vmul.f32 %v517, %v524
      %v530 = vld [vmem:[%s401] sm:$0xf]
      %v531 = vld [vmem:[%s401 + $0x4] sm:$0xf]
      %v532 = vld [vmem:[%s401 + $0x8] sm:$0xf]
      %v533 = vld [vmem:[%s401 + $0xc] sm:$0xf]
      %v534 = vunpack.c.l.bf16 %v530
      %v535 = vunpack.c.l.bf16 %v531
      %v536 = vunpack.c.l.bf16 %v532
      %v537 = vunpack.c.l.bf16 %v533
      %v538 = vadd.f32 %v526, %v534
      %v539 = vadd.f32 %v527, %v535
      %v540 = vadd.f32 %v528, %v536
      %v541 = vadd.f32 %v529, %v537
      %v542 = vld [vmem:[%s6] sm:$0xff]
      %v543 = vld [vmem:[%s6 + $0x8] sm:$0xff]
      %v544 = vld [vmem:[%s6 + $0x10] sm:$0xff]
      %v545 = vld [vmem:[%s6 + $0x18] sm:$0xff]
      %v546 = vpack.c.bf16 %v543, %v542
      %v547 = vpack.c.bf16 %v545, %v544
      %v548 = vpack.c.bf16 %v539, %v538
      %v549 = vpack.c.bf16 %v541, %v540
      %v550 = vld [vmem:[%s7] sm:$0xff]
      %v551 = vld [vmem:[%s7 + $0x8] sm:$0xff]
      %v552 = vld [vmem:[%s7 + $0x10] sm:$0xff]
      %v553 = vld [vmem:[%s7 + $0x18] sm:$0xff]
      %555 = vset.pattern.permute.xlu0 0
      %556 = vperm.xlu0 %555, %v550
      %v557 = vpop.permute.xlu0 %556
      %560 = vset.pattern.permute.xlu0 0
      %561 = vperm.xlu0 %560, %v551
      %v562 = vpop.permute.xlu0 %561
      %565 = vset.pattern.permute.xlu0 0
      %566 = vperm.xlu0 %565, %v552
      %v567 = vpop.permute.xlu0 %566
      %570 = vset.pattern.permute.xlu0 0
      %571 = vperm.xlu0 %570, %v553
      %v572 = vpop.permute.xlu0 %571
      %vm574 = vcmask 261120
      %v576 = vsel %vm574, %v546, 0
      %v579 = vsel %vm574, %v547, 0
      %581 = vmatprep.subr.bf16.mxu0 0
      %582 = vmatpush1.bf16.msra.mxu0 %v548
      %583 = vmatprep.subr.bf16.mxu0 0
      %584 = vmatpush1.bf16.msra.mxu0 %v549
      %585 = vmatprep.subr.bf16.mxu0 0
      %586 = vmatpush1.bf16.msra.mxu0 0
      %587 = vmatprep.subr.bf16.mxu0 0
      %588 = vmatpush1.bf16.msra.mxu0 0
      %589 = vmatprep.subr.bf16.mxu0 0
      %590 = vmatpush1.bf16.msra.mxu0 0
      %591 = vmatprep.subr.bf16.mxu0 0
      %592 = vmatpush1.bf16.msra.mxu0 0
      %593 = vmatprep.subr.bf16.mxu0 0
      %594 = vmatpush1.bf16.msra.mxu0 0
      %595 = vmatprep.subr.bf16.mxu0 0
      %596 = vmatpush1.bf16.msra.mxu0 0
      %597 = vmatprep.subr.bf16.mxu0 0
      %598 = vmatpush1.bf16.msra.mxu0 0
      %599 = vmatprep.subr.bf16.mxu0 0
      %600 = vmatpush1.bf16.msra.mxu0 0
      %601 = vmatprep.subr.bf16.mxu0 0
      %602 = vmatpush1.bf16.msra.mxu0 0
      %603 = vmatprep.subr.bf16.mxu0 0
      %604 = vmatpush1.bf16.msra.mxu0 0
      %605 = vmatprep.subr.bf16.mxu0 0
      %606 = vmatpush1.bf16.msra.mxu0 0
      %607 = vmatprep.subr.bf16.mxu0 0
      %608 = vmatpush1.bf16.msra.mxu0 0
      %609 = vmatprep.subr.bf16.mxu0 0
      %610 = vmatpush1.bf16.msra.mxu0 0
      %611 = vmatprep.subr.bf16.mxu0 0
      %612 = vmatpush1.bf16.msra.mxu0 0
      %613 = vmatprep.mubr.bf16.mxu0 0
      %614 = vmatmul.mubr.bf16.gmra.mrb[0].mxu0 %v576
      %v615 = vpop.f32.mrb[0].mxu0
      %v616 = vadd.f32 %v557, %v615
      %v617 = vpop.f32.mrb[0].mxu0
      %v618 = vpop.f32.mrb[0].mxu0
      %v619 = vadd.f32 %v562, %v618
      %v620 = vpop.f32.mrb[0].mxu0
      %621 = vmatprep.mubr.bf16.mxu0 0
      %622 = vmatmul.mubr.bf16.gmra.mrb[0].mxu0 %v579
      %v623 = vpop.f32.mrb[0].mxu0
      %v624 = vadd.f32 %v567, %v623
      %v625 = vpop.f32.mrb[0].mxu0
      %v626 = vpop.f32.mrb[0].mxu0
      %v627 = vadd.f32 %v572, %v626
      %v628 = vpop.f32.mrb[0].mxu0
      %629 = vdwg.mxu0
      %v630 = vld [vmem:[%s409] sm:$0xf]
      %v631 = vld [vmem:[%s409 + $0x4] sm:$0xf]
      %v632 = vld [vmem:[%s409 + $0x8] sm:$0xf]
      %v633 = vld [vmem:[%s409 + $0xc] sm:$0xf]
      %v634 = vunpack.c.l.bf16 %v630
      %v635 = vunpack.c.l.bf16 %v631
      %v636 = vunpack.c.l.bf16 %v632
      %v637 = vunpack.c.l.bf16 %v633
      %v638 = vadd.f32 %v634, %v616
      %v639 = vadd.f32 %v635, %v619
      %v640 = vadd.f32 %v636, %v624
      %v641 = vadd.f32 %v637, %v627
      %v642 = vmul.f32 %v638, %v524
      %v643 = vmul.f32 %v639, %v524
      %v644 = vmul.f32 %v640, %v524
      %v645 = vmul.f32 %v641, %v524
      %v646 = vpack.c.bf16 %v643, %v642
      %v647 = vpack.c.bf16 %v645, %v644
      %v650 = vunpack.c.l.b16 %v646
      %v651 = vunpack.c.h.b16 %v646
      %v652 = vunpack.c.l.b16 %v647
      %v653 = vunpack.c.h.b16 %v647
      %v654 = vpack.c.b16 %v650, %v650
      %v655 = vpack.c.b16 %v651, %v651
      %v656 = vpack.c.b16 %v652, %v652
      %v657 = vpack.c.b16 %v653, %v653
      %662 = vst [vmem:[%s423] sm:$0xf] %v654
      %663 = vst [vmem:[%s423 + $0x4] sm:$0xf] %v655
      %664 = vst [vmem:[%s423 + $0x8] sm:$0xf] %v656
      %665 = vst [vmem:[%s423 + $0xc] sm:$0xf] %v657
      %p666 = scmp.lt.s32.totalorder %s23, 1
      %s667 = scalar_select %p666, %s23, 1
      %p668 = scmp.lt.s32.totalorder %s24, 0
      %s669 = scalar_select %p668, %s24, 0
      %s670 = smul.addr %s667, 4
      %s671 = sadd.s32 %s669, %s670
      %s672 = smul.addr %s671, 4
      %s673 = scalar_lea.vmem %s8, %s672
      // Predicated region
      $region53: #{decoder_forward.13} parent=51 // pred_check
        %p674 = pneg %p247
      $region54: #{decoder_forward.13} parent=51 // pred_check_branch
        %676 = sbr.rel (%p674) target = $region56
      $region55: #{decoder_forward.13} parent=51 // pred_region
        _
      $region56: #{decoder_forward.13} parent=51 // pred_fallthru
        _
    $region52: #{decoder_forward.13} parent=5 // pred_fallthru
      _
    %p677 = scmp.le.s32.totalorder 2, %s14
    // Predicated region
    $region57: #{decoder_forward.13} parent=5 // pred_check
      %p678 = pneg %p677
    $region58: #{decoder_forward.13} parent=5 // pred_check_branch
      %680 = sbr.rel (%p678) target = $region60
    $region59: #{decoder_forward.13} parent=5 // pred_region
      %s681 = ssub.s32 %s14, 2
      // Predicated region
      $region61: #{decoder_forward.13} parent=59 // pred_check
        %p682 = pneg %p253
      $region62: #{decoder_forward.13} parent=59 // pred_check_branch
        %684 = sbr.rel (%p682) target = $region64
      $region63: #{decoder_forward.13} parent=59 // pred_region
        %p685 = scmp.lt.s32.totalorder %s25, 1
        %s686 = scalar_select %p685, %s25, 1
        %p687 = scmp.lt.s32.totalorder %s26, 0
        %s688 = scalar_select %p687, %s26, 0
        %s689 = smul.addr %s686, 4
        %s690 = sadd.s32 %s688, %s689
        %s691 = smul.addr %s690, 4
        %s692 = scalar_lea.vmem %s8, %s691
      $region64: #{decoder_forward.13} parent=59 // pred_fallthru
        _
    $region60: #{decoder_forward.13} parent=5 // pred_fallthru
      _
  $region6: #{decoder_forward.13} parent=0 // loop_footer
    %s18 = sadd.s32 1, %s14
  $region7: #{decoder_forward.13} parent=0 // loop_footer_branch
    %13 = sbr.rel target = $region3
  $region8: #{decoder_forward.13} parent=0 // loop_exit
    _

// kernel: decoder_forward.15
$region0: #{decoder_forward.15}
  #allocation0 [shape = 'u32[]', space=smem, size = 0x4, offset = 0x4, fixed_abs, tag = 'smem constant byte address 0x4 - core index']
  #allocation1 [shape = 'u32[144,128]{1,0:T(1,128)}', space=vmem, size = 0x12000, scoped, tag = 'internal scratch']
  #allocation2 [shape = 'f32[1,128]{1,0:T(1,128)}', space=vmem, size = 0x200, scoped, tag = 'scratch operand']
  #allocation3 [shape = 'f32[1,128]{1,0:T(1,128)}', space=vmem, size = 0x200, scoped, tag = 'scratch operand']
  #allocation4 [shape = 'f32[16,128]{1,0:T(8,128)}', space=vmem, size = 0x2000, scoped, tag = 'scratch operand']
  %s0 = inlined_call_operand.vmem [shape: bf16[2,16,128], index: 0, kind: input, shape index: {}]
  %s1 = inlined_call_operand.vmem [shape: bf16[2,16,128], index: 1, kind: input, shape index: {}]
  %s2 = inlined_call_operand.vmem [shape: bf16[2,2,16,128], index: 2, kind: input, shape index: {}]
  %s3 = inlined_call_operand.vmem [shape: f32[2,128,1], index: 3, kind: input, shape index: {}]
  %s4 = inlined_call_operand.vmem [shape: f32[2,128,1], index: 4, kind: input, shape index: {}]
  %s5 = inlined_call_operand.vmem [shape: bf16[2,16,128], index: 5, kind: output, shape index: {}]
  %s6 = sld [smem:[#allocation0]]
  $region61: #{decoder_forward.15} parent=0
    _
  %s8 = ssub.s32 1, %s6
  %s9 = scalar_select 0, %s8, %s6
  loop: start=0, step=1, limit=4
  $region2: #{decoder_forward.15} parent=0 // loop_pre_header
    _
  $region3: #{decoder_forward.15} parent=0 // loop_header
    %s11 = sphi 0, %s15
    %p12 = scmp.ge.s32.totalorder %s11, 4
    %s18 = sphi 0, %s37
    %s19 = sphi 0, %s33
    %s20 = sphi 0, %s29
    %s21 = sphi 0, %s18
    %s22 = sphi 0, %s19
    %s23 = sphi 0, %s20
    %s24 = sphi 0, %s21
    %s25 = sphi 0, %s22
    %s26 = sphi 0, %s23
    %s42 = sphi 0, %s44
    %s45 = sphi 0, %s42
    %s46 = sphi 0, %s45
    %s62 = sphi 0, %s46
    %s70 = sphi 0, %s72
    %s73 = sphi 0, %s70
    %s74 = sphi 0, %s73
    %s90 = sphi 0, %s74
    %s98 = sphi 0, %s100
    %s101 = sphi 0, %s98
    %s102 = sphi 0, %s101
    %s118 = sphi 0, %s102
    %s126 = sphi 0, %s128
    %s129 = sphi 0, %s126
    %s130 = sphi 0, %s129
    %s146 = sphi 0, %s130
    %s154 = sphi 0, %s156
    %s157 = sphi 0, %s154
    %s158 = sphi 0, %s157
    %s174 = sphi 0, %s158
    %s182 = sphi 0, %s184
    %s185 = sphi 0, %s182
    %s186 = sphi 0, %s185
    %s202 = sphi 0, %s186
  $region4: #{decoder_forward.15} parent=0 // loop_header_branch
    %14 = sbr.rel (%p12) target = $region8
  $region5: #{decoder_forward.15} parent=0 // loop_body
    %s16 = ssub.s32 %s11, 1
    %s17 = ssub.s32 %s11, 2
    %s27 = sadd.s32 1, %s20
    %p28 = scmp.ge.s32.totalorder %s27, 1
    %s29 = scalar_select %p28, 0, %s27
    %s30 = sadd.s32 1, %s19
    %s31 = scalar_select %p28, %s30, %s19
    %p32 = scmp.ge.s32.totalorder %s31, 1
    %s33 = scalar_select %p32, 0, %s31
    %s34 = sadd.s32 1, %s18
    %s35 = scalar_select %p32, %s34, %s18
    %p36 = scmp.ge.s32.totalorder %s35, 2
    %s37 = scalar_select %p36, 0, %s35
    %s38 = ssub.s32 %s18, %s37
    %s39 = ssub.s32 %s19, %s33
    %s40 = sor.u32 %s38, %s39
    %p41 = scmp.eq.s32.totalorder %s40, 0
    %s43 = sadd.s32 %s42, 1
    %s44 = scalar_select %p41, %s42, %s43
    %p47 = pneg %p41
    %p48 = scmp.eq.s32.totalorder %s11, 1
    %p49 = por %p47, %p48
    %p50 = scmp.ne.s32.totalorder %s42, %s45
    %p51 = scmp.eq.s32.totalorder %s11, 0
    %p52 = por %p50, %p51
    %p53 = scmp.ne.s32.totalorder %s42, %s45
    %p54 = scmp.eq.s32.totalorder %s16, 1
    %p55 = por %p53, %p54
    %p56 = scmp.ne.s32.totalorder %s45, %s46
    %p57 = scmp.eq.s32.totalorder %s16, 0
    %p58 = por %p56, %p57
    %p59 = scmp.ne.s32.totalorder %s45, %s46
    %p60 = scmp.eq.s32.totalorder %s17, 1
    %p61 = por %p59, %p60
    %p63 = scmp.ne.s32.totalorder %s46, %s62
    %p64 = scmp.eq.s32.totalorder %s17, 0
    %p65 = por %p63, %p64
    %s66 = ssub.s32 %s18, %s37
    %s67 = ssub.s32 %s20, %s29
    %s68 = sor.u32 %s66, %s67
    %p69 = scmp.eq.s32.totalorder %s68, 0
    %s71 = sadd.s32 %s70, 1
    %s72 = scalar_select %p69, %s70, %s71
    %p75 = pneg %p69
    %p76 = scmp.eq.s32.totalorder %s11, 1
    %p77 = por %p75, %p76
    %p78 = scmp.ne.s32.totalorder %s70, %s73
    %p79 = scmp.eq.s32.totalorder %s11, 0
    %p80 = por %p78, %p79
    %p81 = scmp.ne.s32.totalorder %s70, %s73
    %p82 = scmp.eq.s32.totalorder %s16, 1
    %p83 = por %p81, %p82
    %p84 = scmp.ne.s32.totalorder %s73, %s74
    %p85 = scmp.eq.s32.totalorder %s16, 0
    %p86 = por %p84, %p85
    %p87 = scmp.ne.s32.totalorder %s73, %s74
    %p88 = scmp.eq.s32.totalorder %s17, 1
    %p89 = por %p87, %p88
    %p91 = scmp.ne.s32.totalorder %s74, %s90
    %p92 = scmp.eq.s32.totalorder %s17, 0
    %p93 = por %p91, %p92
    %s94 = ssub.s32 %s18, %s37
    %s95 = ssub.s32 %s20, %s29
    %s96 = sor.u32 %s94, %s95
    %p97 = scmp.eq.s32.totalorder %s96, 0
    %s99 = sadd.s32 %s98, 1
    %s100 = scalar_select %p97, %s98, %s99
    %p103 = pneg %p97
    %p104 = scmp.eq.s32.totalorder %s11, 1
    %p105 = por %p103, %p104
    %p106 = scmp.ne.s32.totalorder %s98, %s101
    %p107 = scmp.eq.s32.totalorder %s11, 0
    %p108 = por %p106, %p107
    %p109 = scmp.ne.s32.totalorder %s98, %s101
    %p110 = scmp.eq.s32.totalorder %s16, 1
    %p111 = por %p109, %p110
    %p112 = scmp.ne.s32.totalorder %s101, %s102
    %p113 = scmp.eq.s32.totalorder %s16, 0
    %p114 = por %p112, %p113
    %p115 = scmp.ne.s32.totalorder %s101, %s102
    %p116 = scmp.eq.s32.totalorder %s17, 1
    %p117 = por %p115, %p116
    %p119 = scmp.ne.s32.totalorder %s102, %s118
    %p120 = scmp.eq.s32.totalorder %s17, 0
    %p121 = por %p119, %p120
    %s122 = ssub.s32 %s18, %s37
    %s123 = ssub.s32 %s20, %s29
    %s124 = sor.u32 %s122, %s123
    %p125 = scmp.eq.s32.totalorder %s124, 0
    %s127 = sadd.s32 %s126, 1
    %s128 = scalar_select %p125, %s126, %s127
    %p131 = pneg %p125
    %p132 = scmp.eq.s32.totalorder %s11, 1
    %p133 = por %p131, %p132
    %p134 = scmp.ne.s32.totalorder %s126, %s129
    %p135 = scmp.eq.s32.totalorder %s11, 0
    %p136 = por %p134, %p135
    %p137 = scmp.ne.s32.totalorder %s126, %s129
    %p138 = scmp.eq.s32.totalorder %s16, 1
    %p139 = por %p137, %p138
    %p140 = scmp.ne.s32.totalorder %s129, %s130
    %p141 = scmp.eq.s32.totalorder %s16, 0
    %p142 = por %p140, %p141
    %p143 = scmp.ne.s32.totalorder %s129, %s130
    %p144 = scmp.eq.s32.totalorder %s17, 1
    %p145 = por %p143, %p144
    %p147 = scmp.ne.s32.totalorder %s130, %s146
    %p148 = scmp.eq.s32.totalorder %s17, 0
    %p149 = por %p147, %p148
    %s150 = ssub.s32 %s18, %s37
    %s151 = ssub.s32 %s20, %s29
    %s152 = sor.u32 %s150, %s151
    %p153 = scmp.eq.s32.totalorder %s152, 0
    %s155 = sadd.s32 %s154, 1
    %s156 = scalar_select %p153, %s154, %s155
    %p159 = pneg %p153
    %p160 = scmp.eq.s32.totalorder %s11, 1
    %p161 = por %p159, %p160
    %p162 = scmp.ne.s32.totalorder %s154, %s157
    %p163 = scmp.eq.s32.totalorder %s11, 0
    %p164 = por %p162, %p163
    %p165 = scmp.ne.s32.totalorder %s154, %s157
    %p166 = scmp.eq.s32.totalorder %s16, 1
    %p167 = por %p165, %p166
    %p168 = scmp.ne.s32.totalorder %s157, %s158
    %p169 = scmp.eq.s32.totalorder %s16, 0
    %p170 = por %p168, %p169
    %p171 = scmp.ne.s32.totalorder %s157, %s158
    %p172 = scmp.eq.s32.totalorder %s17, 1
    %p173 = por %p171, %p172
    %p175 = scmp.ne.s32.totalorder %s158, %s174
    %p176 = scmp.eq.s32.totalorder %s17, 0
    %p177 = por %p175, %p176
    %s178 = ssub.s32 %s18, %s37
    %s179 = ssub.s32 %s19, %s33
    %s180 = sor.u32 %s178, %s179
    %p181 = scmp.eq.s32.totalorder %s180, 0
    %s183 = sadd.s32 %s182, 1
    %s184 = scalar_select %p181, %s182, %s183
    %p187 = pneg %p181
    %p188 = scmp.eq.s32.totalorder %s11, 1
    %p189 = por %p187, %p188
    %p190 = scmp.ne.s32.totalorder %s182, %s185
    %p191 = scmp.eq.s32.totalorder %s11, 0
    %p192 = por %p190, %p191
    %p193 = scmp.ne.s32.totalorder %s182, %s185
    %p194 = scmp.eq.s32.totalorder %s16, 1
    %p195 = por %p193, %p194
    %p196 = scmp.ne.s32.totalorder %s185, %s186
    %p197 = scmp.eq.s32.totalorder %s16, 0
    %p198 = por %p196, %p197
    %p199 = scmp.ne.s32.totalorder %s185, %s186
    %p200 = scmp.eq.s32.totalorder %s17, 1
    %p201 = por %p199, %p200
    %p203 = scmp.ne.s32.totalorder %s186, %s202
    %p204 = scmp.eq.s32.totalorder %s17, 0
    %p205 = por %p203, %p204
    %p206 = scmp.le.s32.totalorder 1, %s11
    %p207 = scmp.lt.s32.totalorder %s11, 3
    %p208 = pnand %p206, %p207
    %p209 = pneg %p208
    // Predicated region
    $region9: #{decoder_forward.15} parent=5 // pred_check
      _
    $region10: #{decoder_forward.15} parent=5 // pred_check_branch
      %211 = sbr.rel (%p208) target = $region12
    $region11: #{decoder_forward.15} parent=5 // pred_region
      %s212 = ssub.s32 %s11, 1
    $region12: #{decoder_forward.15} parent=5 // pred_fallthru
      _
    %p213 = scmp.lt.s32.totalorder %s11, 2
    // Predicated region
    $region13: #{decoder_forward.15} parent=5 // pred_check
      %p214 = pneg %p213
    $region14: #{decoder_forward.15} parent=5 // pred_check_branch
      %216 = sbr.rel (%p214) target = $region16
    $region15: #{decoder_forward.15} parent=5 // pred_region
      // Predicated region
      $region17: #{decoder_forward.15} parent=15 // pred_check
        %p217 = pneg %p52
      $region18: #{decoder_forward.15} parent=15 // pred_check_branch
        %219 = sbr.rel (%p217) target = $region20
      $region19: #{decoder_forward.15} parent=15 // pred_region
        %p220 = scmp.lt.s32.totalorder %s18, 1
        %s221 = scalar_select %p220, %s18, 1
        %p222 = scmp.lt.s32.totalorder %s19, 0
        %s223 = scalar_select %p222, %s19, 0
        %s224 = smul.addr %s221, 2
        %s225 = sadd.s32 %s223, %s224
        %s226 = smul.addr %s225, 4
        %s227 = scalar_lea.vmem %s0, %s226
      $region20: #{decoder_forward.15} parent=15 // pred_fallthru
        _
      // Predicated region
      $region21: #{decoder_forward.15} parent=15 // pred_check
        %p228 = pneg %p80
      $region22: #{decoder_forward.15} parent=15 // pred_check_branch
        %230 = sbr.rel (%p228) target = $region24
      $region23: #{decoder_forward.15} parent=15 // pred_region
        %p231 = scmp.lt.s32.totalorder %s18, 1
        %s232 = scalar_select %p231, %s18, 1
        %p233 = scmp.lt.s32.totalorder %s20, 0
        %s234 = scalar_select %p233, %s20, 0
        %s235 = smul.addr %s232, 2
        %s236 = sadd.s32 %s234, %s235
        %s237 = smul.addr %s236, 4
        %s238 = scalar_lea.vmem %s1, %s237
      $region24: #{decoder_forward.15} parent=15 // pred_fallthru
        _
      // Predicated region
      $region25: #{decoder_forward.15} parent=15 // pred_check
        %p239 = pneg %p108
      $region26: #{decoder_forward.15} parent=15 // pred_check_branch
        %241 = sbr.rel (%p239) target = $region28
      $region27: #{decoder_forward.15} parent=15 // pred_region
        %p242 = scmp.lt.s32.totalorder %s18, 1
        %s243 = scalar_select %p242, %s18, 1
        %p244 = scmp.lt.s32.totalorder %s20, 0
        %s245 = scalar_select %p244, %s20, 0
        %s246 = sadd.s32 %s245, 2
        %s247 = smul.addr %s243, 4
        %s248 = sadd.s32 %s246, %s247
        %s249 = smul.addr %s248, 4
        %s250 = scalar_lea.vmem %s2, %s249
      $region28: #{decoder_forward.15} parent=15 // pred_fallthru
        _
      // Predicated region
      $region29: #{decoder_forward.15} parent=15 // pred_check
        %p251 = pneg %p136
      $region30: #{decoder_forward.15} parent=15 // pred_check_branch
        %253 = sbr.rel (%p251) target = $region32
      $region31: #{decoder_forward.15} parent=15 // pred_region
        %s254 = smul.u32 16, %s20
        %p255 = scmp.lt.s32.totalorder %s18, 1
        %s256 = scalar_select %p255, %s18, 1
        %p257 = scmp.lt.s32.totalorder %s254, 15
        %s258 = scalar_select %p257, %s254, 15
        %s259 = smul.addr %s256, 16
        %s260 = sadd.s32 %s258, %s259
        %s261 = smul.addr %s260, 8
        %s262 = scalar_lea.vmem %s3, %s261
        %s263 = smul.u32 16, %s20
      $region32: #{decoder_forward.15} parent=15 // pred_fallthru
        _
      // Predicated region
      $region33: #{decoder_forward.15} parent=15 // pred_check
        %p264 = pneg %p164
      $region34: #{decoder_forward.15} parent=15 // pred_check_branch
        %266 = sbr.rel (%p264) target = $region36
      $region35: #{decoder_forward.15} parent=15 // pred_region
        %s267 = smul.u32 16, %s20
        %p268 = scmp.lt.s32.totalorder %s18, 1
        %s269 = scalar_select %p268, %s18, 1
        %p270 = scmp.lt.s32.totalorder %s267, 15
        %s271 = scalar_select %p270, %s267, 15
        %s272 = smul.addr %s269, 16
        %s273 = sadd.s32 %s271, %s272
        %s274 = smul.addr %s273, 8
        %s275 = scalar_lea.vmem %s4, %s274
        %s276 = smul.u32 16, %s20
      $region36: #{decoder_forward.15} parent=15 // pred_fallthru
        _
    $region16: #{decoder_forward.15} parent=5 // pred_fallthru
      _
    %p277 = scmp.le.s32.totalorder 1, %s11
    %p278 = scmp.lt.s32.totalorder %s11, 3
    %p279 = pnand %p277, %p278
    %p280 = pneg %p279
    // Predicated region
    $region37: #{decoder_forward.15} parent=5 // pred_check
      _
    $region38: #{decoder_forward.15} parent=5 // pred_check_branch
      %282 = sbr.rel (%p279) target = $region40
    $region39: #{decoder_forward.15} parent=5 // pred_region
      %s283 = ssub.s32 %s11, 1
      %p284 = scmp.lt.s32.totalorder %s21, 1
      %s285 = scalar_select %p284, %s21, 1
      %p286 = scmp.lt.s32.totalorder %s22, 0
      %s287 = scalar_select %p286, %s22, 0
      %s288 = smul.addr %s285, 2
      %s289 = sadd.s32 %s287, %s288
      %s290 = smul.addr %s289, 4
      %s291 = scalar_lea.vmem %s0, %s290
      %p292 = pneg %p58
      %p293 = pneg %p55
      %p294 = scmp.lt.s32.totalorder %s21, 1
      %s295 = scalar_select %p294, %s21, 1
      %p296 = scmp.lt.s32.totalorder %s23, 0
      %s297 = scalar_select %p296, %s23, 0
      %s298 = smul.addr %s295, 2
      %s299 = sadd.s32 %s297, %s298
      %s300 = smul.addr %s299, 4
      %s301 = scalar_lea.vmem %s1, %s300
      %p302 = pneg %p86
      %p303 = pneg %p83
      %p304 = scmp.lt.s32.totalorder %s21, 1
      %s305 = scalar_select %p304, %s21, 1
      %p306 = scmp.lt.s32.totalorder %s23, 0
      %s307 = scalar_select %p306, %s23, 0
      %s308 = sadd.s32 %s307, 2
      %s309 = smul.addr %s305, 4
      %s310 = sadd.s32 %s308, %s309
      %s311 = smul.addr %s310, 4
      %s312 = scalar_lea.vmem %s2, %s311
      %p313 = pneg %p114
      %p314 = pneg %p111
      %s315 = smul.u32 16, %s23
      %p316 = scmp.lt.s32.totalorder %s21, 1
      %s317 = scalar_select %p316, %s21, 1
      %p318 = scmp.lt.s32.totalorder %s315, 15
      %s319 = scalar_select %p318, %s315, 15
      %s320 = smul.addr %s317, 16
      %s321 = sadd.s32 %s319, %s320
      %s322 = smul.addr %s321, 8
      %s323 = scalar_lea.vmem %s3, %s322
      %p324 = pneg %p142
      %p325 = pneg %p139
      %s326 = smul.u32 16, %s23
      %p327 = scmp.lt.s32.totalorder %s21, 1
      %s328 = scalar_select %p327, %s21, 1
      %p329 = scmp.lt.s32.totalorder %s326, 15
      %s330 = scalar_select %p329, %s326, 15
      %s331 = smul.addr %s328, 16
      %s332 = sadd.s32 %s330, %s331
      %s333 = smul.addr %s332, 8
      %s334 = scalar_lea.vmem %s4, %s333
      %p335 = pneg %p170
      %p336 = pneg %p167
      %p337 = pneg %p198
      %p338 = pneg %p195
      %p339 = scmp.lt.s32.totalorder %s21, 1
      %s340 = scalar_select %p339, %s21, 1
      %p341 = scmp.lt.s32.totalorder %s22, 0
      %s342 = scalar_select %p341, %s22, 0
      %s343 = smul.addr %s340, 2
      %s344 = sadd.s32 %s342, %s343
      %s345 = smul.addr %s344, 4
      %s346 = scalar_lea.vmem %s5, %s345
      %p347 = scmp.lt.s32.totalorder %s21, 1
      %s348 = scalar_select %p347, %s21, 1
      %p349 = scmp.lt.s32.totalorder %s22, 0
      %s350 = scalar_select %p349, %s22, 0
      %s351 = smul.addr %s348, 2
      %s352 = sadd.s32 %s350, %s351
      %s353 = smul.addr %s352, 4
      %s354 = scalar_lea.vmem %s0, %s353
      %p355 = scmp.lt.s32.totalorder %s21, 1
      %s356 = scalar_select %p355, %s21, 1
      %p357 = scmp.lt.s32.totalorder %s23, 0
      %s358 = scalar_select %p357, %s23, 0
      %s359 = smul.addr %s356, 2
      %s360 = sadd.s32 %s358, %s359
      %s361 = smul.addr %s360, 4
      %s362 = scalar_lea.vmem %s1, %s361
      %p363 = scmp.lt.s32.totalorder %s21, 1
      %s364 = scalar_select %p363, %s21, 1
      %p365 = scmp.lt.s32.totalorder %s23, 0
      %s366 = scalar_select %p365, %s23, 0
      %s367 = sadd.s32 %s366, 2
      %s368 = smul.addr %s364, 4
      %s369 = sadd.s32 %s367, %s368
      %s370 = smul.addr %s369, 4
      %s371 = scalar_lea.vmem %s2, %s370
      %s372 = smul.u32 16, %s23
      %p373 = scmp.lt.s32.totalorder %s21, 1
      %s374 = scalar_select %p373, %s21, 1
      %p375 = scmp.lt.s32.totalorder %s372, 15
      %s376 = scalar_select %p375, %s372, 15
      %s377 = smul.addr %s374, 16
      %s378 = sadd.s32 %s376, %s377
      %s379 = smul.addr %s378, 8
      %s380 = scalar_lea.vmem %s3, %s379
      %s381 = smul.u32 16, %s23
      %s382 = smul.u32 16, %s23
      %p383 = scmp.lt.s32.totalorder %s21, 1
      %s384 = scalar_select %p383, %s21, 1
      %p385 = scmp.lt.s32.totalorder %s382, 15
      %s386 = scalar_select %p385, %s382, 15
      %s387 = smul.addr %s384, 16
      %s388 = sadd.s32 %s386, %s387
      %s389 = smul.addr %s388, 8
      %s390 = scalar_lea.vmem %s4, %s389
      %s391 = smul.u32 16, %s23
      %p392 = scmp.lt.s32.totalorder %s21, 1
      %s393 = scalar_select %p392, %s21, 1
      %p394 = scmp.lt.s32.totalorder %s22, 0
      %s395 = scalar_select %p394, %s22, 0
      %s396 = smul.addr %s393, 2
      %s397 = sadd.s32 %s395, %s396
      %s398 = smul.addr %s397, 4
      %s399 = scalar_lea.vmem %s5, %s398
      %p401 = scmp.eq.s32.totalorder %s23, 0
      // Predicated region
      $region41: #{decoder_forward.15} parent=39 // pred_check
        %p402 = pneg %p401
      $region42: #{decoder_forward.15} parent=39 // pred_check_branch
        %404 = sbr.rel (%p402) target = $region44
      $region43: #{decoder_forward.15} parent=39 // pred_region
        %405 = vst [vmem:[#allocation2] sm:$0x1] -1e+30
        %406 = vst [vmem:[#allocation3] sm:$0x1] 0.0
        %407 = vst [vmem:[#allocation4] sm:$0xff] 0.0
        %408 = vst [vmem:[#allocation4 + $0x8] sm:$0xff] 0.0
      $region44: #{decoder_forward.15} parent=39 // pred_fallthru
        _
      %v409 = vld [vmem:[%s354] sm:$0xf]
      %v410 = vld [vmem:[%s354 + $0x4] sm:$0xf]
      %v411 = vunpack.c.l.bf16 %v409
      %v412 = vunpack.c.l.bf16 %v410
      %v413 = vld [vmem:[%s362] sm:$0xf]
      %v414 = vld [vmem:[%s362 + $0x4] sm:$0xf]
      %v415 = vunpack.c.l.bf16 %v413
      %v416 = vunpack.c.l.bf16 %v414
      %v417 = vld [vmem:[%s371] sm:$0xf]
      %v418 = vld [vmem:[%s371 + $0x4] sm:$0xf]
      %419 = vxpose.xlu0.b32.start [1/16] %v415, 128
      %420 = vxpose.xlu0.b32.cont [2/16] %v416, 128
      %421 = vxpose.xlu0.b32.cont [3/16] 0.0, 128
      %422 = vxpose.xlu0.b32.cont [4/16] 0.0, 128
      %423 = vxpose.xlu0.b32.cont [5/16] 0.0, 128
      %424 = vxpose.xlu0.b32.cont [6/16] 0.0, 128
      %425 = vxpose.xlu0.b32.cont [7/16] 0.0, 128
      %426 = vxpose.xlu0.b32.cont [8/16] 0.0, 128
      %427 = vxpose.xlu0.b32.cont [9/16] 0.0, 128
      %428 = vxpose.xlu0.b32.cont [10/16] 0.0, 128
      %429 = vxpose.xlu0.b32.cont [11/16] 0.0, 128
      %430 = vxpose.xlu0.b32.cont [12/16] 0.0, 128
      %431 = vxpose.xlu0.b32.cont [13/16] 0.0, 128
      %432 = vxpose.xlu0.b32.cont [14/16] 0.0, 128
      %433 = vxpose.xlu0.b32.cont [15/16] 0.0, 128
      %434 = vxpose.xlu0.b32.end [16/16] 0.0, 128
      %v435 = vpop.trf.xlu0
      %v436 = vpop.trf.xlu0
      %v437 = vpop.trf.xlu0
      %v438 = vpop.trf.xlu0
      %v439 = vpop.trf.xlu0
      %v440 = vpop.trf.xlu0
      %v441 = vpop.trf.xlu0
      %v442 = vpop.trf.xlu0
      %v443 = vpop.trf.xlu0
      %v444 = vpop.trf.xlu0
      %v445 = vpop.trf.xlu0
      %v446 = vpop.trf.xlu0
      %v447 = vpop.trf.xlu0
      %v448 = vpop.trf.xlu0
      %v449 = vpop.trf.xlu0
      %v450 = vpop.trf.xlu0
      %vm451 = vcmask 130048
      %v453 = vsel %vm451, %v435, 0
      %v456 = vsel %vm451, %v436, 0
      %v459 = vsel %vm451, %v437, 0
      %v462 = vsel %vm451, %v438, 0
      %v465 = vsel %vm451, %v439, 0
      %v468 = vsel %vm451, %v440, 0
      %v471 = vsel %vm451, %v441, 0
      %v474 = vsel %vm451, %v442, 0
      %v477 = vsel %vm451, %v443, 0
      %v480 = vsel %vm451, %v444, 0
      %v483 = vsel %vm451, %v445, 0
      %v486 = vsel %vm451, %v446, 0
      %v489 = vsel %vm451, %v447, 0
      %v492 = vsel %vm451, %v448, 0
      %v495 = vsel %vm451, %v449, 0
      %v498 = vsel %vm451, %v450, 0
      %500 = vmatprep.subr.mxu0 0.0
      %501 = vmatpush1.msra.mxu0 %v411
      %502 = vmatprep.subr.mxu0 0.0
      %503 = vmatpush1.msra.mxu0 %v412
      %504 = vmatprep.subr.mxu0 0.0
      %505 = vmatpush1.msra.mxu0 0.0
      %506 = vmatprep.subr.mxu0 0.0
      %507 = vmatpush1.msra.mxu0 0.0
      %508 = vmatprep.subr.mxu0 0.0
      %509 = vmatpush1.msra.mxu0 0.0
      %510 = vmatprep.subr.mxu0 0.0
      %511 = vmatpush1.msra.mxu0 0.0
      %512 = vmatprep.subr.mxu0 0.0
      %513 = vmatpush1.msra.mxu0 0.0
      %514 = vmatprep.subr.mxu0 0.0
      %515 = vmatpush1.msra.mxu0 0.0
      %516 = vmatprep.subr.mxu0 0.0
      %517 = vmatpush1.msra.mxu0 0.0
      %518 = vmatprep.subr.mxu0 0.0
      %519 = vmatpush1.msra.mxu0 0.0
      %520 = vmatprep.subr.mxu0 0.0
      %521 = vmatpush1.msra.mxu0 0.0
      %522 = vmatprep.subr.mxu0 0.0
      %523 = vmatpush1.msra.mxu0 0.0
      %524 = vmatprep.subr.mxu0 0.0
      %525 = vmatpush1.msra.mxu0 0.0
      %526 = vmatprep.subr.mxu0 0.0
      %527 = vmatpush1.msra.mxu0 0.0
      %528 = vmatprep.subr.mxu0 0.0
      %529 = vmatpush1.msra.mxu0 0.0
      %530 = vmatprep.subr.mxu0 0.0
      %531 = vmatpush1.msra.mxu0 0.0
      %532 = vmatprep.subr.mxu0 0.0
      %533 = vmatpush1.msra.mxu0 0.0
      %534 = vmatprep.subr.mxu0 0.0
      %535 = vmatpush1.msra.mxu0 0.0
      %536 = vmatprep.subr.mxu0 0.0
      %537 = vmatpush1.msra.mxu0 0.0
      %538 = vmatprep.subr.mxu0 0.0
      %539 = vmatpush1.msra.mxu0 0.0
      %540 = vmatprep.subr.mxu0 0.0
      %541 = vmatpush1.msra.mxu0 0.0
      %542 = vmatprep.subr.mxu0 0.0
      %543 = vmatpush1.msra.mxu0 0.0
      %544 = vmatprep.subr.mxu0 0.0
      %545 = vmatpush1.msra.mxu0 0.0
      %546 = vmatprep.subr.mxu0 0.0
      %547 = vmatpush1.msra.mxu0 0.0
      %548 = vmatprep.subr.mxu0 0.0
      %549 = vmatpush1.msra.mxu0 0.0
      %550 = vmatprep.subr.mxu0 0.0
      %551 = vmatpush1.msra.mxu0 0.0
      %552 = vmatprep.subr.mxu0 0.0
      %553 = vmatpush1.msra.mxu0 0.0
      %554 = vmatprep.subr.mxu0 0.0
      %555 = vmatpush1.msra.mxu0 0.0
      %556 = vmatprep.subr.mxu0 0.0
      %557 = vmatpush1.msra.mxu0 0.0
      %558 = vmatprep.subr.mxu0 0.0
      %559 = vmatpush1.msra.mxu0 0.0
      %560 = vmatprep.subr.mxu0 0.0
      %561 = vmatpush1.msra.mxu0 0.0
      %562 = vmatprep.subr.mxu0 0.0
      %563 = vmatpush1.msra.mxu0 0.0
      %564 = vmatprep.mubr.f32.mxu0 0.0
      %565 = vmatmul.mubr.f32.gmra.mrb[0].mxu0 %v453
      %v566 = vpop.f32.mrb[0].mxu0
      %v567 = vadd.f32 0.0, %v566
      %v568 = vpop.f32.mrb[0].mxu0
      %569 = vmatprep.mubr.f32.mxu0 0.0
      %570 = vmatmul.mubr.f32.gmra.mrb[0].mxu0 %v456
      %v571 = vpop.f32.mrb[0].mxu0
      %v572 = vadd.f32 0.0, %v571
      %v573 = vpop.f32.mrb[0].mxu0
      %574 = vmatprep.mubr.f32.mxu0 0.0
      %575 = vmatmul.mubr.f32.gmra.mrb[0].mxu0 %v459
      %v576 = vpop.f32.mrb[0].mxu0
      %v577 = vadd.f32 0.0, %v576
      %v578 = vpop.f32.mrb[0].mxu0
      %579 = vmatprep.mubr.f32.mxu0 0.0
      %580 = vmatmul.mubr.f32.gmra.mrb[0].mxu0 %v462
      %v581 = vpop.f32.mrb[0].mxu0
      %v582 = vadd.f32 0.0, %v581
      %v583 = vpop.f32.mrb[0].mxu0
      %584 = vmatprep.mubr.f32.mxu0 0.0
      %585 = vmatmul.mubr.f32.gmra.mrb[0].mxu0 %v465
      %v586 = vpop.f32.mrb[0].mxu0
      %v587 = vadd.f32 0.0, %v586
      %v588 = vpop.f32.mrb[0].mxu0
      %589 = vmatprep.mubr.f32.mxu0 0.0
      %590 = vmatmul.mubr.f32.gmra.mrb[0].mxu0 %v468
      %v591 = vpop.f32.mrb[0].mxu0
      %v592 = vadd.f32 0.0, %v591
      %v593 = vpop.f32.mrb[0].mxu0
      %594 = vmatprep.mubr.f32.mxu0 0.0
      %595 = vmatmul.mubr.f32.gmra.mrb[0].mxu0 %v471
      %v596 = vpop.f32.mrb[0].mxu0
      %v597 = vadd.f32 0.0, %v596
      %v598 = vpop.f32.mrb[0].mxu0
      %599 = vmatprep.mubr.f32.mxu0 0.0
      %600 = vmatmul.mubr.f32.gmra.mrb[0].mxu0 %v474
      %v601 = vpop.f32.mrb[0].mxu0
      %v602 = vadd.f32 0.0, %v601
      %v603 = vpop.f32.mrb[0].mxu0
      %604 = vmatprep.mubr.f32.mxu0 0.0
      %605 = vmatmul.mubr.f32.gmra.mrb[0].mxu0 %v477
      %v606 = vpop.f32.mrb[0].mxu0
      %v607 = vadd.f32 0.0, %v606
      %v608 = vpop.f32.mrb[0].mxu0
      %609 = vmatprep.mubr.f32.mxu0 0.0
      %610 = vmatmul.mubr.f32.gmra.mrb[0].mxu0 %v480
      %v611 = vpop.f32.mrb[0].mxu0
      %v612 = vadd.f32 0.0, %v611
      %v613 = vpop.f32.mrb[0].mxu0
      %614 = vmatprep.mubr.f32.mxu0 0.0
      %615 = vmatmul.mubr.f32.gmra.mrb[0].mxu0 %v483
      %v616 = vpop.f32.mrb[0].mxu0
      %v617 = vadd.f32 0.0, %v616
      %v618 = vpop.f32.mrb[0].mxu0
      %619 = vmatprep.mubr.f32.mxu0 0.0
      %620 = vmatmul.mubr.f32.gmra.mrb[0].mxu0 %v486
      %v621 = vpop.f32.mrb[0].mxu0
      %v622 = vadd.f32 0.0, %v621
      %v623 = vpop.f32.mrb[0].mxu0
      %624 = vmatprep.mubr.f32.mxu0 0.0
      %625 = vmatmul.mubr.f32.gmra.mrb[0].mxu0 %v489
      %v626 = vpop.f32.mrb[0].mxu0
      %v627 = vadd.f32 0.0, %v626
      %v628 = vpop.f32.mrb[0].mxu0
      %629 = vmatprep.mubr.f32.mxu0 0.0
      %630 = vmatmul.mubr.f32.gmra.mrb[0].mxu0 %v492
      %v631 = vpop.f32.mrb[0].mxu0
      %v632 = vadd.f32 0.0, %v631
      %v633 = vpop.f32.mrb[0].mxu0
      %634 = vmatprep.mubr.f32.mxu0 0.0
      %635 = vmatmul.mubr.f32.gmra.mrb[0].mxu0 %v495
      %v636 = vpop.f32.mrb[0].mxu0
      %v637 = vadd.f32 0.0, %v636
      %v638 = vpop.f32.mrb[0].mxu0
      %639 = vmatprep.mubr.f32.mxu0 0.0
      %640 = vmatmul.mubr.f32.gmra.mrb[0].mxu0 %v498
      %v641 = vpop.f32.mrb[0].mxu0
      %v642 = vadd.f32 0.0, %v641
      %v643 = vpop.f32.mrb[0].mxu0
      %644 = vdwg.mxu0
      %v645 = vld [vmem:[%s380] sm:$0xff]
      %v646 = vld [vmem:[%s380 + $0x8] sm:$0xff]
      %v647 = vld [vmem:[%s380 + $0x10] sm:$0xff]
      %v648 = vld [vmem:[%s380 + $0x18] sm:$0xff]
      %v649 = vld [vmem:[%s380 + $0x20] sm:$0xff]
      %v650 = vld [vmem:[%s380 + $0x28] sm:$0xff]
      %v651 = vld [vmem:[%s380 + $0x30] sm:$0xff]
      %v652 = vld [vmem:[%s380 + $0x38] sm:$0xff]
      %v653 = vld [vmem:[%s380 + $0x40] sm:$0xff]
      %v654 = vld [vmem:[%s380 + $0x48] sm:$0xff]
      %v655 = vld [vmem:[%s380 + $0x50] sm:$0xff]
      %v656 = vld [vmem:[%s380 + $0x58] sm:$0xff]
      %v657 = vld [vmem:[%s380 + $0x60] sm:$0xff]
      %v658 = vld [vmem:[%s380 + $0x68] sm:$0xff]
      %v659 = vld [vmem:[%s380 + $0x70] sm:$0xff]
      %v660 = vld [vmem:[%s380 + $0x78] sm:$0xff]
      %662 = vset.pattern.permute.xlu0 0
      %663 = vperm.xlu0 %662, %v645
      %v664 = vpop.permute.xlu0 %663
      %667 = vset.pattern.permute.xlu0 0
      %668 = vperm.xlu0 %667, %v646
      %v669 = vpop.permute.xlu0 %668
      %672 = vset.pattern.permute.xlu0 0
      %673 = vperm.xlu0 %672, %v647
      %v674 = vpop.permute.xlu0 %673
      %677 = vset.pattern.permute.xlu0 0
      %678 = vperm.xlu0 %677, %v648
      %v679 = vpop.permute.xlu0 %678
      %682 = vset.pattern.permute.xlu0 0
      %683 = vperm.xlu0 %682, %v649
      %v684 = vpop.permute.xlu0 %683
      %687 = vset.pattern.permute.xlu0 0
      %688 = vperm.xlu0 %687, %v650
      %v689 = vpop.permute.xlu0 %688
      %692 = vset.pattern.permute.xlu0 0
      %693 = vperm.xlu0 %692, %v651
      %v694 = vpop.permute.xlu0 %693
      %697 = vset.pattern.permute.xlu0 0
      %698 = vperm.xlu0 %697, %v652
      %v699 = vpop.permute.xlu0 %698
      %702 = vset.pattern.permute.xlu0 0
      %703 = vperm.xlu0 %702, %v653
      %v704 = vpop.permute.xlu0 %703
      %707 = vset.pattern.permute.xlu0 0
      %708 = vperm.xlu0 %707, %v654
      %v709 = vpop.permute.xlu0 %708
      %712 = vset.pattern.permute.xlu0 0
      %713 = vperm.xlu0 %712, %v655
      %v714 = vpop.permute.xlu0 %713
      %717 = vset.pattern.permute.xlu0 0
      %718 = vperm.xlu0 %717, %v656
      %v719 = vpop.permute.xlu0 %718
      %722 = vset.pattern.permute.xlu0 0
      %723 = vperm.xlu0 %722, %v657
      %v724 = vpop.permute.xlu0 %723
      %727 = vset.pattern.permute.xlu0 0
      %728 = vperm.xlu0 %727, %v658
      %v729 = vpop.permute.xlu0 %728
      %732 = vset.pattern.permute.xlu0 0
      %733 = vperm.xlu0 %732, %v659
      %v734 = vpop.permute.xlu0 %733
      %737 = vset.pattern.permute.xlu0 0
      %738 = vperm.xlu0 %737, %v660
      %v739 = vpop.permute.xlu0 %738
      %v741 = vmul.f32 %v567, %v664
      %v742 = vmul.f32 %v572, %v669
      %v743 = vmul.f32 %v577, %v674
      %v744 = vmul.f32 %v582, %v679
      %v745 = vmul.f32 %v587, %v684
      %v746 = vmul.f32 %v592, %v689
      %v747 = vmul.f32 %v597, %v694
      %v748 = vmul.f32 %v602, %v699
      %v749 = vmul.f32 %v607, %v704
      %v750 = vmul.f32 %v612, %v709
      %v751 = vmul.f32 %v617, %v714
      %v752 = vmul.f32 %v622, %v719
      %v753 = vmul.f32 %v627, %v724
      %v754 = vmul.f32 %v632, %v729
      %v755 = vmul.f32 %v637, %v734
      %v756 = vmul.f32 %v642, %v739
      %v757 = vld [vmem:[%s390] sm:$0xff]
      %v758 = vld [vmem:[%s390 + $0x8] sm:$0xff]
      %v759 = vld [vmem:[%s390 + $0x10] sm:$0xff]
      %v760 = vld [vmem:[%s390 + $0x18] sm:$0xff]
      %v761 = vld [vmem:[%s390 + $0x20] sm:$0xff]
      %v762 = vld [vmem:[%s390 + $0x28] sm:$0xff]
      %v763 = vld [vmem:[%s390 + $0x30] sm:$0xff]
      %v764 = vld [vmem:[%s390 + $0x38] sm:$0xff]
      %v765 = vld [vmem:[%s390 + $0x40] sm:$0xff]
      %v766 = vld [vmem:[%s390 + $0x48] sm:$0xff]
      %v767 = vld [vmem:[%s390 + $0x50] sm:$0xff]
      %v768 = vld [vmem:[%s390 + $0x58] sm:$0xff]
      %v769 = vld [vmem:[%s390 + $0x60] sm:$0xff]
      %v770 = vld [vmem:[%s390 + $0x68] sm:$0xff]
      %v771 = vld [vmem:[%s390 + $0x70] sm:$0xff]
      %v772 = vld [vmem:[%s390 + $0x78] sm:$0xff]
      %774 = vset.pattern.permute.xlu0 0
      %775 = vperm.xlu0 %774, %v757
      %v776 = vpop.permute.xlu0 %775
      %779 = vset.pattern.permute.xlu0 0
      %780 = vperm.xlu0 %779, %v758
      %v781 = vpop.permute.xlu0 %780
      %784 = vset.pattern.permute.xlu0 0
      %785 = vperm.xlu0 %784, %v759
      %v786 = vpop.permute.xlu0 %785
      %789 = vset.pattern.permute.xlu0 0
      %790 = vperm.xlu0 %789, %v760
      %v791 = vpop.permute.xlu0 %790
      %794 = vset.pattern.permute.xlu0 0
      %795 = vperm.xlu0 %794, %v761
      %v796 = vpop.permute.xlu0 %795
      %799 = vset.pattern.permute.xlu0 0
      %800 = vperm.xlu0 %799, %v762
      %v801 = vpop.permute.xlu0 %800
      %804 = vset.pattern.permute.xlu0 0
      %805 = vperm.xlu0 %804, %v763
      %v806 = vpop.permute.xlu0 %805
      %809 = vset.pattern.permute.xlu0 0
      %810 = vperm.xlu0 %809, %v764
      %v811 = vpop.permute.xlu0 %810
      %814 = vset.pattern.permute.xlu0 0
      %815 = vperm.xlu0 %814, %v765
      %v816 = vpop.permute.xlu0 %815
      %819 = vset.pattern.permute.xlu0 0
      %820 = vperm.xlu0 %819, %v766
      %v821 = vpop.permute.xlu0 %820
      %824 = vset.pattern.permute.xlu0 0
      %825 = vperm.xlu0 %824, %v767
      %v826 = vpop.permute.xlu0 %825
      %829 = vset.pattern.permute.xlu0 0
      %830 = vperm.xlu0 %829, %v768
      %v831 = vpop.permute.xlu0 %830
      %834 = vset.pattern.permute.xlu0 0
      %835 = vperm.xlu0 %834, %v769
      %v836 = vpop.permute.xlu0 %835
      %839 = vset.pattern.permute.xlu0 0
      %840 = vperm.xlu0 %839, %v770
      %v841 = vpop.permute.xlu0 %840
      %844 = vset.pattern.permute.xlu0 0
      %845 = vperm.xlu0 %844, %v771
      %v846 = vpop.permute.xlu0 %845
      %849 = vset.pattern.permute.xlu0 0
      %850 = vperm.xlu0 %849, %v772
      %v851 = vpop.permute.xlu0 %850
      %v853 = vadd.f32 %v741, %v776
      %v854 = vadd.f32 %v742, %v781
      %v855 = vadd.f32 %v743, %v786
      %v856 = vadd.f32 %v744, %v791
      %v857 = vadd.f32 %v745, %v796
      %v858 = vadd.f32 %v746, %v801
      %v859 = vadd.f32 %v747, %v806
      %v860 = vadd.f32 %v748, %v811
      %v861 = vadd.f32 %v749, %v816
      %v862 = vadd.f32 %v750, %v821
      %v863 = vadd.f32 %v751, %v826
      %v864 = vadd.f32 %v752, %v831
      %v865 = vadd.f32 %v753, %v836
      %v866 = vadd.f32 %v754, %v841
      %v867 = vadd.f32 %v755, %v846
      %v868 = vadd.f32 %v756, %v851
      %v869 = vld [vmem:[#allocation2] sm:$0x1]
      %v870 = vmax.f32 %v853, %v857
      %v871 = vmax.f32 %v854, %v858
      %v872 = vmax.f32 %v855, %v859
      %v873 = vmax.f32 %v856, %v860
      %v874 = vmax.f32 %v870, %v861
      %v875 = vmax.f32 %v871, %v862
      %v876 = vmax.f32 %v872, %v863
      %v877 = vmax.f32 %v873, %v864
      %v878 = vmax.f32 %v874, %v865
      %v879 = vmax.f32 %v875, %v866
      %v880 = vmax.f32 %v876, %v867
      %v881 = vmax.f32 %v877, %v868
      %v882 = vmax.f32 %v878, %v879
      %v883 = vmax.f32 %v880, %v881
      %v884 = vmax.f32 %v882, %v883
      %v885 = vrot.slane %v884, 4
      %v886 = vmax.f32 %v884, %v885
      %v887 = vrot.slane %v886, 2
      %v888 = vmax.f32 %v886, %v887
      %v889 = vrot.slane %v888, 1
      %v890 = vmax.f32 %v888, %v889
      %v891 = vmax.f32 %v869, %v890
      %v892 = vsub.f32 %v869, %v891
      %v893 = vmul.f32 %v892, 1.442695
      %v894 = vpow.pop %v893
      %v896 = vlaneseq
      %v897 = vshrl.u32 %v896, 7
      %v898 = vsub.s32 0, %v897
      %v899 = vrot.slane %v891, %v898
      %v901 = vsub.f32 %v853, %v899
      %v902 = vsub.f32 %v854, %v899
      %v903 = vsub.f32 %v855, %v899
      %v904 = vsub.f32 %v856, %v899
      %v905 = vsub.f32 %v857, %v899
      %v906 = vsub.f32 %v858, %v899
      %v907 = vsub.f32 %v859, %v899
      %v908 = vsub.f32 %v860, %v899
      %v909 = vsub.f32 %v861, %v899
      %v910 = vsub.f32 %v862, %v899
      %v911 = vsub.f32 %v863, %v899
      %v912 = vsub.f32 %v864, %v899
      %v913 = vsub.f32 %v865, %v899
      %v914 = vsub.f32 %v866, %v899
      %v915 = vsub.f32 %v867, %v899
      %v916 = vsub.f32 %v868, %v899
      %v917 = vmul.f32 %v901, 1.442695
      %v918 = vpow.pop %v917
      %v919 = vmul.f32 %v902, 1.442695
      %v920 = vpow.pop %v919
      %v921 = vmul.f32 %v903, 1.442695
      %v922 = vpow.pop %v921
      %v923 = vmul.f32 %v904, 1.442695
      %v924 = vpow.pop %v923
      %v925 = vmul.f32 %v905, 1.442695
      %v926 = vpow.pop %v925
      %v927 = vmul.f32 %v906, 1.442695
      %v928 = vpow.pop %v927
      %v929 = vmul.f32 %v907, 1.442695
      %v930 = vpow.pop %v929
      %v931 = vmul.f32 %v908, 1.442695
      %v932 = vpow.pop %v931
      %v933 = vmul.f32 %v909, 1.442695
      %v934 = vpow.pop %v933
      %v935 = vmul.f32 %v910, 1.442695
      %v936 = vpow.pop %v935
      %v937 = vmul.f32 %v911, 1.442695
      %v938 = vpow.pop %v937
      %v939 = vmul.f32 %v912, 1.442695
      %v940 = vpow.pop %v939
      %v941 = vmul.f32 %v913, 1.442695
      %v942 = vpow.pop %v941
      %v943 = vmul.f32 %v914, 1.442695
      %v944 = vpow.pop %v943
      %v945 = vmul.f32 %v915, 1.442695
      %v946 = vpow.pop %v945
      %v947 = vmul.f32 %v916, 1.442695
      %v948 = vpow.pop %v947
      %v949 = vld [vmem:[#allocation3] sm:$0x1]
      %v950 = vmul.f32 %v894, %v949
      %v951 = vadd.f32 %v918, %v920
      %v952 = vadd.f32 %v951, %v922
      %v953 = vadd.f32 %v952, %v924
      %v954 = vadd.f32 %v953, %v926
      %v955 = vadd.f32 %v954, %v928
      %v956 = vadd.f32 %v955, %v930
      %v957 = vadd.f32 %v956, %v932
      %v958 = vadd.f32 %v957, %v934
      %v959 = vadd.f32 %v958, %v936
      %v960 = vadd.f32 %v959, %v938
      %v961 = vadd.f32 %v960, %v940
      %v962 = vadd.f32 %v961, %v942
      %v963 = vadd.f32 %v962, %v944
      %v964 = vadd.f32 %v963, %v946
      %v965 = vadd.f32 %v964, %v948
      %v966 = vrot.slane %v965, 4
      %v967 = vadd.f32 %v965, %v966
      %v968 = vrot.slane %v967, 2
      %v969 = vadd.f32 %v967, %v968
      %v970 = vrot.slane %v969, 1
      %v971 = vadd.f32 %v969, %v970
      %v972 = vadd.f32 %v950, %v971
      %973 = vst [vmem:[#allocation3] sm:$0x1] %v972
      %v974 = vld [vmem:[#allocation4] sm:$0xff]
      %v975 = vld [vmem:[#allocation4 + $0x8] sm:$0xff]
      %v977 = vlaneseq
      %v978 = vshrl.u32 %v977, 7
      %v979 = vsub.s32 0, %v978
      %v980 = vrot.slane %v894, %v979
      %v982 = vmul.f32 %v980, %v974
      %v983 = vmul.f32 %v980, %v975
      %v984 = vpack.c.bf16 %v920, %v918
      %v985 = vpack.c.bf16 %v924, %v922
      %v986 = vpack.c.bf16 %v928, %v926
      %v987 = vpack.c.bf16 %v932, %v930
      %v988 = vpack.c.bf16 %v936, %v934
      %v989 = vpack.c.bf16 %v940, %v938
      %v990 = vpack.c.bf16 %v944, %v942
      %v991 = vpack.c.bf16 %v948, %v946
      %v994 = vunpack.c.l.b16 %v417
      %v995 = vunpack.c.l.b16 %v418
      %v996 = vpack.c.b16 %v995, %v994
      %998 = vmatprep.subr.bf16.mxu0 0
      %999 = vmatpush1.bf16.msra.mxu0 %v984
      %1000 = vmatprep.subr.bf16.mxu0 0
      %1001 = vmatpush1.bf16.msra.mxu0 %v985
      %1002 = vmatprep.subr.bf16.mxu0 0
      %1003 = vmatpush1.bf16.msra.mxu0 %v986
      %1004 = vmatprep.subr.bf16.mxu0 0
      %1005 = vmatpush1.bf16.msra.mxu0 %v987
      %1006 = vmatprep.subr.bf16.mxu0 0
      %1007 = vmatpush1.bf16.msra.mxu0 %v988
      %1008 = vmatprep.subr.bf16.mxu0 0
      %1009 = vmatpush1.bf16.msra.mxu0 %v989
      %1010 = vmatprep.subr.bf16.mxu0 0
      %1011 = vmatpush1.bf16.msra.mxu0 %v990
      %1012 = vmatprep.subr.bf16.mxu0 0
      %1013 = vmatpush1.bf16.msra.mxu0 %v991
      %1014 = vmatprep.subr.bf16.mxu0 0
      %1015 = vmatpush1.bf16.msra.mxu0 0
      %1016 = vmatprep.subr.bf16.mxu0 0
      %1017 = vmatpush1.bf16.msra.mxu0 0
      %1018 = vmatprep.subr.bf16.mxu0 0
      %1019 = vmatpush1.bf16.msra.mxu0 0
      %1020 = vmatprep.subr.bf16.mxu0 0
      %1021 = vmatpush1.bf16.msra.mxu0 0
      %1022 = vmatprep.subr.bf16.mxu0 0
      %1023 = vmatpush1.bf16.msra.mxu0 0
      %1024 = vmatprep.subr.bf16.mxu0 0
      %1025 = vmatpush1.bf16.msra.mxu0 0
      %1026 = vmatprep.subr.bf16.mxu0 0
      %1027 = vmatpush1.bf16.msra.mxu0 0
      %1028 = vmatprep.subr.bf16.mxu0 0
      %1029 = vmatpush1.bf16.msra.mxu0 0
      %1030 = vmatprep.mubr.bf16.mxu0 0
      %1031 = vmatmul.mubr.bf16.gmra.mrb[0].mxu0 %v996
      %v1032 = vpop.f32.mrb[0].mxu0
      %v1033 = vadd.f32 0.0, %v1032
      %v1034 = vpop.f32.mrb[0].mxu0
      %v1035 = vpop.f32.mrb[0].mxu0
      %v1036 = vadd.f32 0.0, %v1035
      %v1037 = vpop.f32.mrb[0].mxu0
      %1038 = vdwg.mxu0
      %v1039 = vadd.f32 %v982, %v1033
      %v1040 = vadd.f32 %v983, %v1036
      %1041 = vst [vmem:[#allocation4] sm:$0xff] %v1039
      %1042 = vst [vmem:[#allocation4 + $0x8] sm:$0xff] %v1040
      %1043 = vst [vmem:[#allocation2] sm:$0x1] %v891
      // Predicated region
      $region45: #{decoder_forward.15} parent=39 // pred_check
        %p1044 = pneg %p401
      $region46: #{decoder_forward.15} parent=39 // pred_check_branch
        %1046 = sbr.rel (%p1044) target = $region48
      $region47: #{decoder_forward.15} parent=39 // pred_region
        %v1047 = vld [vmem:[#allocation3] sm:$0x1]
        %v1048 = vrcp.pop %v1047
        %v1049 = vld [vmem:[#allocation4] sm:$0xff]
        %v1050 = vld [vmem:[#allocation4 + $0x8] sm:$0xff]
        %v1052 = vlaneseq
        %v1053 = vshrl.u32 %v1052, 7
        %v1054 = vsub.s32 0, %v1053
        %v1055 = vrot.slane %v1048, %v1054
        %v1057 = vmul.f32 %v1049, %v1055
        %v1058 = vmul.f32 %v1050, %v1055
        %v1059 = vmax.f32 %v1057, 0.0
        %v1060 = vmax.f32 %v1058, 0.0
        %v1061 = vpack.c.bf16 %v1060, %v1059
        %v1063 = vunpack.c.l.b16 %v1061
        %v1064 = vunpack.c.h.b16 %v1061
        %v1065 = vpack.c.b16 %v1063, %v1063
        %v1066 = vpack.c.b16 %v1064, %v1064
        %1069 = vst [vmem:[%s399] sm:$0xf] %v1065
        %1070 = vst [vmem:[%s399 + $0x4] sm:$0xf] %v1066
      $region48: #{decoder_forward.15} parent=39 // pred_fallthru
        _
      %p1071 = scmp.lt.s32.totalorder %s21, 1
      %s1072 = scalar_select %p1071, %s21, 1
      %p1073 = scmp.lt.s32.totalorder %s22, 0
      %s1074 = scalar_select %p1073, %s22, 0
      %s1075 = smul.addr %s1072, 2
      %s1076 = sadd.s32 %s1074, %s1075
      %s1077 = smul.addr %s1076, 4
      %s1078 = scalar_lea.vmem %s5, %s1077
      // Predicated region
      $region49: #{decoder_forward.15} parent=39 // pred_check
        %p1079 = pneg %p195
      $region50: #{decoder_forward.15} parent=39 // pred_check_branch
        %1081 = sbr.rel (%p1079) target = $region52
      $region51: #{decoder_forward.15} parent=39 // pred_region
        _
      $region52: #{decoder_forward.15} parent=39 // pred_fallthru
        _
    $region40: #{decoder_forward.15} parent=5 // pred_fallthru
      _
    %p1082 = scmp.le.s32.totalorder 2, %s11
    // Predicated region
    $region53: #{decoder_forward.15} parent=5 // pred_check
      %p1083 = pneg %p1082
    $region54: #{decoder_forward.15} parent=5 // pred_check_branch
      %1085 = sbr.rel (%p1083) target = $region56
    $region55: #{decoder_forward.15} parent=5 // pred_region
      %s1086 = ssub.s32 %s11, 2
      // Predicated region
      $region57: #{decoder_forward.15} parent=55 // pred_check
        %p1087 = pneg %p201
      $region58: #{decoder_forward.15} parent=55 // pred_check_branch
        %1089 = sbr.rel (%p1087) target = $region60
      $region59: #{decoder_forward.15} parent=55 // pred_region
        %p1090 = scmp.lt.s32.totalorder %s24, 1
        %s1091 = scalar_select %p1090, %s24, 1
        %p1092 = scmp.lt.s32.totalorder %s25, 0
        %s1093 = scalar_select %p1092, %s25, 0
        %s1094 = smul.addr %s1091, 2
        %s1095 = sadd.s32 %s1093, %s1094
        %s1096 = smul.addr %s1095, 4
        %s1097 = scalar_lea.vmem %s5, %s1096
      $region60: #{decoder_forward.15} parent=55 // pred_fallthru
        _
    $region56: #{decoder_forward.15} parent=5 // pred_fallthru
      _
  $region6: #{decoder_forward.15} parent=0 // loop_footer
    %s15 = sadd.s32 1, %s11
  $region7: #{decoder_forward.15} parent=0 // loop_footer_branch
    %10 = sbr.rel target = $region3
  $region8: #{decoder_forward.15} parent=0 // loop_exit
    _

</llo_original>
